<compile_context>
chip_gen: v5e
topology: v5e:2x2
jax: 0.10.0
libtpu: 0.0.40
codegen_flags: <defaults>
</compile_context>

<pallas_src>
import jax
import jax.numpy as jnp
import numpy as np
from jax import lax
from jax.experimental import pallas as pl
from jax.experimental.pallas import tpu as pltpu


def _round_up(x, m):
    return (x + m - 1) // m * m


# ---------------------------------------------------------------------------
# Fused ResidualBlock kernel (one batch image per grid step)
# ---------------------------------------------------------------------------
def _make_resblock_kernel(s, Ho, Wo, P, B, L, Cp, RB, identity_add):
    taps = [(dy, dx) for dy in range(3) for dx in range(3)]

    # conv1 taps grouped by (stride phase, column shift): one window slice +
    # one bf16 cast per group, then aligned (multiple-of-P) row slices per tap.
    groups = {}
    for t, (dy, dx) in enumerate(taps):
        q = (dy % s) * s + (dx % s)
        groups.setdefault((q, dx // s), []).append((t, dy // s))
    conv1_groups = list(groups.items())

    qc = (1 % s) * s + (1 % s)          # centre tap phase == 1x1-shortcut input
    rc, dc = 1 // s, 1 // s

    def kernel(xph_ref, w1_ref, b1_ref, w2_ref, b2_ref, ws_ref, bs_ref,
               o_ref, y1_ref):

        def phase_window(q, row0, delta, nrows):
            # bf16 window of phase q covering flat rows
            # [row0 + delta, row0 + delta + nrows).  row0 is a multiple of P
            # (16-aligned) so the aligned case is a plain bf16 load; the
            # delta-shifted case goes through an f32 round trip so the odd
            # sublane offset is only ever applied to f32 data.
            if delta == 0:
                return xph_ref[0, q, row0:row0 + nrows, :]
            raw = xph_ref[0, q, row0:row0 + nrows + 8, :]
            return raw.astype(jnp.float32)[delta:delta + nrows, :].astype(
                jnp.bfloat16)

        # y1 scratch: only the top/bottom halo rows need explicit zeros; the
        # interior (including the P-Wo junk columns of every row) is fully
        # overwritten by the masked conv1 block stores below.
        y1_ref[0:B, :] = jnp.zeros((B, Cp), jnp.float32)
        y1_ref[B + Ho * P:L, :] = jnp.zeros((L - B - Ho * P, Cp), jnp.float32)

        # ---------------- conv1 + bias + ReLU -> y1 scratch ----------------
        for hb in range(0, Ho, RB):
            rb = min(RB, Ho - hb)
            m = rb * P
            acc = jnp.zeros((m, Cp), jnp.float32)
            for (q, delta), tlist in conv1_groups:
                rho_max = max(r for _, r in tlist)
                win = phase_window(q, hb * P, delta, m + rho_max * P)
                for t, rho in tlist:
                    acc = acc + jnp.dot(win[rho * P:rho * P + m, :],
                                        w1_ref[t],
                                        preferred_element_type=jnp.float32)
            yb = jnp.maximum(acc + b1_ref[...], 0.0)
            # Zero the junk columns (col >= Wo of every pitch-P row) so conv2
            # gets its left/right zero padding for free from y1.
            col = lax.broadcasted_iota(jnp.int32, (m, 1), 0) % P
            yb = jnp.where(col < Wo, yb, 0.0)
            y1_ref[B + hb * P:B + hb * P + m, :] = yb    # one aligned store

        # -------- conv2 + bias + shortcut + residual ReLU -> output --------
        for hb in range(0, Ho, RB):
            rb = min(RB, Ho - hb)
            m = rb * P
            acc = jnp.zeros((m, Cp), jnp.float32)
            for dx in range(3):            # group taps by dx: 3 casts, not 9
                start = B + (hb - 1) * P + (dx - 1)
                win = y1_ref[start:start + m + 2 * P, :].astype(jnp.bfloat16)
                for dy in range(3):
                    acc = acc + jnp.dot(win[dy * P:dy * P + m, :],
                                        w2_ref[dy * 3 + dx],
                                        preferred_element_type=jnp.float32)
            acc = acc + b2_ref[...]

            xc = phase_window(qc, (hb + rc) * P, dc, m)   # shortcut input
            if identity_add:                               # Cin == Cout == Cp
                acc = acc + xc.astype(jnp.float32)
            else:                                          # 1x1 projection / I
                acc = acc + (jnp.dot(xc, ws_ref[...],
                                     preferred_element_type=jnp.float32)
                             + bs_ref[...])
            o_ref[0, hb * P:hb * P + m, :] = jnp.maximum(acc, 0.0)

    return kernel


# ---------------------------------------------------------------------------
# Wrapper: full ResidualBlock forward (NCHW in / NCHW out, like PyTorch)
# ---------------------------------------------------------------------------
def residual_block_forward(x_nchw, params, stride, rows_per_chunk=None):
    w1, b1, w2, b2 = params["w1"], params["b1"], params["w2"], params["b2"]
    Cout, Cin = int(w1.shape[0]), int(w1.shape[1])
    N, _, H, W = x_nchw.shape
    N, H, W = int(N), int(H), int(W)
    s = int(stride)
    if Cin == Cout and s != 1:
        raise ValueError("identity shortcut (in_channels == out_channels) "
                         "requires stride == 1, as in the PyTorch module")

    Ho = (H - 1) // s + 1              # 3x3 conv, pad 1, stride s
    Wo = (W - 1) // s + 1
    Cp = _round_up(Cout, 128)          # lane-dense channel padding
    # Shared row pitch for input phases / y1 scratch / output strip.
    # 16-aligned so every bf16 row offset used in the kernel is vreg-aligned.
    P = _round_up(Wo + 2, 16)
    Hph = Ho + 2 // s                  # stride-phase row extent
    Mph = Hph * P + 8                  # +8 slack rows (junk-column tap reads)
    B = P + 8                          # y1 top halo rows
    L = B + (Ho + 1) * P + 8           # y1 scratch rows
    if rows_per_chunk is None:
        RB = max(1, min(Ho, 512 // P))     # ~512-row MXU strips per chunk
    else:
        RB = max(1, min(Ho, int(rows_per_chunk)))

    identity_add = (Cin == Cout) and (Cin == Cp)

    # ---- NCHW -> NHWC, spatial zero-pad, stride-phase decomposition ----
    x = jnp.transpose(x_nchw, (0, 2, 3, 1)).astype(jnp.float32)
    x_pad = jnp.pad(x, ((0, 0), (1, Hph * s - H - 1), (1, P * s - W - 1),
                        (0, 0)))
    xph = x_pad.reshape(N, Hph, s, P, s, Cin)
    xph = jnp.transpose(xph, (0, 2, 4, 1, 3, 5))   # (N, py, px, Hph, P, C)
    xph = xph.reshape(N, s * s, Hph * P, Cin)
    xph = jnp.pad(xph, ((0, 0), (0, 0), (0, 8), (0, 0))).astype(jnp.bfloat16)

    # ---- weights as per-tap GEMM matrices, channel-padded, bf16 ----
    pad_c = Cp - Cout
    w1_t = jnp.transpose(w1, (2, 3, 1, 0)).reshape(9, Cin, Cout)
    w1_t = jnp.pad(w1_t, ((0, 0), (0, 0), (0, pad_c))).astype(jnp.bfloat16)
    w2_t = jnp.transpose(w2, (2, 3, 1, 0)).reshape(9, Cout, Cout)
    w2_t = jnp.pad(w2_t, ((0, 0), (0, pad_c), (0, pad_c))).astype(jnp.bfloat16)
    b1_p = jnp.pad(b1, (0, pad_c)).reshape(1, Cp).astype(jnp.float32)
    b2_p = jnp.pad(b2, (0, pad_c)).reshape(1, Cp).astype(jnp.float32)

    if Cin != Cout:                    # projection shortcut: 1x1 conv, stride s
        ws_m = jnp.transpose(params["ws"], (2, 3, 1, 0)).reshape(Cin, Cout)
        bs_v = params["bs"]
    elif identity_add:                 # pure add inside the kernel (unused)
        ws_m = jnp.zeros((Cin, Cout), jnp.float32)
        bs_v = jnp.zeros((Cout,), jnp.float32)
    else:                              # identity, but Cout % 128 != 0:
        ws_m = jnp.eye(Cin, dtype=jnp.float32)   # I-projection handles lanes
        bs_v = jnp.zeros((Cout,), jnp.float32)
    ws_p = jnp.pad(ws_m, ((0, 0), (0, pad_c))).astype(jnp.bfloat16)
    bs_p = jnp.pad(bs_v, (0, pad_c)).reshape(1, Cp).astype(jnp.float32)

    kernel = _make_resblock_kernel(s, Ho, Wo, P, B, L, Cp, RB, identity_add)
    out_k = pl.pallas_call(
        kernel,
        out_shape=jax.ShapeDtypeStruct((N, Ho * P, Cp), jnp.float32),
        grid_spec=pltpu.PrefetchScalarGridSpec(
            num_scalar_prefetch=0,
            grid=(N,),
            in_specs=[
                pl.BlockSpec((1, s * s, Mph, Cin), lambda n: (n, 0, 0, 0)),
                pl.BlockSpec((9, Cin, Cp), lambda n: (0, 0, 0)),
                pl.BlockSpec((1, Cp), lambda n: (0, 0)),
                pl.BlockSpec((9, Cp, Cp), lambda n: (0, 0, 0)),
                pl.BlockSpec((1, Cp), lambda n: (0, 0)),
                pl.BlockSpec((Cin, Cp), lambda n: (0, 0)),
                pl.BlockSpec((1, Cp), lambda n: (0, 0)),
            ],
            out_specs=pl.BlockSpec((1, Ho * P, Cp), lambda n: (n, 0, 0)),
            scratch_shapes=[pltpu.VMEM((L, Cp), jnp.float32)],
        ),
        compiler_params=pltpu.CompilerParams(
            dimension_semantics=("parallel",),
            # v5e/v6e have 128 MiB physical VMEM; keep <= ~48 MiB on v7x.
            vmem_limit_bytes=64 * 1024 * 1024,
        ),
    )(xph, w1_t, b1_p, w2_t, b2_p, ws_p, bs_p)

    out = out_k.reshape(N, Ho, P, Cp)[:, :, :Wo, :Cout]   # strip pitch/lanes
    return jnp.transpose(out, (0, 3, 1, 2))               # NHWC -> NCHW


# ---------------------------------------------------------------------------
# Pure-JAX reference (lax.conv) for correctness check
# ---------------------------------------------------------------------------
def _reference_forward(x_nchw, params, stride):
    x = jnp.transpose(x_nchw, (0, 2, 3, 1)).astype(jnp.float32)
    dn = ("NHWC", "HWIO", "NHWC")
    Cout, Cin = params["w1"].shape[0], params["w1"].shape[1]
    w1 = jnp.transpose(params["w1"], (2, 3, 1, 0))
    w2 = jnp.transpose(params["w2"], (2, 3, 1, 0))
    y = lax.conv_general_dilated(x, w1, (stride, stride), [(1, 1), (1, 1)],
                                 dimension_numbers=dn) + params["b1"]
    y = jnp.maximum(y, 0.0)
    y = lax.conv_general_dilated(y, w2, (1, 1), [(1, 1), (1, 1)],
                                 dimension_numbers=dn) + params["b2"]
    if Cin != Cout:
        ws = jnp.transpose(params["ws"], (2, 3, 1, 0))
        y = y + (lax.conv_general_dilated(x, ws, (stride, stride), "VALID",
                                          dimension_numbers=dn) + params["bs"])
    else:
        y = y + x
    y = jnp.maximum(y, 0.0)
    return jnp.transpose(y, (0, 3, 1, 2))


if __name__ == "__main__":
    fwd = jax.jit(residual_block_forward,
                  static_argnames=("stride", "rows_per_chunk"))

    def run_case(case_idx, N, Cin, Cout, H, W, stride, rows_per_chunk=None):
        key = jax.random.fold_in(jax.random.PRNGKey(0), case_idx)
        ks = jax.random.split(key, 7)
        params = {
            "w1": 0.1 * jax.random.normal(ks[0], (Cout, Cin, 3, 3), jnp.float32),
            "b1": 0.1 * jax.random.normal(ks[1], (Cout,), jnp.float32),
            "w2": 0.1 * jax.random.normal(ks[2], (Cout, Cout, 3, 3), jnp.float32),
            "b2": 0.1 * jax.random.normal(ks[3], (Cout,), jnp.float32),
        }
        if Cin != Cout:
            params["ws"] = 0.1 * jax.random.normal(ks[4], (Cout, Cin, 1, 1),
                                                   jnp.float32)
            params["bs"] = 0.1 * jax.random.normal(ks[5], (Cout,), jnp.float32)
        x = jax.random.normal(ks[6], (N, Cin, H, W), jnp.float32)

        out = jax.block_until_ready(fwd(x, params, stride=stride,
                                        rows_per_chunk=rows_per_chunk))
        ref = jax.block_until_ready(_reference_forward(x, params, stride))
        Ho = (H - 1) // stride + 1
        Wo = (W - 1) // stride + 1
        assert out.shape == (N, Cout, Ho, Wo), out.shape
        o, r = np.asarray(out), np.asarray(ref)
        # bf16 MXU math (on both sides) -> scale-aware max-abs-error check.
        err = float(np.max(np.abs(o - r)))
        scale = max(1.0, float(np.max(np.abs(r))))
        if err > 3e-2 * scale:
            raise SystemExit(f"case {case_idx}: Pallas output mismatch "
                             f"(max abs err {err:.3e}, ref scale {scale:.3e})")

    # projection shortcut (Cin != Cout), stride 2
    run_case(0, N=2, Cin=4, Cout=8, H=16, W=16, stride=2)
    # identity shortcut with lane padding (Cin == Cout < 128), stride 1
    run_case(1, N=2, Cin=8, Cout=8, H=16, W=16, stride=1)
    # identity shortcut, full 128 lanes, multiple row chunks exercised
    run_case(2, N=1, Cin=128, Cout=128, H=12, W=12, stride=1, rows_per_chunk=4)

    print("KERNEL_OK")
</pallas_src>

<mosaic_0001>
module attributes {stable_mosaic.version = 11 : i64} {
  func.func @kernel(%arg0: i32, %arg1: memref<1x4x152x4xbf16, #tpu.memory_space<vmem>>, %arg2: memref<9x4x128xbf16, #tpu.memory_space<vmem>>, %arg3: memref<1x128xf32, #tpu.memory_space<vmem>>, %arg4: memref<9x128x128xbf16, #tpu.memory_space<vmem>>, %arg5: memref<1x128xf32, #tpu.memory_space<vmem>>, %arg6: memref<4x128xbf16, #tpu.memory_space<vmem>>, %arg7: memref<1x128xf32, #tpu.memory_space<vmem>>, %arg8: memref<1x128x128xf32, #tpu.memory_space<vmem>>, %arg9: memref<176x128xf32, #tpu.memory_space<vmem>>) attributes {dimension_semantics = [#tpu.dimension_semantics<parallel>], iteration_bounds = array<i64: 2>, scalar_prefetch = 0 : i64, scratch_operands = 1 : i64, tpu.core_type = #tpu.core_type<tc>, window_params = [{transform_indices = @transform_0, window_bounds = array<i64: 1, 4, 152, 4>}, {pipeline_mode = #tpu.pipeline_mode<synchronous>, transform_indices = @transform_1, window_bounds = array<i64: 9, 4, 128>}, {pipeline_mode = #tpu.pipeline_mode<synchronous>, transform_indices = @transform_2, window_bounds = array<i64: 1, 128>}, {pipeline_mode = #tpu.pipeline_mode<synchronous>, transform_indices = @transform_3, window_bounds = array<i64: 9, 128, 128>}, {pipeline_mode = #tpu.pipeline_mode<synchronous>, transform_indices = @transform_4, window_bounds = array<i64: 1, 128>}, {pipeline_mode = #tpu.pipeline_mode<synchronous>, transform_indices = @transform_5, window_bounds = array<i64: 4, 128>}, {pipeline_mode = #tpu.pipeline_mode<synchronous>, transform_indices = @transform_6, window_bounds = array<i64: 1, 128>}, {transform_indices = @transform_7, window_bounds = array<i64: 1, 128, 128>}]} {
    %cst = arith.constant 0.000000e+00 : f32
    %0 = vector.broadcast %cst : f32 to vector<24x128xf32>
    %c0 = arith.constant 0 : index
    %c0_0 = arith.constant 0 : index
    %1 = vector.load %arg9[%c0, %c0_0] : memref<176x128xf32, #tpu.memory_space<vmem>>, vector<24x128xf32>
    tpu.vector_store %arg9[%c0, %c0_0], %0 {strides = array<i32>} : memref<176x128xf32, #tpu.memory_space<vmem>>, vector<24x128xf32>,
    %cst_1 = arith.constant 0.000000e+00 : f32
    %2 = vector.broadcast %cst_1 : f32 to vector<24x128xf32>
    %c152 = arith.constant 152 : index
    %c0_2 = arith.constant 0 : index
    %3 = vector.load %arg9[%c152, %c0_2] : memref<176x128xf32, #tpu.memory_space<vmem>>, vector<24x128xf32>
    tpu.vector_store %arg9[%c152, %c0_2], %2 {strides = array<i32>} : memref<176x128xf32, #tpu.memory_space<vmem>>, vector<24x128xf32>,
    %cst_3 = arith.constant 0.000000e+00 : f32
    %4 = vector.broadcast %cst_3 : f32 to vector<128x128xf32>
    %c0_4 = arith.constant 0 : index
    %c0_5 = arith.constant 0 : index
    %c0_6 = arith.constant 0 : index
    %c0_7 = arith.constant 0 : index
    %5 = vector.load %arg1[%c0_4, %c0_5, %c0_6, %c0_7] : memref<1x4x152x4xbf16, #tpu.memory_space<vmem>>, vector<1x1x144x4xbf16>
    %6 = vector.shape_cast %5 : vector<1x1x144x4xbf16> to vector<144x4xbf16>
    %7 = vector.extract_strided_slice %6 {offsets = [0, 0], sizes = [128, 4], strides = [1, 1]} : vector<144x4xbf16> to vector<128x4xbf16>
    %c0_8 = arith.constant 0 : index
    %c0_9 = arith.constant 0 : index
    %c0_10 = arith.constant 0 : index
    %8 = vector.load %arg2[%c0_8, %c0_9, %c0_10] : memref<9x4x128xbf16, #tpu.memory_space<vmem>>, vector<1x4x128xbf16>
    %9 = vector.shape_cast %8 : vector<1x4x128xbf16> to vector<4x128xbf16>
    %cst_11 = arith.constant dense<0.000000e+00> : vector<128x128xf32>
    %10 = tpu.matmul %7, %9, %cst_11 {dimension_numbers = #tpu.dot_dimension_numbers<[1], [0], [0], [1], [0, 0, 1, 1], [], []>} : vector<128x4xbf16>, vector<4x128xbf16>, vector<128x128xf32> -> vector<128x128xf32>
    %11 = arith.addf %4, %10 : vector<128x128xf32>
    %12 = vector.extract_strided_slice %6 {offsets = [16, 0], sizes = [128, 4], strides = [1, 1]} : vector<144x4xbf16> to vector<128x4xbf16>
    %c6 = arith.constant 6 : index
    %c0_12 = arith.constant 0 : index
    %c0_13 = arith.constant 0 : index
    %13 = vector.load %arg2[%c6, %c0_12, %c0_13] : memref<9x4x128xbf16, #tpu.memory_space<vmem>>, vector<1x4x128xbf16>
    %14 = vector.shape_cast %13 : vector<1x4x128xbf16> to vector<4x128xbf16>
    %cst_14 = arith.constant dense<0.000000e+00> : vector<128x128xf32>
    %15 = tpu.matmul %12, %14, %cst_14 {dimension_numbers = #tpu.dot_dimension_numbers<[1], [0], [0], [1], [0, 0, 1, 1], [], []>} : vector<128x4xbf16>, vector<4x128xbf16>, vector<128x128xf32> -> vector<128x128xf32>
    %16 = arith.addf %11, %15 : vector<128x128xf32>
    %c0_15 = arith.constant 0 : index
    %c1 = arith.constant 1 : index
    %c0_16 = arith.constant 0 : index
    %c0_17 = arith.constant 0 : index
    %17 = vector.load %arg1[%c0_15, %c1, %c0_16, %c0_17] : memref<1x4x152x4xbf16, #tpu.memory_space<vmem>>, vector<1x1x144x4xbf16>
    %18 = vector.shape_cast %17 : vector<1x1x144x4xbf16> to vector<144x4xbf16>
    %19 = vector.extract_strided_slice %18 {offsets = [0, 0], sizes = [128, 4], strides = [1, 1]} : vector<144x4xbf16> to vector<128x4xbf16>
    %c1_18 = arith.constant 1 : index
    %c0_19 = arith.constant 0 : index
    %c0_20 = arith.constant 0 : index
    %20 = vector.load %arg2[%c1_18, %c0_19, %c0_20] : memref<9x4x128xbf16, #tpu.memory_space<vmem>>, vector<1x4x128xbf16>
    %21 = vector.shape_cast %20 : vector<1x4x128xbf16> to vector<4x128xbf16>
    %cst_21 = arith.constant dense<0.000000e+00> : vector<128x128xf32>
    %22 = tpu.matmul %19, %21, %cst_21 {dimension_numbers = #tpu.dot_dimension_numbers<[1], [0], [0], [1], [0, 0, 1, 1], [], []>} : vector<128x4xbf16>, vector<4x128xbf16>, vector<128x128xf32> -> vector<128x128xf32>
    %23 = arith.addf %16, %22 : vector<128x128xf32>
    %24 = vector.extract_strided_slice %18 {offsets = [16, 0], sizes = [128, 4], strides = [1, 1]} : vector<144x4xbf16> to vector<128x4xbf16>
    %c7 = arith.constant 7 : index
    %c0_22 = arith.constant 0 : index
    %c0_23 = arith.constant 0 : index
    %25 = vector.load %arg2[%c7, %c0_22, %c0_23] : memref<9x4x128xbf16, #tpu.memory_space<vmem>>, vector<1x4x128xbf16>
    %26 = vector.shape_cast %25 : vector<1x4x128xbf16> to vector<4x128xbf16>
    %cst_24 = arith.constant dense<0.000000e+00> : vector<128x128xf32>
    %27 = tpu.matmul %24, %26, %cst_24 {dimension_numbers = #tpu.dot_dimension_numbers<[1], [0], [0], [1], [0, 0, 1, 1], [], []>} : vector<128x4xbf16>, vector<4x128xbf16>, vector<128x128xf32> -> vector<128x128xf32>
    %28 = arith.addf %23, %27 : vector<128x128xf32>
    %c0_25 = arith.constant 0 : index
    %c0_26 = arith.constant 0 : index
    %c0_27 = arith.constant 0 : index
    %c0_28 = arith.constant 0 : index
    %29 = vector.load %arg1[%c0_25, %c0_26, %c0_27, %c0_28] : memref<1x4x152x4xbf16, #tpu.memory_space<vmem>>, vector<1x1x152x4xbf16>
    %30 = vector.shape_cast %29 : vector<1x1x152x4xbf16> to vector<152x4xbf16>
    %31 = arith.extf %30 : vector<152x4xbf16> to vector<152x4xf32>
    %32 = vector.extract_strided_slice %31 {offsets = [1, 0], sizes = [144, 4], strides = [1, 1]} : vector<152x4xf32> to vector<144x4xf32>
    %33 = arith.truncf %32 : vector<144x4xf32> to vector<144x4xbf16>
    %34 = vector.extract_strided_slice %33 {offsets = [0, 0], sizes = [128, 4], strides = [1, 1]} : vector<144x4xbf16> to vector<128x4xbf16>
    %c2 = arith.constant 2 : index
    %c0_29 = arith.constant 0 : index
    %c0_30 = arith.constant 0 : index
    %35 = vector.load %arg2[%c2, %c0_29, %c0_30] : memref<9x4x128xbf16, #tpu.memory_space<vmem>>, vector<1x4x128xbf16>
    %36 = vector.shape_cast %35 : vector<1x4x128xbf16> to vector<4x128xbf16>
    %cst_31 = arith.constant dense<0.000000e+00> : vector<128x128xf32>
    %37 = tpu.matmul %34, %36, %cst_31 {dimension_numbers = #tpu.dot_dimension_numbers<[1], [0], [0], [1], [0, 0, 1, 1], [], []>} : vector<128x4xbf16>, vector<4x128xbf16>, vector<128x128xf32> -> vector<128x128xf32>
    %38 = arith.addf %28, %37 : vector<128x128xf32>
    %39 = vector.extract_strided_slice %33 {offsets = [16, 0], sizes = [128, 4], strides = [1, 1]} : vector<144x4xbf16> to vector<128x4xbf16>
    %c8 = arith.constant 8 : index
    %c0_32 = arith.constant 0 : index
    %c0_33 = arith.constant 0 : index
    %40 = vector.load %arg2[%c8, %c0_32, %c0_33] : memref<9x4x128xbf16, #tpu.memory_space<vmem>>, vector<1x4x128xbf16>
    %41 = vector.shape_cast %40 : vector<1x4x128xbf16> to vector<4x128xbf16>
    %cst_34 = arith.constant dense<0.000000e+00> : vector<128x128xf32>
    %42 = tpu.matmul %39, %41, %cst_34 {dimension_numbers = #tpu.dot_dimension_numbers<[1], [0], [0], [1], [0, 0, 1, 1], [], []>} : vector<128x4xbf16>, vector<4x128xbf16>, vector<128x128xf32> -> vector<128x128xf32>
    %43 = arith.addf %38, %42 : vector<128x128xf32>
    %c0_35 = arith.constant 0 : index
    %c2_36 = arith.constant 2 : index
    %c0_37 = arith.constant 0 : index
    %c0_38 = arith.constant 0 : index
    %44 = vector.load %arg1[%c0_35, %c2_36, %c0_37, %c0_38] : memref<1x4x152x4xbf16, #tpu.memory_space<vmem>>, vector<1x1x128x4xbf16>
    %45 = vector.shape_cast %44 : vector<1x1x128x4xbf16> to vector<128x4xbf16>
    %c3 = arith.constant 3 : index
    %c0_39 = arith.constant 0 : index
    %c0_40 = arith.constant 0 : index
    %46 = vector.load %arg2[%c3, %c0_39, %c0_40] : memref<9x4x128xbf16, #tpu.memory_space<vmem>>, vector<1x4x128xbf16>
    %47 = vector.shape_cast %46 : vector<1x4x128xbf16> to vector<4x128xbf16>
    %cst_41 = arith.constant dense<0.000000e+00> : vector<128x128xf32>
    %48 = tpu.matmul %45, %47, %cst_41 {dimension_numbers = #tpu.dot_dimension_numbers<[1], [0], [0], [1], [0, 0, 1, 1], [], []>} : vector<128x4xbf16>, vector<4x128xbf16>, vector<128x128xf32> -> vector<128x128xf32>
    %49 = arith.addf %43, %48 : vector<128x128xf32>
    %c0_42 = arith.constant 0 : index
    %c3_43 = arith.constant 3 : index
    %c0_44 = arith.constant 0 : index
    %c0_45 = arith.constant 0 : index
    %50 = vector.load %arg1[%c0_42, %c3_43, %c0_44, %c0_45] : memref<1x4x152x4xbf16, #tpu.memory_space<vmem>>, vector<1x1x128x4xbf16>
    %51 = vector.shape_cast %50 : vector<1x1x128x4xbf16> to vector<128x4xbf16>
    %c4 = arith.constant 4 : index
    %c0_46 = arith.constant 0 : index
    %c0_47 = arith.constant 0 : index
    %52 = vector.load %arg2[%c4, %c0_46, %c0_47] : memref<9x4x128xbf16, #tpu.memory_space<vmem>>, vector<1x4x128xbf16>
    %53 = vector.shape_cast %52 : vector<1x4x128xbf16> to vector<4x128xbf16>
    %cst_48 = arith.constant dense<0.000000e+00> : vector<128x128xf32>
    %54 = tpu.matmul %51, %53, %cst_48 {dimension_numbers = #tpu.dot_dimension_numbers<[1], [0], [0], [1], [0, 0, 1, 1], [], []>} : vector<128x4xbf16>, vector<4x128xbf16>, vector<128x128xf32> -> vector<128x128xf32>
    %55 = arith.addf %49, %54 : vector<128x128xf32>
    %c0_49 = arith.constant 0 : index
    %c2_50 = arith.constant 2 : index
    %c0_51 = arith.constant 0 : index
    %c0_52 = arith.constant 0 : index
    %56 = vector.load %arg1[%c0_49, %c2_50, %c0_51, %c0_52] : memref<1x4x152x4xbf16, #tpu.memory_space<vmem>>, vector<1x1x136x4xbf16>
    %57 = vector.shape_cast %56 : vector<1x1x136x4xbf16> to vector<136x4xbf16>
    %58 = arith.extf %57 : vector<136x4xbf16> to vector<136x4xf32>
    %59 = vector.extract_strided_slice %58 {offsets = [1, 0], sizes = [128, 4], strides = [1, 1]} : vector<136x4xf32> to vector<128x4xf32>
    %60 = arith.truncf %59 : vector<128x4xf32> to vector<128x4xbf16>
    %c5 = arith.constant 5 : index
    %c0_53 = arith.constant 0 : index
    %c0_54 = arith.constant 0 : index
    %61 = vector.load %arg2[%c5, %c0_53, %c0_54] : memref<9x4x128xbf16, #tpu.memory_space<vmem>>, vector<1x4x128xbf16>
    %62 = vector.shape_cast %61 : vector<1x4x128xbf16> to vector<4x128xbf16>
    %cst_55 = arith.constant dense<0.000000e+00> : vector<128x128xf32>
    %63 = tpu.matmul %60, %62, %cst_55 {dimension_numbers = #tpu.dot_dimension_numbers<[1], [0], [0], [1], [0, 0, 1, 1], [], []>} : vector<128x4xbf16>, vector<4x128xbf16>, vector<128x128xf32> -> vector<128x128xf32>
    %64 = arith.addf %55, %63 : vector<128x128xf32>
    %c0_56 = arith.constant 0 : index
    %c0_57 = arith.constant 0 : index
    %65 = vector.load %arg3[%c0_56, %c0_57] : memref<1x128xf32, #tpu.memory_space<vmem>>, vector<1x128xf32>
    %66 = vector.broadcast %65 : vector<1x128xf32> to vector<128x128xf32>
    %67 = arith.addf %64, %66 : vector<128x128xf32>
    %cst_58 = arith.constant 0.000000e+00 : f32
    %68 = vector.broadcast %cst_58 : f32 to vector<128x128xf32>
    %69 = arith.maximumf %67, %68 : vector<128x128xf32>
    %70 = tpu.iota {dimensions = array<i32: 0>} : vector<128x1xi32>
    %c16_i32 = arith.constant 16 : i32
    %c0_i32 = arith.constant 0 : i32
    %71 = arith.cmpi eq, %c16_i32, %c0_i32 : i32
    %c1_i32 = arith.constant 1 : i32
    %72 = arith.select %71, %c1_i32, %c16_i32 : i32
    %73 = vector.broadcast %72 : i32 to vector<128x1xi32>
    %74 = arith.remsi %70, %73 : vector<128x1xi32>
    %c0_i32_59 = arith.constant 0 : i32
    %75 = vector.broadcast %c0_i32_59 : i32 to vector<128x1xi32>
    %76 = arith.cmpi ne, %74, %75 : vector<128x1xi32>
    %c0_i32_60 = arith.constant 0 : i32
    %77 = vector.broadcast %c0_i32_60 : i32 to vector<128x1xi32>
    %78 = arith.cmpi slt, %74, %77 : vector<128x1xi32>
    %c0_i32_61 = arith.constant 0 : i32
    %79 = arith.cmpi slt, %72, %c0_i32_61 : i32
    %80 = vector.broadcast %79 : i1 to vector<128x1xi1>
    %81 = vector.broadcast %80 : vector<128x1xi1> to vector<128x1xi1>
    %82 = arith.xori %78, %81 : vector<128x1xi1>
    %83 = arith.andi %82, %76 : vector<128x1xi1>
    %84 = vector.broadcast %72 : i32 to vector<128x1xi32>
    %85 = arith.addi %74, %84 : vector<128x1xi32>
    %86 = arith.select %83, %85, %74 : vector<128x1xi1>, vector<128x1xi32>
    %c8_i32 = arith.constant 8 : i32
    %87 = vector.broadcast %c8_i32 : i32 to vector<128x1xi32>
    %88 = arith.cmpi slt, %86, %87 : vector<128x1xi32>
    %cst_62 = arith.constant 0.000000e+00 : f32
    %89 = vector.shape_cast %88 : vector<128x1xi1> to vector<128x1xi1>
    %90 = vector.broadcast %89 : vector<128x1xi1> to vector<128x128xi1>
    %91 = vector.broadcast %cst_62 : f32 to vector<128x128xf32>
    %92 = arith.select %90, %69, %91 : vector<128x128xi1>, vector<128x128xf32>
    %c24 = arith.constant 24 : index
    %c0_63 = arith.constant 0 : index
    %93 = vector.load %arg9[%c24, %c0_63] : memref<176x128xf32, #tpu.memory_space<vmem>>, vector<128x128xf32>
    tpu.vector_store %arg9[%c24, %c0_63], %92 {strides = array<i32>} : memref<176x128xf32, #tpu.memory_space<vmem>>, vector<128x128xf32>,
    %cst_64 = arith.constant 0.000000e+00 : f32
    %94 = vector.broadcast %cst_64 : f32 to vector<128x128xf32>
    %c7_65 = arith.constant 7 : index
    %c0_66 = arith.constant 0 : index
    %95 = vector.load %arg9[%c7_65, %c0_66] : memref<176x128xf32, #tpu.memory_space<vmem>>, vector<160x128xf32>
    %96 = arith.truncf %95 : vector<160x128xf32> to vector<160x128xbf16>
    %97 = vector.extract_strided_slice %96 {offsets = [0, 0], sizes = [128, 128], strides = [1, 1]} : vector<160x128xbf16> to vector<128x128xbf16>
    %c0_67 = arith.constant 0 : index
    %c0_68 = arith.constant 0 : index
    %c0_69 = arith.constant 0 : index
    %98 = vector.load %arg4[%c0_67, %c0_68, %c0_69] : memref<9x128x128xbf16, #tpu.memory_space<vmem>>, vector<1x128x128xbf16>
    %99 = vector.shape_cast %98 : vector<1x128x128xbf16> to vector<128x128xbf16>
    %cst_70 = arith.constant dense<0.000000e+00> : vector<128x128xf32>
    %100 = tpu.matmul %97, %99, %cst_70 {dimension_numbers = #tpu.dot_dimension_numbers<[1], [0], [0], [1], [0, 0, 1, 1], [], []>} : vector<128x128xbf16>, vector<128x128xbf16>, vector<128x128xf32> -> vector<128x128xf32>
    %101 = arith.addf %94, %100 : vector<128x128xf32>
    %102 = vector.extract_strided_slice %96 {offsets = [16, 0], sizes = [128, 128], strides = [1, 1]} : vector<160x128xbf16> to vector<128x128xbf16>
    %c3_71 = arith.constant 3 : index
    %c0_72 = arith.constant 0 : index
    %c0_73 = arith.constant 0 : index
    %103 = vector.load %arg4[%c3_71, %c0_72, %c0_73] : memref<9x128x128xbf16, #tpu.memory_space<vmem>>, vector<1x128x128xbf16>
    %104 = vector.shape_cast %103 : vector<1x128x128xbf16> to vector<128x128xbf16>
    %cst_74 = arith.constant dense<0.000000e+00> : vector<128x128xf32>
    %105 = tpu.matmul %102, %104, %cst_74 {dimension_numbers = #tpu.dot_dimension_numbers<[1], [0], [0], [1], [0, 0, 1, 1], [], []>} : vector<128x128xbf16>, vector<128x128xbf16>, vector<128x128xf32> -> vector<128x128xf32>
    %106 = arith.addf %101, %105 : vector<128x128xf32>
    %107 = vector.extract_strided_slice %96 {offsets = [32, 0], sizes = [128, 128], strides = [1, 1]} : vector<160x128xbf16> to vector<128x128xbf16>
    %c6_75 = arith.constant 6 : index
    %c0_76 = arith.constant 0 : index
    %c0_77 = arith.constant 0 : index
    %108 = vector.load %arg4[%c6_75, %c0_76, %c0_77] : memref<9x128x128xbf16, #tpu.memory_space<vmem>>, vector<1x128x128xbf16>
    %109 = vector.shape_cast %108 : vector<1x128x128xbf16> to vector<128x128xbf16>
    %cst_78 = arith.constant dense<0.000000e+00> : vector<128x128xf32>
    %110 = tpu.matmul %107, %109, %cst_78 {dimension_numbers = #tpu.dot_dimension_numbers<[1], [0], [0], [1], [0, 0, 1, 1], [], []>} : vector<128x128xbf16>, vector<128x128xbf16>, vector<128x128xf32> -> vector<128x128xf32>
    %111 = arith.addf %106, %110 : vector<128x128xf32>
    %c8_79 = arith.constant 8 : index
    %c0_80 = arith.constant 0 : index
    %112 = vector.load %arg9[%c8_79, %c0_80] : memref<176x128xf32, #tpu.memory_space<vmem>>, vector<160x128xf32>
    %113 = arith.truncf %112 : vector<160x128xf32> to vector<160x128xbf16>
    %114 = vector.extract_strided_slice %113 {offsets = [0, 0], sizes = [128, 128], strides = [1, 1]} : vector<160x128xbf16> to vector<128x128xbf16>
    %c1_81 = arith.constant 1 : index
    %c0_82 = arith.constant 0 : index
    %c0_83 = arith.constant 0 : index
    %115 = vector.load %arg4[%c1_81, %c0_82, %c0_83] : memref<9x128x128xbf16, #tpu.memory_space<vmem>>, vector<1x128x128xbf16>
    %116 = vector.shape_cast %115 : vector<1x128x128xbf16> to vector<128x128xbf16>
    %cst_84 = arith.constant dense<0.000000e+00> : vector<128x128xf32>
    %117 = tpu.matmul %114, %116, %cst_84 {dimension_numbers = #tpu.dot_dimension_numbers<[1], [0], [0], [1], [0, 0, 1, 1], [], []>} : vector<128x128xbf16>, vector<128x128xbf16>, vector<128x128xf32> -> vector<128x128xf32>
    %118 = arith.addf %111, %117 : vector<128x128xf32>
    %119 = vector.extract_strided_slice %113 {offsets = [16, 0], sizes = [128, 128], strides = [1, 1]} : vector<160x128xbf16> to vector<128x128xbf16>
    %c4_85 = arith.constant 4 : index
    %c0_86 = arith.constant 0 : index
    %c0_87 = arith.constant 0 : index
    %120 = vector.load %arg4[%c4_85, %c0_86, %c0_87] : memref<9x128x128xbf16, #tpu.memory_space<vmem>>, vector<1x128x128xbf16>
    %121 = vector.shape_cast %120 : vector<1x128x128xbf16> to vector<128x128xbf16>
    %cst_88 = arith.constant dense<0.000000e+00> : vector<128x128xf32>
    %122 = tpu.matmul %119, %121, %cst_88 {dimension_numbers = #tpu.dot_dimension_numbers<[1], [0], [0], [1], [0, 0, 1, 1], [], []>} : vector<128x128xbf16>, vector<128x128xbf16>, vector<128x128xf32> -> vector<128x128xf32>
    %123 = arith.addf %118, %122 : vector<128x128xf32>
    %124 = vector.extract_strided_slice %113 {offsets = [32, 0], sizes = [128, 128], strides = [1, 1]} : vector<160x128xbf16> to vector<128x128xbf16>
    %c7_89 = arith.constant 7 : index
    %c0_90 = arith.constant 0 : index
    %c0_91 = arith.constant 0 : index
    %125 = vector.load %arg4[%c7_89, %c0_90, %c0_91] : memref<9x128x128xbf16, #tpu.memory_space<vmem>>, vector<1x128x128xbf16>
    %126 = vector.shape_cast %125 : vector<1x128x128xbf16> to vector<128x128xbf16>
    %cst_92 = arith.constant dense<0.000000e+00> : vector<128x128xf32>
    %127 = tpu.matmul %124, %126, %cst_92 {dimension_numbers = #tpu.dot_dimension_numbers<[1], [0], [0], [1], [0, 0, 1, 1], [], []>} : vector<128x128xbf16>, vector<128x128xbf16>, vector<128x128xf32> -> vector<128x128xf32>
    %128 = arith.addf %123, %127 : vector<128x128xf32>
    %c9 = arith.constant 9 : index
    %c0_93 = arith.constant 0 : index
    %129 = vector.load %arg9[%c9, %c0_93] : memref<176x128xf32, #tpu.memory_space<vmem>>, vector<160x128xf32>
    %130 = arith.truncf %129 : vector<160x128xf32> to vector<160x128xbf16>
    %131 = vector.extract_strided_slice %130 {offsets = [0, 0], sizes = [128, 128], strides = [1, 1]} : vector<160x128xbf16> to vector<128x128xbf16>
    %c2_94 = arith.constant 2 : index
    %c0_95 = arith.constant 0 : index
    %c0_96 = arith.constant 0 : index
    %132 = vector.load %arg4[%c2_94, %c0_95, %c0_96] : memref<9x128x128xbf16, #tpu.memory_space<vmem>>, vector<1x128x128xbf16>
    %133 = vector.shape_cast %132 : vector<1x128x128xbf16> to vector<128x128xbf16>
    %cst_97 = arith.constant dense<0.000000e+00> : vector<128x128xf32>
    %134 = tpu.matmul %131, %133, %cst_97 {dimension_numbers = #tpu.dot_dimension_numbers<[1], [0], [0], [1], [0, 0, 1, 1], [], []>} : vector<128x128xbf16>, vector<128x128xbf16>, vector<128x128xf32> -> vector<128x128xf32>
    %135 = arith.addf %128, %134 : vector<128x128xf32>
    %136 = vector.extract_strided_slice %130 {offsets = [16, 0], sizes = [128, 128], strides = [1, 1]} : vector<160x128xbf16> to vector<128x128xbf16>
    %c5_98 = arith.constant 5 : index
    %c0_99 = arith.constant 0 : index
    %c0_100 = arith.constant 0 : index
    %137 = vector.load %arg4[%c5_98, %c0_99, %c0_100] : memref<9x128x128xbf16, #tpu.memory_space<vmem>>, vector<1x128x128xbf16>
    %138 = vector.shape_cast %137 : vector<1x128x128xbf16> to vector<128x128xbf16>
    %cst_101 = arith.constant dense<0.000000e+00> : vector<128x128xf32>
    %139 = tpu.matmul %136, %138, %cst_101 {dimension_numbers = #tpu.dot_dimension_numbers<[1], [0], [0], [1], [0, 0, 1, 1], [], []>} : vector<128x128xbf16>, vector<128x128xbf16>, vector<128x128xf32> -> vector<128x128xf32>
    %140 = arith.addf %135, %139 : vector<128x128xf32>
    %141 = vector.extract_strided_slice %130 {offsets = [32, 0], sizes = [128, 128], strides = [1, 1]} : vector<160x128xbf16> to vector<128x128xbf16>
    %c8_102 = arith.constant 8 : index
    %c0_103 = arith.constant 0 : index
    %c0_104 = arith.constant 0 : index
    %142 = vector.load %arg4[%c8_102, %c0_103, %c0_104] : memref<9x128x128xbf16, #tpu.memory_space<vmem>>, vector<1x128x128xbf16>
    %143 = vector.shape_cast %142 : vector<1x128x128xbf16> to vector<128x128xbf16>
    %cst_105 = arith.constant dense<0.000000e+00> : vector<128x128xf32>
    %144 = tpu.matmul %141, %143, %cst_105 {dimension_numbers = #tpu.dot_dimension_numbers<[1], [0], [0], [1], [0, 0, 1, 1], [], []>} : vector<128x128xbf16>, vector<128x128xbf16>, vector<128x128xf32> -> vector<128x128xf32>
    %145 = arith.addf %140, %144 : vector<128x128xf32>
    %c0_106 = arith.constant 0 : index
    %c0_107 = arith.constant 0 : index
    %146 = vector.load %arg5[%c0_106, %c0_107] : memref<1x128xf32, #tpu.memory_space<vmem>>, vector<1x128xf32>
    %147 = vector.broadcast %146 : vector<1x128xf32> to vector<128x128xf32>
    %148 = arith.addf %145, %147 : vector<128x128xf32>
    %c0_108 = arith.constant 0 : index
    %c3_109 = arith.constant 3 : index
    %c0_110 = arith.constant 0 : index
    %c0_111 = arith.constant 0 : index
    %149 = vector.load %arg1[%c0_108, %c3_109, %c0_110, %c0_111] : memref<1x4x152x4xbf16, #tpu.memory_space<vmem>>, vector<1x1x128x4xbf16>
    %150 = vector.shape_cast %149 : vector<1x1x128x4xbf16> to vector<128x4xbf16>
    %c0_112 = arith.constant 0 : index
    %c0_113 = arith.constant 0 : index
    %151 = vector.load %arg6[%c0_112, %c0_113] : memref<4x128xbf16, #tpu.memory_space<vmem>>, vector<4x128xbf16>
    %cst_114 = arith.constant dense<0.000000e+00> : vector<128x128xf32>
    %152 = tpu.matmul %150, %151, %cst_114 {dimension_numbers = #tpu.dot_dimension_numbers<[1], [0], [0], [1], [0, 0, 1, 1], [], []>} : vector<128x4xbf16>, vector<4x128xbf16>, vector<128x128xf32> -> vector<128x128xf32>
    %c0_115 = arith.constant 0 : index
    %c0_116 = arith.constant 0 : index
    %153 = vector.load %arg7[%c0_115, %c0_116] : memref<1x128xf32, #tpu.memory_space<vmem>>, vector<1x128xf32>
    %154 = vector.broadcast %153 : vector<1x128xf32> to vector<128x128xf32>
    %155 = arith.addf %152, %154 : vector<128x128xf32>
    %156 = arith.addf %148, %155 : vector<128x128xf32>
    %cst_117 = arith.constant 0.000000e+00 : f32
    %157 = vector.broadcast %cst_117 : f32 to vector<128x128xf32>
    %158 = arith.maximumf %156, %157 : vector<128x128xf32>
    %c0_118 = arith.constant 0 : index
    %c0_119 = arith.constant 0 : index
    %c0_120 = arith.constant 0 : index
    %159 = vector.load %arg8[%c0_118, %c0_119, %c0_120] : memref<1x128x128xf32, #tpu.memory_space<vmem>>, vector<1x128x128xf32>
    %160 = vector.shape_cast %159 : vector<1x128x128xf32> to vector<128x128xf32>
    %161 = vector.shape_cast %158 : vector<128x128xf32> to vector<1x128x128xf32>
    tpu.vector_store %arg8[%c0_118, %c0_119, %c0_120], %161 {strides = array<i32>} : memref<1x128x128xf32, #tpu.memory_space<vmem>>, vector<1x128x128xf32>,
    return
  }
  func.func @transform_0(%arg0: i32) -> (i32, i32, i32, i32) {
    %c0_i32 = arith.constant 0 : i32
    %c0_i32_0 = arith.constant 0 : i32
    %c0_i32_1 = arith.constant 0 : i32
    %c0_i32_2 = arith.constant 0 : i32
    return %arg0, %c0_i32, %c0_i32_0, %c0_i32_1 : i32, i32, i32, i32
  }
  func.func @transform_1(%arg0: i32) -> (i32, i32, i32) {
    %c0_i32 = arith.constant 0 : i32
    %c0_i32_0 = arith.constant 0 : i32
    %c0_i32_1 = arith.constant 0 : i32
    %c0_i32_2 = arith.constant 0 : i32
    return %c0_i32, %c0_i32_0, %c0_i32_1 : i32, i32, i32
  }
  func.func @transform_2(%arg0: i32) -> (i32, i32) {
    %c0_i32 = arith.constant 0 : i32
    %c0_i32_0 = arith.constant 0 : i32
    %c0_i32_1 = arith.constant 0 : i32
    return %c0_i32, %c0_i32_0 : i32, i32
  }
  func.func @transform_3(%arg0: i32) -> (i32, i32, i32) {
    %c0_i32 = arith.constant 0 : i32
    %c0_i32_0 = arith.constant 0 : i32
    %c0_i32_1 = arith.constant 0 : i32
    %c0_i32_2 = arith.constant 0 : i32
    return %c0_i32, %c0_i32_0, %c0_i32_1 : i32, i32, i32
  }
  func.func @transform_4(%arg0: i32) -> (i32, i32) {
    %c0_i32 = arith.constant 0 : i32
    %c0_i32_0 = arith.constant 0 : i32
    %c0_i32_1 = arith.constant 0 : i32
    return %c0_i32, %c0_i32_0 : i32, i32
  }
  func.func @transform_5(%arg0: i32) -> (i32, i32) {
    %c0_i32 = arith.constant 0 : i32
    %c0_i32_0 = arith.constant 0 : i32
    %c0_i32_1 = arith.constant 0 : i32
    return %c0_i32, %c0_i32_0 : i32, i32
  }
  func.func @transform_6(%arg0: i32) -> (i32, i32) {
    %c0_i32 = arith.constant 0 : i32
    %c0_i32_0 = arith.constant 0 : i32
    %c0_i32_1 = arith.constant 0 : i32
    return %c0_i32, %c0_i32_0 : i32, i32
  }
  func.func @transform_7(%arg0: i32) -> (i32, i32, i32) {
    %c0_i32 = arith.constant 0 : i32
    %c0_i32_0 = arith.constant 0 : i32
    %c0_i32_1 = arith.constant 0 : i32
    return %arg0, %c0_i32, %c0_i32_0 : i32, i32, i32
  }
}

</mosaic_0001>

<llo_original>
// kernel: residual_block_forward.1
$region0: #{residual_block_forward.1}
  #allocation0 [shape = 'u32[]', space=smem, size = 0x4, offset = 0x4, fixed_abs, tag = 'smem constant byte address 0x4 - core index']
  #allocation1 [shape = 'u32[72,128]{1,0:T(1,128)}', space=vmem, size = 0x9000, scoped, tag = 'internal scratch']
  #allocation2 [shape = 'f32[176,128]{1,0:T(8,128)}', space=vmem, size = 0x16000, scoped, tag = 'scratch operand']
  %s0 = inlined_call_operand.vmem [shape: bf16[2,4,152,4], index: 0, kind: input, shape index: {}]
  %s1 = inlined_call_operand.vmem [shape: bf16[9,4,128], index: 1, kind: input, shape index: {}]
  %s2 = inlined_call_operand.vmem [shape: f32[1,128], index: 2, kind: input, shape index: {}]
  %s3 = inlined_call_operand.vmem [shape: bf16[9,128,128], index: 3, kind: input, shape index: {}]
  %s4 = inlined_call_operand.vmem [shape: f32[1,128], index: 4, kind: input, shape index: {}]
  %s5 = inlined_call_operand.vmem [shape: bf16[4,128], index: 5, kind: input, shape index: {}]
  %s6 = inlined_call_operand.vmem [shape: f32[1,128], index: 6, kind: input, shape index: {}]
  %s7 = inlined_call_operand.vmem [shape: f32[2,128,128], index: 7, kind: output, shape index: {}]
  %s8 = sld [smem:[#allocation0]]
  $region61: #{residual_block_forward.1} parent=0
    _
  %s10 = ssub.s32 1, %s8
  %s11 = scalar_select 0, %s10, %s8
  loop: start=0, step=1, limit=4
  $region2: #{residual_block_forward.1} parent=0 // loop_pre_header
    _
  $region3: #{residual_block_forward.1} parent=0 // loop_header
    %s13 = sphi 0, %s17
    %p14 = scmp.ge.s32.totalorder %s13, 4
    %s23 = sphi 0, %s25
    %s26 = sphi 0, %s23
    %s27 = sphi 0, %s26
    %s43 = sphi 0, %s27
    %s47 = sphi 0, %s47
    %s49 = sphi 0, %s47
    %s50 = sphi 0, %s49
    %s64 = sphi 0, %s50
    %s68 = sphi 0, %s68
    %s70 = sphi 0, %s68
    %s71 = sphi 0, %s70
    %s85 = sphi 0, %s71
    %s89 = sphi 0, %s89
    %s91 = sphi 0, %s89
    %s92 = sphi 0, %s91
    %s106 = sphi 0, %s92
    %s110 = sphi 0, %s110
    %s112 = sphi 0, %s110
    %s113 = sphi 0, %s112
    %s127 = sphi 0, %s113
    %s131 = sphi 0, %s131
    %s133 = sphi 0, %s131
    %s134 = sphi 0, %s133
    %s148 = sphi 0, %s134
    %s152 = sphi 0, %s152
    %s154 = sphi 0, %s152
    %s155 = sphi 0, %s154
    %s169 = sphi 0, %s155
    %s175 = sphi 0, %s177
    %s178 = sphi 0, %s175
    %s179 = sphi 0, %s178
    %s195 = sphi 0, %s179
  $region4: #{residual_block_forward.1} parent=0 // loop_header_branch
    %16 = sbr.rel (%p14) target = $region8
  $region5: #{residual_block_forward.1} parent=0 // loop_body
    %s18 = ssub.s32 %s13, 1
    %s19 = ssub.s32 %s13, 2
    %s20 = sadd.s32 %s13, 1
    %s21 = ssub.s32 %s13, %s20
    %p22 = scmp.eq.s32.totalorder %s21, 0
    %s24 = sadd.s32 %s23, 1
    %s25 = scalar_select %p22, %s23, %s24
    %p28 = pneg %p22
    %p29 = scmp.eq.s32.totalorder %s13, 1
    %p30 = por %p28, %p29
    %p31 = scmp.ne.s32.totalorder %s23, %s26
    %p32 = scmp.eq.s32.totalorder %s13, 0
    %p33 = por %p31, %p32
    %p34 = scmp.ne.s32.totalorder %s23, %s26
    %p35 = scmp.eq.s32.totalorder %s18, 1
    %p36 = por %p34, %p35
    %p37 = scmp.ne.s32.totalorder %s26, %s27
    %p38 = scmp.eq.s32.totalorder %s18, 0
    %p39 = por %p37, %p38
    %p40 = scmp.ne.s32.totalorder %s26, %s27
    %p41 = scmp.eq.s32.totalorder %s19, 1
    %p42 = por %p40, %p41
    %p44 = scmp.ne.s32.totalorder %s27, %s43
    %p45 = scmp.eq.s32.totalorder %s19, 0
    %p46 = por %p44, %p45
    %s48 = sadd.s32 %s47, 1
    %p51 = scmp.eq.s32.totalorder %s13, 1
    %p52 = scmp.ne.s32.totalorder %s47, %s49
    %p53 = scmp.eq.s32.totalorder %s13, 0
    %p54 = por %p52, %p53
    %p55 = scmp.ne.s32.totalorder %s47, %s49
    %p56 = scmp.eq.s32.totalorder %s18, 1
    %p57 = por %p55, %p56
    %p58 = scmp.ne.s32.totalorder %s49, %s50
    %p59 = scmp.eq.s32.totalorder %s18, 0
    %p60 = por %p58, %p59
    %p61 = scmp.ne.s32.totalorder %s49, %s50
    %p62 = scmp.eq.s32.totalorder %s19, 1
    %p63 = por %p61, %p62
    %p65 = scmp.ne.s32.totalorder %s50, %s64
    %p66 = scmp.eq.s32.totalorder %s19, 0
    %p67 = por %p65, %p66
    %s69 = sadd.s32 %s68, 1
    %p72 = scmp.eq.s32.totalorder %s13, 1
    %p73 = scmp.ne.s32.totalorder %s68, %s70
    %p74 = scmp.eq.s32.totalorder %s13, 0
    %p75 = por %p73, %p74
    %p76 = scmp.ne.s32.totalorder %s68, %s70
    %p77 = scmp.eq.s32.totalorder %s18, 1
    %p78 = por %p76, %p77
    %p79 = scmp.ne.s32.totalorder %s70, %s71
    %p80 = scmp.eq.s32.totalorder %s18, 0
    %p81 = por %p79, %p80
    %p82 = scmp.ne.s32.totalorder %s70, %s71
    %p83 = scmp.eq.s32.totalorder %s19, 1
    %p84 = por %p82, %p83
    %p86 = scmp.ne.s32.totalorder %s71, %s85
    %p87 = scmp.eq.s32.totalorder %s19, 0
    %p88 = por %p86, %p87
    %s90 = sadd.s32 %s89, 1
    %p93 = scmp.eq.s32.totalorder %s13, 1
    %p94 = scmp.ne.s32.totalorder %s89, %s91
    %p95 = scmp.eq.s32.totalorder %s13, 0
    %p96 = por %p94, %p95
    %p97 = scmp.ne.s32.totalorder %s89, %s91
    %p98 = scmp.eq.s32.totalorder %s18, 1
    %p99 = por %p97, %p98
    %p100 = scmp.ne.s32.totalorder %s91, %s92
    %p101 = scmp.eq.s32.totalorder %s18, 0
    %p102 = por %p100, %p101
    %p103 = scmp.ne.s32.totalorder %s91, %s92
    %p104 = scmp.eq.s32.totalorder %s19, 1
    %p105 = por %p103, %p104
    %p107 = scmp.ne.s32.totalorder %s92, %s106
    %p108 = scmp.eq.s32.totalorder %s19, 0
    %p109 = por %p107, %p108
    %s111 = sadd.s32 %s110, 1
    %p114 = scmp.eq.s32.totalorder %s13, 1
    %p115 = scmp.ne.s32.totalorder %s110, %s112
    %p116 = scmp.eq.s32.totalorder %s13, 0
    %p117 = por %p115, %p116
    %p118 = scmp.ne.s32.totalorder %s110, %s112
    %p119 = scmp.eq.s32.totalorder %s18, 1
    %p120 = por %p118, %p119
    %p121 = scmp.ne.s32.totalorder %s112, %s113
    %p122 = scmp.eq.s32.totalorder %s18, 0
    %p123 = por %p121, %p122
    %p124 = scmp.ne.s32.totalorder %s112, %s113
    %p125 = scmp.eq.s32.totalorder %s19, 1
    %p126 = por %p124, %p125
    %p128 = scmp.ne.s32.totalorder %s113, %s127
    %p129 = scmp.eq.s32.totalorder %s19, 0
    %p130 = por %p128, %p129
    %s132 = sadd.s32 %s131, 1
    %p135 = scmp.eq.s32.totalorder %s13, 1
    %p136 = scmp.ne.s32.totalorder %s131, %s133
    %p137 = scmp.eq.s32.totalorder %s13, 0
    %p138 = por %p136, %p137
    %p139 = scmp.ne.s32.totalorder %s131, %s133
    %p140 = scmp.eq.s32.totalorder %s18, 1
    %p141 = por %p139, %p140
    %p142 = scmp.ne.s32.totalorder %s133, %s134
    %p143 = scmp.eq.s32.totalorder %s18, 0
    %p144 = por %p142, %p143
    %p145 = scmp.ne.s32.totalorder %s133, %s134
    %p146 = scmp.eq.s32.totalorder %s19, 1
    %p147 = por %p145, %p146
    %p149 = scmp.ne.s32.totalorder %s134, %s148
    %p150 = scmp.eq.s32.totalorder %s19, 0
    %p151 = por %p149, %p150
    %s153 = sadd.s32 %s152, 1
    %p156 = scmp.eq.s32.totalorder %s13, 1
    %p157 = scmp.ne.s32.totalorder %s152, %s154
    %p158 = scmp.eq.s32.totalorder %s13, 0
    %p159 = por %p157, %p158
    %p160 = scmp.ne.s32.totalorder %s152, %s154
    %p161 = scmp.eq.s32.totalorder %s18, 1
    %p162 = por %p160, %p161
    %p163 = scmp.ne.s32.totalorder %s154, %s155
    %p164 = scmp.eq.s32.totalorder %s18, 0
    %p165 = por %p163, %p164
    %p166 = scmp.ne.s32.totalorder %s154, %s155
    %p167 = scmp.eq.s32.totalorder %s19, 1
    %p168 = por %p166, %p167
    %p170 = scmp.ne.s32.totalorder %s155, %s169
    %p171 = scmp.eq.s32.totalorder %s19, 0
    %p172 = por %p170, %p171
    %s173 = ssub.s32 %s13, %s20
    %p174 = scmp.eq.s32.totalorder %s173, 0
    %s176 = sadd.s32 %s175, 1
    %s177 = scalar_select %p174, %s175, %s176
    %p180 = pneg %p174
    %p181 = scmp.eq.s32.totalorder %s13, 1
    %p182 = por %p180, %p181
    %p183 = scmp.ne.s32.totalorder %s175, %s178
    %p184 = scmp.eq.s32.totalorder %s13, 0
    %p185 = por %p183, %p184
    %p186 = scmp.ne.s32.totalorder %s175, %s178
    %p187 = scmp.eq.s32.totalorder %s18, 1
    %p188 = por %p186, %p187
    %p189 = scmp.ne.s32.totalorder %s178, %s179
    %p190 = scmp.eq.s32.totalorder %s18, 0
    %p191 = por %p189, %p190
    %p192 = scmp.ne.s32.totalorder %s178, %s179
    %p193 = scmp.eq.s32.totalorder %s19, 1
    %p194 = por %p192, %p193
    %p196 = scmp.ne.s32.totalorder %s179, %s195
    %p197 = scmp.eq.s32.totalorder %s19, 0
    %p198 = por %p196, %p197
    %p199 = scmp.le.s32.totalorder 1, %s13
    %p200 = scmp.lt.s32.totalorder %s13, 3
    %p201 = pnand %p199, %p200
    %p202 = pneg %p201
    // Predicated region
    $region9: #{residual_block_forward.1} parent=5 // pred_check
      _
    $region10: #{residual_block_forward.1} parent=5 // pred_check_branch
      %204 = sbr.rel (%p201) target = $region12
    $region11: #{residual_block_forward.1} parent=5 // pred_region
      %s205 = ssub.s32 %s13, 1
      // Predicated region
      $region13: #{residual_block_forward.1} parent=11 // pred_check
        %p206 = pneg %p60
      $region14: #{residual_block_forward.1} parent=11 // pred_check_branch
        %208 = sbr.rel (%p206) target = $region16
      $region15: #{residual_block_forward.1} parent=11 // pred_region
        _
      $region16: #{residual_block_forward.1} parent=11 // pred_fallthru
        _
      // Predicated region
      $region17: #{residual_block_forward.1} parent=11 // pred_check
        %p209 = pneg %p81
      $region18: #{residual_block_forward.1} parent=11 // pred_check_branch
        %211 = sbr.rel (%p209) target = $region20
      $region19: #{residual_block_forward.1} parent=11 // pred_region
        _
      $region20: #{residual_block_forward.1} parent=11 // pred_fallthru
        _
      // Predicated region
      $region21: #{residual_block_forward.1} parent=11 // pred_check
        %p212 = pneg %p102
      $region22: #{residual_block_forward.1} parent=11 // pred_check_branch
        %214 = sbr.rel (%p212) target = $region24
      $region23: #{residual_block_forward.1} parent=11 // pred_region
        _
      $region24: #{residual_block_forward.1} parent=11 // pred_fallthru
        _
      // Predicated region
      $region25: #{residual_block_forward.1} parent=11 // pred_check
        %p215 = pneg %p123
      $region26: #{residual_block_forward.1} parent=11 // pred_check_branch
        %217 = sbr.rel (%p215) target = $region28
      $region27: #{residual_block_forward.1} parent=11 // pred_region
        _
      $region28: #{residual_block_forward.1} parent=11 // pred_fallthru
        _
      // Predicated region
      $region29: #{residual_block_forward.1} parent=11 // pred_check
        %p218 = pneg %p144
      $region30: #{residual_block_forward.1} parent=11 // pred_check_branch
        %220 = sbr.rel (%p218) target = $region32
      $region31: #{residual_block_forward.1} parent=11 // pred_region
        _
      $region32: #{residual_block_forward.1} parent=11 // pred_fallthru
        _
      // Predicated region
      $region33: #{residual_block_forward.1} parent=11 // pred_check
        %p221 = pneg %p165
      $region34: #{residual_block_forward.1} parent=11 // pred_check_branch
        %223 = sbr.rel (%p221) target = $region36
      $region35: #{residual_block_forward.1} parent=11 // pred_region
        _
      $region36: #{residual_block_forward.1} parent=11 // pred_fallthru
        _
    $region12: #{residual_block_forward.1} parent=5 // pred_fallthru
      _
    %p224 = scmp.lt.s32.totalorder %s13, 2
    // Predicated region
    $region37: #{residual_block_forward.1} parent=5 // pred_check
      %p225 = pneg %p224
    $region38: #{residual_block_forward.1} parent=5 // pred_check_branch
      %227 = sbr.rel (%p225) target = $region40
    $region39: #{residual_block_forward.1} parent=5 // pred_region
      // Predicated region
      $region41: #{residual_block_forward.1} parent=39 // pred_check
        %p228 = pneg %p33
      $region42: #{residual_block_forward.1} parent=39 // pred_check_branch
        %230 = sbr.rel (%p228) target = $region44
      $region43: #{residual_block_forward.1} parent=39 // pred_region
        %p231 = scmp.lt.s32.totalorder %s13, 1
        %s232 = scalar_select %p231, %s13, 1
        %s233 = smul.addr %s232, 76
        %s234 = smul.addr %s233, 4
        %s235 = scalar_lea.vmem %s0, %s234
      $region44: #{residual_block_forward.1} parent=39 // pred_fallthru
        _
    $region40: #{residual_block_forward.1} parent=5 // pred_fallthru
      _
    %p236 = scmp.le.s32.totalorder 1, %s13
    %p237 = scmp.lt.s32.totalorder %s13, 3
    %p238 = pnand %p236, %p237
    %p239 = pneg %p238
    // Predicated region
    $region45: #{residual_block_forward.1} parent=5 // pred_check
      _
    $region46: #{residual_block_forward.1} parent=5 // pred_check_branch
      %241 = sbr.rel (%p238) target = $region48
    $region47: #{residual_block_forward.1} parent=5 // pred_region
      %s242 = ssub.s32 %s13, 1
      %p243 = scmp.lt.s32.totalorder %s18, 1
      %s244 = scalar_select %p243, %s18, 1
      %s245 = smul.addr %s244, 76
      %s246 = smul.addr %s245, 4
      %s247 = scalar_lea.vmem %s0, %s246
      %p248 = pneg %p39
      %p249 = pneg %p36
      %p250 = pneg %p60
      %p251 = pneg %p57
      %p252 = pneg %p81
      %p253 = pneg %p78
      %p254 = pneg %p102
      %p255 = pneg %p99
      %p256 = pneg %p123
      %p257 = pneg %p120
      %p258 = pneg %p144
      %p259 = pneg %p141
      %p260 = pneg %p165
      %p261 = pneg %p162
      %p262 = pneg %p191
      %p263 = pneg %p188
      %p264 = scmp.lt.s32.totalorder %s18, 1
      %s265 = scalar_select %p264, %s18, 1
      %s266 = smul.addr %s265, 16
      %s267 = smul.addr %s266, 8
      %s268 = scalar_lea.vmem %s7, %s267
      %p269 = scmp.lt.s32.totalorder %s18, 1
      %s270 = scalar_select %p269, %s18, 1
      %s271 = smul.addr %s270, 76
      %s272 = smul.addr %s271, 4
      %s273 = scalar_lea.vmem %s0, %s272
      %p274 = scmp.lt.s32.totalorder %s18, 1
      %s275 = scalar_select %p274, %s18, 1
      %s276 = smul.addr %s275, 16
      %s277 = smul.addr %s276, 8
      %s278 = scalar_lea.vmem %s7, %s277
      %280 = vst [vmem:[#allocation2] sm:$0xff] 0.0
      %281 = vst [vmem:[#allocation2 + $0x8] sm:$0xff] 0.0
      %282 = vst [vmem:[#allocation2 + $0x10] sm:$0xff] 0.0
      %283 = vst [vmem:[#allocation2 + $0x98] sm:$0xff] 0.0
      %284 = vst [vmem:[#allocation2 + $0xa0] sm:$0xff] 0.0
      %285 = vst [vmem:[#allocation2 + $0xa8] sm:$0xff] 0.0
      %v286 = vld [vmem:[%s273] sm:$0xf]
      %v287 = vld [vmem:[%s273 + $0x4] sm:$0xf]
      %v288 = vld [vmem:[%s273 + $0x8] sm:$0xf]
      %v289 = vld [vmem:[%s273 + $0xc] sm:$0xf]
      %v290 = vld [vmem:[%s273 + $0x10] sm:$0xf]
      %v291 = vld [vmem:[%s273 + $0x14] sm:$0xf]
      %v292 = vld [vmem:[%s273 + $0x18] sm:$0xf]
      %v293 = vld [vmem:[%s273 + $0x1c] sm:$0xf]
      %v294 = vld [vmem:[%s273 + $0x20] sm:$0xf]
      %v295 = vld [vmem:[%s273 + $0x24] sm:$0xf]
      %v296 = vld [vmem:[%s273 + $0x28] sm:$0xf]
      %v297 = vld [vmem:[%s273 + $0x2c] sm:$0xf]
      %v298 = vld [vmem:[%s273 + $0x30] sm:$0xf]
      %v299 = vld [vmem:[%s273 + $0x34] sm:$0xf]
      %v300 = vld [vmem:[%s273 + $0x38] sm:$0xf]
      %v301 = vld [vmem:[%s273 + $0x3c] sm:$0xf]
      %v302 = vld [vmem:[%s273 + $0x40] sm:$0xf]
      %v303 = vld [vmem:[%s273 + $0x44] sm:$0xf]
      %v304 = vld [vmem:[%s1] sm:$0x3]
      %s305 = scalar_lea.vmem %s1, 12
      %v306 = vld [vmem:[%s305] sm:$0x3]
      %v323 = vunpack.c.l.b16 %v288
      %v324 = vunpack.c.l.b16 %v289
      %v325 = vunpack.c.l.b16 %v290
      %v326 = vunpack.c.l.b16 %v291
      %v327 = vunpack.c.l.b16 %v292
      %v328 = vunpack.c.l.b16 %v293
      %v329 = vunpack.c.l.b16 %v294
      %v330 = vunpack.c.l.b16 %v295
      %v331 = vunpack.c.l.b16 %v296
      %v332 = vunpack.c.l.b16 %v297
      %v333 = vunpack.c.l.b16 %v298
      %v334 = vunpack.c.l.b16 %v299
      %v335 = vunpack.c.l.b16 %v300
      %v336 = vunpack.c.l.b16 %v301
      %v337 = vunpack.c.l.b16 %v302
      %v338 = vunpack.c.l.b16 %v303
      %v339 = vpack.c.b16 %v324, %v323
      %v340 = vpack.c.b16 %v326, %v325
      %v341 = vpack.c.b16 %v328, %v327
      %v342 = vpack.c.b16 %v330, %v329
      %v343 = vpack.c.b16 %v332, %v331
      %v344 = vpack.c.b16 %v334, %v333
      %v345 = vpack.c.b16 %v336, %v335
      %v346 = vpack.c.b16 %v338, %v337
      %vm347 = vcmask 31744
      %v349 = vsel %vm347, %v339, 0
      %v352 = vsel %vm347, %v340, 0
      %v355 = vsel %vm347, %v341, 0
      %v358 = vsel %vm347, %v342, 0
      %v361 = vsel %vm347, %v343, 0
      %v364 = vsel %vm347, %v344, 0
      %v367 = vsel %vm347, %v345, 0
      %v370 = vsel %vm347, %v346, 0
      %vm372 = vcmask 1041408
      %v374 = vsel %vm372, %v306, 0
      %376 = vmatpush.bf16.msra.mxu0 0
      %377 = vmatpush.bf16.msra.mxu0 0
      %378 = vmatpush.bf16.msra.mxu0 0
      %379 = vmatpush.bf16.msra.mxu0 0
      %380 = vmatpush.bf16.msra.mxu0 0
      %381 = vmatpush.bf16.msra.mxu0 0
      %382 = vmatpush.bf16.msra.mxu0 0
      %383 = vmatpush.bf16.msra.mxu0 %v374
      %384 = vmatmul.bf16.gmra.mxu0 %v349
      %v385 = vpop.f32.mrf.mxu0
      %v386 = vadd.f32 0.0, %v385
      %v387 = vpop.f32.mrf.mxu0
      %v388 = vadd.f32 0.0, %v387
      %389 = vmatmul.bf16.gmra.mxu0 %v352
      %v390 = vpop.f32.mrf.mxu0
      %v391 = vadd.f32 0.0, %v390
      %v392 = vpop.f32.mrf.mxu0
      %v393 = vadd.f32 0.0, %v392
      %394 = vmatmul.bf16.gmra.mxu0 %v355
      %v395 = vpop.f32.mrf.mxu0
      %v396 = vadd.f32 0.0, %v395
      %v397 = vpop.f32.mrf.mxu0
      %v398 = vadd.f32 0.0, %v397
      %399 = vmatmul.bf16.gmra.mxu0 %v358
      %v400 = vpop.f32.mrf.mxu0
      %v401 = vadd.f32 0.0, %v400
      %v402 = vpop.f32.mrf.mxu0
      %v403 = vadd.f32 0.0, %v402
      %404 = vmatmul.bf16.gmra.mxu0 %v361
      %v405 = vpop.f32.mrf.mxu0
      %v406 = vadd.f32 0.0, %v405
      %v407 = vpop.f32.mrf.mxu0
      %v408 = vadd.f32 0.0, %v407
      %409 = vmatmul.bf16.gmra.mxu0 %v364
      %v410 = vpop.f32.mrf.mxu0
      %v411 = vadd.f32 0.0, %v410
      %v412 = vpop.f32.mrf.mxu0
      %v413 = vadd.f32 0.0, %v412
      %414 = vmatmul.bf16.gmra.mxu0 %v367
      %v415 = vpop.f32.mrf.mxu0
      %v416 = vadd.f32 0.0, %v415
      %v417 = vpop.f32.mrf.mxu0
      %v418 = vadd.f32 0.0, %v417
      %419 = vmatmul.bf16.gmra.mxu0 %v370
      %v420 = vpop.f32.mrf.mxu0
      %v421 = vadd.f32 0.0, %v420
      %v422 = vpop.f32.mrf.mxu0
      %v423 = vadd.f32 0.0, %v422
      %424 = vdwg.mxu0
      %v427 = vunpack.c.l.b16 %v286
      %v428 = vunpack.c.l.b16 %v287
      %v429 = vpack.c.b16 %v428, %v427
      %v431 = vsel %vm347, %v429, 0
      %v434 = vsel %vm372, %v304, 0
      %436 = vmatpush.bf16.msra.mxu0 0
      %437 = vmatpush.bf16.msra.mxu0 0
      %438 = vmatpush.bf16.msra.mxu0 0
      %439 = vmatpush.bf16.msra.mxu0 0
      %440 = vmatpush.bf16.msra.mxu0 0
      %441 = vmatpush.bf16.msra.mxu0 0
      %442 = vmatpush.bf16.msra.mxu0 0
      %443 = vmatpush.bf16.msra.mxu0 %v434
      %444 = vmatmul.bf16.gmra.mxu0 %v431
      %v445 = vpop.f32.mrf.mxu0
      %v446 = vadd.f32 %v386, %v445
      %v447 = vpop.f32.mrf.mxu0
      %v448 = vadd.f32 %v388, %v447
      %449 = vmatmul.bf16.gmra.mxu0 %v349
      %v450 = vpop.f32.mrf.mxu0
      %v451 = vadd.f32 %v391, %v450
      %v452 = vpop.f32.mrf.mxu0
      %v453 = vadd.f32 %v393, %v452
      %454 = vmatmul.bf16.gmra.mxu0 %v352
      %v455 = vpop.f32.mrf.mxu0
      %v456 = vadd.f32 %v396, %v455
      %v457 = vpop.f32.mrf.mxu0
      %v458 = vadd.f32 %v398, %v457
      %459 = vmatmul.bf16.gmra.mxu0 %v355
      %v460 = vpop.f32.mrf.mxu0
      %v461 = vadd.f32 %v401, %v460
      %v462 = vpop.f32.mrf.mxu0
      %v463 = vadd.f32 %v403, %v462
      %464 = vmatmul.bf16.gmra.mxu0 %v358
      %v465 = vpop.f32.mrf.mxu0
      %v466 = vadd.f32 %v406, %v465
      %v467 = vpop.f32.mrf.mxu0
      %v468 = vadd.f32 %v408, %v467
      %469 = vmatmul.bf16.gmra.mxu0 %v361
      %v470 = vpop.f32.mrf.mxu0
      %v471 = vadd.f32 %v411, %v470
      %v472 = vpop.f32.mrf.mxu0
      %v473 = vadd.f32 %v413, %v472
      %474 = vmatmul.bf16.gmra.mxu0 %v364
      %v475 = vpop.f32.mrf.mxu0
      %v476 = vadd.f32 %v416, %v475
      %v477 = vpop.f32.mrf.mxu0
      %v478 = vadd.f32 %v418, %v477
      %479 = vmatmul.bf16.gmra.mxu0 %v367
      %v480 = vpop.f32.mrf.mxu0
      %v481 = vadd.f32 %v421, %v480
      %v482 = vpop.f32.mrf.mxu0
      %v483 = vadd.f32 %v423, %v482
      %484 = vdwg.mxu0
      %s485 = scalar_lea.vmem %s273, 76
      %v486 = vld [vmem:[%s485] sm:$0xf]
      %v487 = vld [vmem:[%s485 + $0x4] sm:$0xf]
      %v488 = vld [vmem:[%s485 + $0x8] sm:$0xf]
      %v489 = vld [vmem:[%s485 + $0xc] sm:$0xf]
      %v490 = vld [vmem:[%s485 + $0x10] sm:$0xf]
      %v491 = vld [vmem:[%s485 + $0x14] sm:$0xf]
      %v492 = vld [vmem:[%s485 + $0x18] sm:$0xf]
      %v493 = vld [vmem:[%s485 + $0x1c] sm:$0xf]
      %v494 = vld [vmem:[%s485 + $0x20] sm:$0xf]
      %v495 = vld [vmem:[%s485 + $0x24] sm:$0xf]
      %v496 = vld [vmem:[%s485 + $0x28] sm:$0xf]
      %v497 = vld [vmem:[%s485 + $0x2c] sm:$0xf]
      %v498 = vld [vmem:[%s485 + $0x30] sm:$0xf]
      %v499 = vld [vmem:[%s485 + $0x34] sm:$0xf]
      %v500 = vld [vmem:[%s485 + $0x38] sm:$0xf]
      %v501 = vld [vmem:[%s485 + $0x3c] sm:$0xf]
      %v502 = vld [vmem:[%s485 + $0x40] sm:$0xf]
      %v503 = vld [vmem:[%s485 + $0x44] sm:$0xf]
      %s504 = scalar_lea.vmem %s1, 2
      %v505 = vld [vmem:[%s504] sm:$0x3]
      %v522 = vunpack.c.l.b16 %v486
      %v523 = vunpack.c.l.b16 %v487
      %v524 = vunpack.c.l.b16 %v488
      %v525 = vunpack.c.l.b16 %v489
      %v526 = vunpack.c.l.b16 %v490
      %v527 = vunpack.c.l.b16 %v491
      %v528 = vunpack.c.l.b16 %v492
      %v529 = vunpack.c.l.b16 %v493
      %v530 = vunpack.c.l.b16 %v494
      %v531 = vunpack.c.l.b16 %v495
      %v532 = vunpack.c.l.b16 %v496
      %v533 = vunpack.c.l.b16 %v497
      %v534 = vunpack.c.l.b16 %v498
      %v535 = vunpack.c.l.b16 %v499
      %v536 = vunpack.c.l.b16 %v500
      %v537 = vunpack.c.l.b16 %v501
      %v538 = vpack.c.b16 %v523, %v522
      %v539 = vpack.c.b16 %v525, %v524
      %v540 = vpack.c.b16 %v527, %v526
      %v541 = vpack.c.b16 %v529, %v528
      %v542 = vpack.c.b16 %v531, %v530
      %v543 = vpack.c.b16 %v533, %v532
      %v544 = vpack.c.b16 %v535, %v534
      %v545 = vpack.c.b16 %v537, %v536
      %v547 = vsel %vm347, %v538, 0
      %v550 = vsel %vm347, %v539, 0
      %v553 = vsel %vm347, %v540, 0
      %v556 = vsel %vm347, %v541, 0
      %v559 = vsel %vm347, %v542, 0
      %v562 = vsel %vm347, %v543, 0
      %v565 = vsel %vm347, %v544, 0
      %v568 = vsel %vm347, %v545, 0
      %v571 = vsel %vm372, %v505, 0
      %573 = vmatpush.bf16.msra.mxu0 0
      %574 = vmatpush.bf16.msra.mxu0 0
      %575 = vmatpush.bf16.msra.mxu0 0
      %576 = vmatpush.bf16.msra.mxu0 0
      %577 = vmatpush.bf16.msra.mxu0 0
      %578 = vmatpush.bf16.msra.mxu0 0
      %579 = vmatpush.bf16.msra.mxu0 0
      %580 = vmatpush.bf16.msra.mxu0 %v571
      %581 = vmatmul.bf16.gmra.mxu0 %v547
      %v582 = vpop.f32.mrf.mxu0
      %v583 = vadd.f32 0.0, %v582
      %v584 = vpop.f32.mrf.mxu0
      %v585 = vadd.f32 0.0, %v584
      %586 = vmatmul.bf16.gmra.mxu0 %v550
      %v587 = vpop.f32.mrf.mxu0
      %v588 = vadd.f32 0.0, %v587
      %v589 = vpop.f32.mrf.mxu0
      %v590 = vadd.f32 0.0, %v589
      %591 = vmatmul.bf16.gmra.mxu0 %v553
      %v592 = vpop.f32.mrf.mxu0
      %v593 = vadd.f32 0.0, %v592
      %v594 = vpop.f32.mrf.mxu0
      %v595 = vadd.f32 0.0, %v594
      %596 = vmatmul.bf16.gmra.mxu0 %v556
      %v597 = vpop.f32.mrf.mxu0
      %v598 = vadd.f32 0.0, %v597
      %v599 = vpop.f32.mrf.mxu0
      %v600 = vadd.f32 0.0, %v599
      %601 = vmatmul.bf16.gmra.mxu0 %v559
      %v602 = vpop.f32.mrf.mxu0
      %v603 = vadd.f32 0.0, %v602
      %v604 = vpop.f32.mrf.mxu0
      %v605 = vadd.f32 0.0, %v604
      %606 = vmatmul.bf16.gmra.mxu0 %v562
      %v607 = vpop.f32.mrf.mxu0
      %v608 = vadd.f32 0.0, %v607
      %v609 = vpop.f32.mrf.mxu0
      %v610 = vadd.f32 0.0, %v609
      %611 = vmatmul.bf16.gmra.mxu0 %v565
      %v612 = vpop.f32.mrf.mxu0
      %v613 = vadd.f32 0.0, %v612
      %v614 = vpop.f32.mrf.mxu0
      %v615 = vadd.f32 0.0, %v614
      %616 = vmatmul.bf16.gmra.mxu0 %v568
      %v617 = vpop.f32.mrf.mxu0
      %v618 = vadd.f32 0.0, %v617
      %v619 = vpop.f32.mrf.mxu0
      %v620 = vadd.f32 0.0, %v619
      %621 = vdwg.mxu0
      %v622 = vadd.f32 %v446, %v583
      %v623 = vadd.f32 %v448, %v585
      %v624 = vadd.f32 %v451, %v588
      %v625 = vadd.f32 %v453, %v590
      %v626 = vadd.f32 %v456, %v593
      %v627 = vadd.f32 %v458, %v595
      %v628 = vadd.f32 %v461, %v598
      %v629 = vadd.f32 %v463, %v600
      %v630 = vadd.f32 %v466, %v603
      %v631 = vadd.f32 %v468, %v605
      %v632 = vadd.f32 %v471, %v608
      %v633 = vadd.f32 %v473, %v610
      %v634 = vadd.f32 %v476, %v613
      %v635 = vadd.f32 %v478, %v615
      %v636 = vadd.f32 %v481, %v618
      %v637 = vadd.f32 %v483, %v620
      %s638 = scalar_lea.vmem %s1, 14
      %v639 = vld [vmem:[%s638] sm:$0x3]
      %v642 = vunpack.c.l.b16 %v502
      %v643 = vunpack.c.l.b16 %v503
      %v644 = vpack.c.b16 %v643, %v642
      %v646 = vsel %vm347, %v644, 0
      %v649 = vsel %vm372, %v639, 0
      %651 = vmatpush.bf16.msra.mxu0 0
      %652 = vmatpush.bf16.msra.mxu0 0
      %653 = vmatpush.bf16.msra.mxu0 0
      %654 = vmatpush.bf16.msra.mxu0 0
      %655 = vmatpush.bf16.msra.mxu0 0
      %656 = vmatpush.bf16.msra.mxu0 0
      %657 = vmatpush.bf16.msra.mxu0 0
      %658 = vmatpush.bf16.msra.mxu0 %v649
      %659 = vmatmul.bf16.gmra.mxu0 %v550
      %v660 = vpop.f32.mrf.mxu0
      %v661 = vadd.f32 0.0, %v660
      %v662 = vpop.f32.mrf.mxu0
      %v663 = vadd.f32 0.0, %v662
      %664 = vmatmul.bf16.gmra.mxu0 %v553
      %v665 = vpop.f32.mrf.mxu0
      %v666 = vadd.f32 0.0, %v665
      %v667 = vpop.f32.mrf.mxu0
      %v668 = vadd.f32 0.0, %v667
      %669 = vmatmul.bf16.gmra.mxu0 %v556
      %v670 = vpop.f32.mrf.mxu0
      %v671 = vadd.f32 0.0, %v670
      %v672 = vpop.f32.mrf.mxu0
      %v673 = vadd.f32 0.0, %v672
      %674 = vmatmul.bf16.gmra.mxu0 %v559
      %v675 = vpop.f32.mrf.mxu0
      %v676 = vadd.f32 0.0, %v675
      %v677 = vpop.f32.mrf.mxu0
      %v678 = vadd.f32 0.0, %v677
      %679 = vmatmul.bf16.gmra.mxu0 %v562
      %v680 = vpop.f32.mrf.mxu0
      %v681 = vadd.f32 0.0, %v680
      %v682 = vpop.f32.mrf.mxu0
      %v683 = vadd.f32 0.0, %v682
      %684 = vmatmul.bf16.gmra.mxu0 %v565
      %v685 = vpop.f32.mrf.mxu0
      %v686 = vadd.f32 0.0, %v685
      %v687 = vpop.f32.mrf.mxu0
      %v688 = vadd.f32 0.0, %v687
      %689 = vmatmul.bf16.gmra.mxu0 %v568
      %v690 = vpop.f32.mrf.mxu0
      %v691 = vadd.f32 0.0, %v690
      %v692 = vpop.f32.mrf.mxu0
      %v693 = vadd.f32 0.0, %v692
      %694 = vmatmul.bf16.gmra.mxu0 %v646
      %v695 = vpop.f32.mrf.mxu0
      %v696 = vadd.f32 0.0, %v695
      %v697 = vpop.f32.mrf.mxu0
      %v698 = vadd.f32 0.0, %v697
      %699 = vdwg.mxu0
      %v700 = vadd.f32 %v622, %v661
      %v701 = vadd.f32 %v623, %v663
      %v702 = vadd.f32 %v624, %v666
      %v703 = vadd.f32 %v625, %v668
      %v704 = vadd.f32 %v626, %v671
      %v705 = vadd.f32 %v627, %v673
      %v706 = vadd.f32 %v628, %v676
      %v707 = vadd.f32 %v629, %v678
      %v708 = vadd.f32 %v630, %v681
      %v709 = vadd.f32 %v631, %v683
      %v710 = vadd.f32 %v632, %v686
      %v711 = vadd.f32 %v633, %v688
      %v712 = vadd.f32 %v634, %v691
      %v713 = vadd.f32 %v635, %v693
      %v714 = vadd.f32 %v636, %v696
      %v715 = vadd.f32 %v637, %v698
      %v716 = vld [vmem:[%s273] sm:$0xf]
      %v717 = vld [vmem:[%s273 + $0x4] sm:$0xf]
      %v718 = vld [vmem:[%s273 + $0x8] sm:$0xf]
      %v719 = vld [vmem:[%s273 + $0xc] sm:$0xf]
      %v720 = vld [vmem:[%s273 + $0x10] sm:$0xf]
      %v721 = vld [vmem:[%s273 + $0x14] sm:$0xf]
      %v722 = vld [vmem:[%s273 + $0x18] sm:$0xf]
      %v723 = vld [vmem:[%s273 + $0x1c] sm:$0xf]
      %v724 = vld [vmem:[%s273 + $0x20] sm:$0xf]
      %v725 = vld [vmem:[%s273 + $0x24] sm:$0xf]
      %v726 = vld [vmem:[%s273 + $0x28] sm:$0xf]
      %v727 = vld [vmem:[%s273 + $0x2c] sm:$0xf]
      %v728 = vld [vmem:[%s273 + $0x30] sm:$0xf]
      %v729 = vld [vmem:[%s273 + $0x34] sm:$0xf]
      %v730 = vld [vmem:[%s273 + $0x38] sm:$0xf]
      %v731 = vld [vmem:[%s273 + $0x3c] sm:$0xf]
      %v732 = vld [vmem:[%s273 + $0x40] sm:$0xf]
      %v733 = vld [vmem:[%s273 + $0x44] sm:$0xf]
      %v734 = vld [vmem:[%s273 + $0x48] sm:$0xf]
      %v735 = vunpack.c.l.bf16 %v716
      %v736 = vunpack.c.l.bf16 %v717
      %v737 = vunpack.c.l.bf16 %v718
      %v738 = vunpack.c.l.bf16 %v719
      %v739 = vunpack.c.l.bf16 %v720
      %v740 = vunpack.c.l.bf16 %v721
      %v741 = vunpack.c.l.bf16 %v722
      %v742 = vunpack.c.l.bf16 %v723
      %v743 = vunpack.c.l.bf16 %v724
      %v744 = vunpack.c.l.bf16 %v725
      %v745 = vunpack.c.l.bf16 %v726
      %v746 = vunpack.c.l.bf16 %v727
      %v747 = vunpack.c.l.bf16 %v728
      %v748 = vunpack.c.l.bf16 %v729
      %v749 = vunpack.c.l.bf16 %v730
      %v750 = vunpack.c.l.bf16 %v731
      %v751 = vunpack.c.l.bf16 %v732
      %v752 = vunpack.c.l.bf16 %v733
      %v753 = vunpack.c.l.bf16 %v734
      %v754 = vpack.c.bf16 %v735, %v735
      %v755 = vpack.c.bf16 %v736, %v736
      %v756 = vpack.c.bf16 %v737, %v737
      %v757 = vpack.c.bf16 %v738, %v738
      %v758 = vpack.c.bf16 %v739, %v739
      %v759 = vpack.c.bf16 %v740, %v740
      %v760 = vpack.c.bf16 %v741, %v741
      %v761 = vpack.c.bf16 %v742, %v742
      %v762 = vpack.c.bf16 %v743, %v743
      %v763 = vpack.c.bf16 %v744, %v744
      %v764 = vpack.c.bf16 %v745, %v745
      %v765 = vpack.c.bf16 %v746, %v746
      %v766 = vpack.c.bf16 %v747, %v747
      %v767 = vpack.c.bf16 %v748, %v748
      %v768 = vpack.c.bf16 %v749, %v749
      %v769 = vpack.c.bf16 %v750, %v750
      %v770 = vpack.c.bf16 %v751, %v751
      %v771 = vpack.c.bf16 %v752, %v752
      %v772 = vpack.c.bf16 %v753, %v753
      %s773 = scalar_lea.vmem %s1, 4
      %v774 = vld [vmem:[%s773] sm:$0x3]
      %v792 = vunpack.c.l.b16 %v754
      %v793 = vunpack.c.l.b16 %v755
      %v794 = vunpack.c.l.b16 %v756
      %v795 = vunpack.c.l.b16 %v757
      %v796 = vunpack.c.l.b16 %v758
      %v797 = vunpack.c.l.b16 %v759
      %v798 = vunpack.c.l.b16 %v760
      %v799 = vunpack.c.l.b16 %v761
      %v800 = vunpack.c.l.b16 %v762
      %v801 = vunpack.c.l.b16 %v763
      %v802 = vunpack.c.l.b16 %v764
      %v803 = vunpack.c.l.b16 %v765
      %v804 = vunpack.c.l.b16 %v766
      %v805 = vunpack.c.l.b16 %v767
      %v806 = vunpack.c.l.b16 %v768
      %v807 = vunpack.c.l.b16 %v769
      %v808 = vunpack.c.l.b16 %v770
      %v809 = vpack.c.b16 %v793, %v792
      %v810 = vpack.c.b16 %v795, %v794
      %v811 = vpack.c.b16 %v797, %v796
      %v812 = vpack.c.b16 %v799, %v798
      %v813 = vpack.c.b16 %v801, %v800
      %v814 = vpack.c.b16 %v803, %v802
      %v815 = vpack.c.b16 %v805, %v804
      %v816 = vpack.c.b16 %v807, %v806
      %v817 = vpack.c.b16 %v808, %v808
      %vm818 = vsmask.f32 7424
      %v820 = vshrl.u32 %v809, 16
      %v822 = vshll.u32 %v809, 16
      %v824 = vrot.slane %v822, 1
      %v825 = vor.u32 %v820, %v824
      %v827 = vshll.u32 %v810, 16
      %v829 = vrot.slane %v827, 1
      %v830 = vsel %vm818, %v825, %v829
      %v831 = vshrl.u32 %v810, 16
      %v833 = vor.u32 %v831, %v829
      %v835 = vshll.u32 %v811, 16
      %v837 = vrot.slane %v835, 1
      %v838 = vsel %vm818, %v833, %v837
      %v839 = vshrl.u32 %v811, 16
      %v841 = vor.u32 %v839, %v837
      %v843 = vshll.u32 %v812, 16
      %v845 = vrot.slane %v843, 1
      %v846 = vsel %vm818, %v841, %v845
      %v847 = vshrl.u32 %v812, 16
      %v849 = vor.u32 %v847, %v845
      %v851 = vshll.u32 %v813, 16
      %v853 = vrot.slane %v851, 1
      %v854 = vsel %vm818, %v849, %v853
      %v855 = vshrl.u32 %v813, 16
      %v857 = vor.u32 %v855, %v853
      %v859 = vshll.u32 %v814, 16
      %v861 = vrot.slane %v859, 1
      %v862 = vsel %vm818, %v857, %v861
      %v863 = vshrl.u32 %v814, 16
      %v865 = vor.u32 %v863, %v861
      %v867 = vshll.u32 %v815, 16
      %v869 = vrot.slane %v867, 1
      %v870 = vsel %vm818, %v865, %v869
      %v871 = vshrl.u32 %v815, 16
      %v873 = vor.u32 %v871, %v869
      %v875 = vshll.u32 %v816, 16
      %v877 = vrot.slane %v875, 1
      %v878 = vsel %vm818, %v873, %v877
      %v879 = vshrl.u32 %v816, 16
      %v881 = vor.u32 %v879, %v877
      %v883 = vshll.u32 %v817, 16
      %v885 = vrot.slane %v883, 1
      %v886 = vsel %vm818, %v881, %v885
      %v888 = vsel %vm347, %v830, 0
      %v891 = vsel %vm347, %v838, 0
      %v894 = vsel %vm347, %v846, 0
      %v897 = vsel %vm347, %v854, 0
      %v900 = vsel %vm347, %v862, 0
      %v903 = vsel %vm347, %v870, 0
      %v906 = vsel %vm347, %v878, 0
      %v909 = vsel %vm347, %v886, 0
      %v912 = vsel %vm372, %v774, 0
      %914 = vmatpush.bf16.msra.mxu0 0
      %915 = vmatpush.bf16.msra.mxu0 0
      %916 = vmatpush.bf16.msra.mxu0 0
      %917 = vmatpush.bf16.msra.mxu0 0
      %918 = vmatpush.bf16.msra.mxu0 0
      %919 = vmatpush.bf16.msra.mxu0 0
      %920 = vmatpush.bf16.msra.mxu0 0
      %921 = vmatpush.bf16.msra.mxu0 %v912
      %922 = vmatmul.bf16.gmra.mxu0 %v888
      %v923 = vpop.f32.mrf.mxu0
      %v924 = vadd.f32 0.0, %v923
      %v925 = vpop.f32.mrf.mxu0
      %v926 = vadd.f32 0.0, %v925
      %927 = vmatmul.bf16.gmra.mxu0 %v891
      %v928 = vpop.f32.mrf.mxu0
      %v929 = vadd.f32 0.0, %v928
      %v930 = vpop.f32.mrf.mxu0
      %v931 = vadd.f32 0.0, %v930
      %932 = vmatmul.bf16.gmra.mxu0 %v894
      %v933 = vpop.f32.mrf.mxu0
      %v934 = vadd.f32 0.0, %v933
      %v935 = vpop.f32.mrf.mxu0
      %v936 = vadd.f32 0.0, %v935
      %937 = vmatmul.bf16.gmra.mxu0 %v897
      %v938 = vpop.f32.mrf.mxu0
      %v939 = vadd.f32 0.0, %v938
      %v940 = vpop.f32.mrf.mxu0
      %v941 = vadd.f32 0.0, %v940
      %942 = vmatmul.bf16.gmra.mxu0 %v900
      %v943 = vpop.f32.mrf.mxu0
      %v944 = vadd.f32 0.0, %v943
      %v945 = vpop.f32.mrf.mxu0
      %v946 = vadd.f32 0.0, %v945
      %947 = vmatmul.bf16.gmra.mxu0 %v903
      %v948 = vpop.f32.mrf.mxu0
      %v949 = vadd.f32 0.0, %v948
      %v950 = vpop.f32.mrf.mxu0
      %v951 = vadd.f32 0.0, %v950
      %952 = vmatmul.bf16.gmra.mxu0 %v906
      %v953 = vpop.f32.mrf.mxu0
      %v954 = vadd.f32 0.0, %v953
      %v955 = vpop.f32.mrf.mxu0
      %v956 = vadd.f32 0.0, %v955
      %957 = vmatmul.bf16.gmra.mxu0 %v909
      %v958 = vpop.f32.mrf.mxu0
      %v959 = vadd.f32 0.0, %v958
      %v960 = vpop.f32.mrf.mxu0
      %v961 = vadd.f32 0.0, %v960
      %962 = vdwg.mxu0
      %v963 = vadd.f32 %v700, %v924
      %v964 = vadd.f32 %v701, %v926
      %v965 = vadd.f32 %v702, %v929
      %v966 = vadd.f32 %v703, %v931
      %v967 = vadd.f32 %v704, %v934
      %v968 = vadd.f32 %v705, %v936
      %v969 = vadd.f32 %v706, %v939
      %v970 = vadd.f32 %v707, %v941
      %v971 = vadd.f32 %v708, %v944
      %v972 = vadd.f32 %v709, %v946
      %v973 = vadd.f32 %v710, %v949
      %v974 = vadd.f32 %v711, %v951
      %v975 = vadd.f32 %v712, %v954
      %v976 = vadd.f32 %v713, %v956
      %v977 = vadd.f32 %v714, %v959
      %v978 = vadd.f32 %v715, %v961
      %s979 = scalar_lea.vmem %s1, 16
      %v980 = vld [vmem:[%s979] sm:$0x3]
      %v983 = vunpack.c.l.b16 %v771
      %v984 = vunpack.c.l.b16 %v772
      %v985 = vpack.c.b16 %v983, %v808
      %v986 = vpack.c.b16 %v984, %v984
      %v988 = vshll.u32 %v985, 16
      %v990 = vrot.slane %v988, 1
      %v991 = vsel %vm818, %v881, %v990
      %v992 = vshrl.u32 %v985, 16
      %v994 = vor.u32 %v992, %v990
      %v996 = vshll.u32 %v986, 16
      %v998 = vrot.slane %v996, 1
      %v999 = vsel %vm818, %v994, %v998
      %v1001 = vsel %vm347, %v991, 0
      %v1004 = vsel %vm347, %v999, 0
      %v1007 = vsel %vm372, %v980, 0
      %1009 = vmatpush.bf16.msra.mxu0 0
      %1010 = vmatpush.bf16.msra.mxu0 0
      %1011 = vmatpush.bf16.msra.mxu0 0
      %1012 = vmatpush.bf16.msra.mxu0 0
      %1013 = vmatpush.bf16.msra.mxu0 0
      %1014 = vmatpush.bf16.msra.mxu0 0
      %1015 = vmatpush.bf16.msra.mxu0 0
      %1016 = vmatpush.bf16.msra.mxu0 %v1007
      %1017 = vmatmul.bf16.gmra.mxu0 %v891
      %v1018 = vpop.f32.mrf.mxu0
      %v1019 = vadd.f32 0.0, %v1018
      %v1020 = vpop.f32.mrf.mxu0
      %v1021 = vadd.f32 0.0, %v1020
      %1022 = vmatmul.bf16.gmra.mxu0 %v894
      %v1023 = vpop.f32.mrf.mxu0
      %v1024 = vadd.f32 0.0, %v1023
      %v1025 = vpop.f32.mrf.mxu0
      %v1026 = vadd.f32 0.0, %v1025
      %1027 = vmatmul.bf16.gmra.mxu0 %v897
      %v1028 = vpop.f32.mrf.mxu0
      %v1029 = vadd.f32 0.0, %v1028
      %v1030 = vpop.f32.mrf.mxu0
      %v1031 = vadd.f32 0.0, %v1030
      %1032 = vmatmul.bf16.gmra.mxu0 %v900
      %v1033 = vpop.f32.mrf.mxu0
      %v1034 = vadd.f32 0.0, %v1033
      %v1035 = vpop.f32.mrf.mxu0
      %v1036 = vadd.f32 0.0, %v1035
      %1037 = vmatmul.bf16.gmra.mxu0 %v903
      %v1038 = vpop.f32.mrf.mxu0
      %v1039 = vadd.f32 0.0, %v1038
      %v1040 = vpop.f32.mrf.mxu0
      %v1041 = vadd.f32 0.0, %v1040
      %1042 = vmatmul.bf16.gmra.mxu0 %v906
      %v1043 = vpop.f32.mrf.mxu0
      %v1044 = vadd.f32 0.0, %v1043
      %v1045 = vpop.f32.mrf.mxu0
      %v1046 = vadd.f32 0.0, %v1045
      %1047 = vmatmul.bf16.gmra.mxu0 %v1001
      %v1048 = vpop.f32.mrf.mxu0
      %v1049 = vadd.f32 0.0, %v1048
      %v1050 = vpop.f32.mrf.mxu0
      %v1051 = vadd.f32 0.0, %v1050
      %1052 = vmatmul.bf16.gmra.mxu0 %v1004
      %v1053 = vpop.f32.mrf.mxu0
      %v1054 = vadd.f32 0.0, %v1053
      %v1055 = vpop.f32.mrf.mxu0
      %v1056 = vadd.f32 0.0, %v1055
      %1057 = vdwg.mxu0
      %v1058 = vadd.f32 %v963, %v1019
      %v1059 = vadd.f32 %v964, %v1021
      %v1060 = vadd.f32 %v965, %v1024
      %v1061 = vadd.f32 %v966, %v1026
      %v1062 = vadd.f32 %v967, %v1029
      %v1063 = vadd.f32 %v968, %v1031
      %v1064 = vadd.f32 %v969, %v1034
      %v1065 = vadd.f32 %v970, %v1036
      %v1066 = vadd.f32 %v971, %v1039
      %v1067 = vadd.f32 %v972, %v1041
      %v1068 = vadd.f32 %v973, %v1044
      %v1069 = vadd.f32 %v974, %v1046
      %v1070 = vadd.f32 %v975, %v1049
      %v1071 = vadd.f32 %v976, %v1051
      %v1072 = vadd.f32 %v977, %v1054
      %v1073 = vadd.f32 %v978, %v1056
      %s1074 = scalar_lea.vmem %s273, 152
      %v1075 = vld [vmem:[%s1074] sm:$0xf]
      %v1076 = vld [vmem:[%s1074 + $0x4] sm:$0xf]
      %v1077 = vld [vmem:[%s1074 + $0x8] sm:$0xf]
      %v1078 = vld [vmem:[%s1074 + $0xc] sm:$0xf]
      %v1079 = vld [vmem:[%s1074 + $0x10] sm:$0xf]
      %v1080 = vld [vmem:[%s1074 + $0x14] sm:$0xf]
      %v1081 = vld [vmem:[%s1074 + $0x18] sm:$0xf]
      %v1082 = vld [vmem:[%s1074 + $0x1c] sm:$0xf]
      %v1083 = vld [vmem:[%s1074 + $0x20] sm:$0xf]
      %v1084 = vld [vmem:[%s1074 + $0x24] sm:$0xf]
      %v1085 = vld [vmem:[%s1074 + $0x28] sm:$0xf]
      %v1086 = vld [vmem:[%s1074 + $0x2c] sm:$0xf]
      %v1087 = vld [vmem:[%s1074 + $0x30] sm:$0xf]
      %v1088 = vld [vmem:[%s1074 + $0x34] sm:$0xf]
      %v1089 = vld [vmem:[%s1074 + $0x38] sm:$0xf]
      %v1090 = vld [vmem:[%s1074 + $0x3c] sm:$0xf]
      %s1091 = scalar_lea.vmem %s1, 6
      %v1092 = vld [vmem:[%s1091] sm:$0x3]
      %v1109 = vunpack.c.l.b16 %v1075
      %v1110 = vunpack.c.l.b16 %v1076
      %v1111 = vunpack.c.l.b16 %v1077
      %v1112 = vunpack.c.l.b16 %v1078
      %v1113 = vunpack.c.l.b16 %v1079
      %v1114 = vunpack.c.l.b16 %v1080
      %v1115 = vunpack.c.l.b16 %v1081
      %v1116 = vunpack.c.l.b16 %v1082
      %v1117 = vunpack.c.l.b16 %v1083
      %v1118 = vunpack.c.l.b16 %v1084
      %v1119 = vunpack.c.l.b16 %v1085
      %v1120 = vunpack.c.l.b16 %v1086
      %v1121 = vunpack.c.l.b16 %v1087
      %v1122 = vunpack.c.l.b16 %v1088
      %v1123 = vunpack.c.l.b16 %v1089
      %v1124 = vunpack.c.l.b16 %v1090
      %v1125 = vpack.c.b16 %v1110, %v1109
      %v1126 = vpack.c.b16 %v1112, %v1111
      %v1127 = vpack.c.b16 %v1114, %v1113
      %v1128 = vpack.c.b16 %v1116, %v1115
      %v1129 = vpack.c.b16 %v1118, %v1117
      %v1130 = vpack.c.b16 %v1120, %v1119
      %v1131 = vpack.c.b16 %v1122, %v1121
      %v1132 = vpack.c.b16 %v1124, %v1123
      %v1134 = vsel %vm347, %v1125, 0
      %v1137 = vsel %vm347, %v1126, 0
      %v1140 = vsel %vm347, %v1127, 0
      %v1143 = vsel %vm347, %v1128, 0
      %v1146 = vsel %vm347, %v1129, 0
      %v1149 = vsel %vm347, %v1130, 0
      %v1152 = vsel %vm347, %v1131, 0
      %v1155 = vsel %vm347, %v1132, 0
      %v1158 = vsel %vm372, %v1092, 0
      %1160 = vmatpush.bf16.msra.mxu0 0
      %1161 = vmatpush.bf16.msra.mxu0 0
      %1162 = vmatpush.bf16.msra.mxu0 0
      %1163 = vmatpush.bf16.msra.mxu0 0
      %1164 = vmatpush.bf16.msra.mxu0 0
      %1165 = vmatpush.bf16.msra.mxu0 0
      %1166 = vmatpush.bf16.msra.mxu0 0
      %1167 = vmatpush.bf16.msra.mxu0 %v1158
      %1168 = vmatmul.bf16.gmra.mxu0 %v1134
      %v1169 = vpop.f32.mrf.mxu0
      %v1170 = vadd.f32 0.0, %v1169
      %v1171 = vpop.f32.mrf.mxu0
      %v1172 = vadd.f32 0.0, %v1171
      %1173 = vmatmul.bf16.gmra.mxu0 %v1137
      %v1174 = vpop.f32.mrf.mxu0
      %v1175 = vadd.f32 0.0, %v1174
      %v1176 = vpop.f32.mrf.mxu0
      %v1177 = vadd.f32 0.0, %v1176
      %1178 = vmatmul.bf16.gmra.mxu0 %v1140
      %v1179 = vpop.f32.mrf.mxu0
      %v1180 = vadd.f32 0.0, %v1179
      %v1181 = vpop.f32.mrf.mxu0
      %v1182 = vadd.f32 0.0, %v1181
      %1183 = vmatmul.bf16.gmra.mxu0 %v1143
      %v1184 = vpop.f32.mrf.mxu0
      %v1185 = vadd.f32 0.0, %v1184
      %v1186 = vpop.f32.mrf.mxu0
      %v1187 = vadd.f32 0.0, %v1186
      %1188 = vmatmul.bf16.gmra.mxu0 %v1146
      %v1189 = vpop.f32.mrf.mxu0
      %v1190 = vadd.f32 0.0, %v1189
      %v1191 = vpop.f32.mrf.mxu0
      %v1192 = vadd.f32 0.0, %v1191
      %1193 = vmatmul.bf16.gmra.mxu0 %v1149
      %v1194 = vpop.f32.mrf.mxu0
      %v1195 = vadd.f32 0.0, %v1194
      %v1196 = vpop.f32.mrf.mxu0
      %v1197 = vadd.f32 0.0, %v1196
      %1198 = vmatmul.bf16.gmra.mxu0 %v1152
      %v1199 = vpop.f32.mrf.mxu0
      %v1200 = vadd.f32 0.0, %v1199
      %v1201 = vpop.f32.mrf.mxu0
      %v1202 = vadd.f32 0.0, %v1201
      %1203 = vmatmul.bf16.gmra.mxu0 %v1155
      %v1204 = vpop.f32.mrf.mxu0
      %v1205 = vadd.f32 0.0, %v1204
      %v1206 = vpop.f32.mrf.mxu0
      %v1207 = vadd.f32 0.0, %v1206
      %1208 = vdwg.mxu0
      %v1209 = vadd.f32 %v1058, %v1170
      %v1210 = vadd.f32 %v1059, %v1172
      %v1211 = vadd.f32 %v1060, %v1175
      %v1212 = vadd.f32 %v1061, %v1177
      %v1213 = vadd.f32 %v1062, %v1180
      %v1214 = vadd.f32 %v1063, %v1182
      %v1215 = vadd.f32 %v1064, %v1185
      %v1216 = vadd.f32 %v1065, %v1187
      %v1217 = vadd.f32 %v1066, %v1190
      %v1218 = vadd.f32 %v1067, %v1192
      %v1219 = vadd.f32 %v1068, %v1195
      %v1220 = vadd.f32 %v1069, %v1197
      %v1221 = vadd.f32 %v1070, %v1200
      %v1222 = vadd.f32 %v1071, %v1202
      %v1223 = vadd.f32 %v1072, %v1205
      %v1224 = vadd.f32 %v1073, %v1207
      %s1225 = scalar_lea.vmem %s273, 228
      %v1226 = vld [vmem:[%s1225] sm:$0xf]
      %v1227 = vld [vmem:[%s1225 + $0x4] sm:$0xf]
      %v1228 = vld [vmem:[%s1225 + $0x8] sm:$0xf]
      %v1229 = vld [vmem:[%s1225 + $0xc] sm:$0xf]
      %v1230 = vld [vmem:[%s1225 + $0x10] sm:$0xf]
      %v1231 = vld [vmem:[%s1225 + $0x14] sm:$0xf]
      %v1232 = vld [vmem:[%s1225 + $0x18] sm:$0xf]
      %v1233 = vld [vmem:[%s1225 + $0x1c] sm:$0xf]
      %v1234 = vld [vmem:[%s1225 + $0x20] sm:$0xf]
      %v1235 = vld [vmem:[%s1225 + $0x24] sm:$0xf]
      %v1236 = vld [vmem:[%s1225 + $0x28] sm:$0xf]
      %v1237 = vld [vmem:[%s1225 + $0x2c] sm:$0xf]
      %v1238 = vld [vmem:[%s1225 + $0x30] sm:$0xf]
      %v1239 = vld [vmem:[%s1225 + $0x34] sm:$0xf]
      %v1240 = vld [vmem:[%s1225 + $0x38] sm:$0xf]
      %v1241 = vld [vmem:[%s1225 + $0x3c] sm:$0xf]
      %s1242 = scalar_lea.vmem %s1, 8
      %v1243 = vld [vmem:[%s1242] sm:$0x3]
      %v1260 = vunpack.c.l.b16 %v1226
      %v1261 = vunpack.c.l.b16 %v1227
      %v1262 = vunpack.c.l.b16 %v1228
      %v1263 = vunpack.c.l.b16 %v1229
      %v1264 = vunpack.c.l.b16 %v1230
      %v1265 = vunpack.c.l.b16 %v1231
      %v1266 = vunpack.c.l.b16 %v1232
      %v1267 = vunpack.c.l.b16 %v1233
      %v1268 = vunpack.c.l.b16 %v1234
      %v1269 = vunpack.c.l.b16 %v1235
      %v1270 = vunpack.c.l.b16 %v1236
      %v1271 = vunpack.c.l.b16 %v1237
      %v1272 = vunpack.c.l.b16 %v1238
      %v1273 = vunpack.c.l.b16 %v1239
      %v1274 = vunpack.c.l.b16 %v1240
      %v1275 = vunpack.c.l.b16 %v1241
      %v1276 = vpack.c.b16 %v1261, %v1260
      %v1277 = vpack.c.b16 %v1263, %v1262
      %v1278 = vpack.c.b16 %v1265, %v1264
      %v1279 = vpack.c.b16 %v1267, %v1266
      %v1280 = vpack.c.b16 %v1269, %v1268
      %v1281 = vpack.c.b16 %v1271, %v1270
      %v1282 = vpack.c.b16 %v1273, %v1272
      %v1283 = vpack.c.b16 %v1275, %v1274
      %v1285 = vsel %vm347, %v1276, 0
      %v1288 = vsel %vm347, %v1277, 0
      %v1291 = vsel %vm347, %v1278, 0
      %v1294 = vsel %vm347, %v1279, 0
      %v1297 = vsel %vm347, %v1280, 0
      %v1300 = vsel %vm347, %v1281, 0
      %v1303 = vsel %vm347, %v1282, 0
      %v1306 = vsel %vm347, %v1283, 0
      %v1309 = vsel %vm372, %v1243, 0
      %1311 = vmatpush.bf16.msra.mxu0 0
      %1312 = vmatpush.bf16.msra.mxu0 0
      %1313 = vmatpush.bf16.msra.mxu0 0
      %1314 = vmatpush.bf16.msra.mxu0 0
      %1315 = vmatpush.bf16.msra.mxu0 0
      %1316 = vmatpush.bf16.msra.mxu0 0
      %1317 = vmatpush.bf16.msra.mxu0 0
      %1318 = vmatpush.bf16.msra.mxu0 %v1309
      %1319 = vmatmul.bf16.gmra.mxu0 %v1285
      %v1320 = vpop.f32.mrf.mxu0
      %v1321 = vadd.f32 0.0, %v1320
      %v1322 = vpop.f32.mrf.mxu0
      %v1323 = vadd.f32 0.0, %v1322
      %1324 = vmatmul.bf16.gmra.mxu0 %v1288
      %v1325 = vpop.f32.mrf.mxu0
      %v1326 = vadd.f32 0.0, %v1325
      %v1327 = vpop.f32.mrf.mxu0
      %v1328 = vadd.f32 0.0, %v1327
      %1329 = vmatmul.bf16.gmra.mxu0 %v1291
      %v1330 = vpop.f32.mrf.mxu0
      %v1331 = vadd.f32 0.0, %v1330
      %v1332 = vpop.f32.mrf.mxu0
      %v1333 = vadd.f32 0.0, %v1332
      %1334 = vmatmul.bf16.gmra.mxu0 %v1294
      %v1335 = vpop.f32.mrf.mxu0
      %v1336 = vadd.f32 0.0, %v1335
      %v1337 = vpop.f32.mrf.mxu0
      %v1338 = vadd.f32 0.0, %v1337
      %1339 = vmatmul.bf16.gmra.mxu0 %v1297
      %v1340 = vpop.f32.mrf.mxu0
      %v1341 = vadd.f32 0.0, %v1340
      %v1342 = vpop.f32.mrf.mxu0
      %v1343 = vadd.f32 0.0, %v1342
      %1344 = vmatmul.bf16.gmra.mxu0 %v1300
      %v1345 = vpop.f32.mrf.mxu0
      %v1346 = vadd.f32 0.0, %v1345
      %v1347 = vpop.f32.mrf.mxu0
      %v1348 = vadd.f32 0.0, %v1347
      %1349 = vmatmul.bf16.gmra.mxu0 %v1303
      %v1350 = vpop.f32.mrf.mxu0
      %v1351 = vadd.f32 0.0, %v1350
      %v1352 = vpop.f32.mrf.mxu0
      %v1353 = vadd.f32 0.0, %v1352
      %1354 = vmatmul.bf16.gmra.mxu0 %v1306
      %v1355 = vpop.f32.mrf.mxu0
      %v1356 = vadd.f32 0.0, %v1355
      %v1357 = vpop.f32.mrf.mxu0
      %v1358 = vadd.f32 0.0, %v1357
      %1359 = vdwg.mxu0
      %v1360 = vadd.f32 %v1209, %v1321
      %v1361 = vadd.f32 %v1210, %v1323
      %v1362 = vadd.f32 %v1211, %v1326
      %v1363 = vadd.f32 %v1212, %v1328
      %v1364 = vadd.f32 %v1213, %v1331
      %v1365 = vadd.f32 %v1214, %v1333
      %v1366 = vadd.f32 %v1215, %v1336
      %v1367 = vadd.f32 %v1216, %v1338
      %v1368 = vadd.f32 %v1217, %v1341
      %v1369 = vadd.f32 %v1218, %v1343
      %v1370 = vadd.f32 %v1219, %v1346
      %v1371 = vadd.f32 %v1220, %v1348
      %v1372 = vadd.f32 %v1221, %v1351
      %v1373 = vadd.f32 %v1222, %v1353
      %v1374 = vadd.f32 %v1223, %v1356
      %v1375 = vadd.f32 %v1224, %v1358
      %v1376 = vld [vmem:[%s1074] sm:$0xf]
      %v1377 = vld [vmem:[%s1074 + $0x4] sm:$0xf]
      %v1378 = vld [vmem:[%s1074 + $0x8] sm:$0xf]
      %v1379 = vld [vmem:[%s1074 + $0xc] sm:$0xf]
      %v1380 = vld [vmem:[%s1074 + $0x10] sm:$0xf]
      %v1381 = vld [vmem:[%s1074 + $0x14] sm:$0xf]
      %v1382 = vld [vmem:[%s1074 + $0x18] sm:$0xf]
      %v1383 = vld [vmem:[%s1074 + $0x1c] sm:$0xf]
      %v1384 = vld [vmem:[%s1074 + $0x20] sm:$0xf]
      %v1385 = vld [vmem:[%s1074 + $0x24] sm:$0xf]
      %v1386 = vld [vmem:[%s1074 + $0x28] sm:$0xf]
      %v1387 = vld [vmem:[%s1074 + $0x2c] sm:$0xf]
      %v1388 = vld [vmem:[%s1074 + $0x30] sm:$0xf]
      %v1389 = vld [vmem:[%s1074 + $0x34] sm:$0xf]
      %v1390 = vld [vmem:[%s1074 + $0x38] sm:$0xf]
      %v1391 = vld [vmem:[%s1074 + $0x3c] sm:$0xf]
      %v1392 = vld [vmem:[%s1074 + $0x40] sm:$0xf]
      %v1393 = vunpack.c.l.bf16 %v1376
      %v1394 = vunpack.c.l.bf16 %v1377
      %v1395 = vunpack.c.l.bf16 %v1378
      %v1396 = vunpack.c.l.bf16 %v1379
      %v1397 = vunpack.c.l.bf16 %v1380
      %v1398 = vunpack.c.l.bf16 %v1381
      %v1399 = vunpack.c.l.bf16 %v1382
      %v1400 = vunpack.c.l.bf16 %v1383
      %v1401 = vunpack.c.l.bf16 %v1384
      %v1402 = vunpack.c.l.bf16 %v1385
      %v1403 = vunpack.c.l.bf16 %v1386
      %v1404 = vunpack.c.l.bf16 %v1387
      %v1405 = vunpack.c.l.bf16 %v1388
      %v1406 = vunpack.c.l.bf16 %v1389
      %v1407 = vunpack.c.l.bf16 %v1390
      %v1408 = vunpack.c.l.bf16 %v1391
      %v1409 = vunpack.c.l.bf16 %v1392
      %v1410 = vpack.c.bf16 %v1394, %v1393
      %v1411 = vpack.c.bf16 %v1396, %v1395
      %v1412 = vpack.c.bf16 %v1398, %v1397
      %v1413 = vpack.c.bf16 %v1400, %v1399
      %v1414 = vpack.c.bf16 %v1402, %v1401
      %v1415 = vpack.c.bf16 %v1404, %v1403
      %v1416 = vpack.c.bf16 %v1406, %v1405
      %v1417 = vpack.c.bf16 %v1408, %v1407
      %v1418 = vpack.c.bf16 %v1409, %v1409
      %s1419 = scalar_lea.vmem %s1, 10
      %v1420 = vld [vmem:[%s1419] sm:$0x3]
      %v1422 = vshrl.u32 %v1410, 16
      %v1424 = vshll.u32 %v1410, 16
      %v1426 = vrot.slane %v1424, 1
      %v1427 = vor.u32 %v1422, %v1426
      %v1429 = vshll.u32 %v1411, 16
      %v1431 = vrot.slane %v1429, 1
      %v1432 = vsel %vm818, %v1427, %v1431
      %v1433 = vshrl.u32 %v1411, 16
      %v1435 = vor.u32 %v1433, %v1431
      %v1437 = vshll.u32 %v1412, 16
      %v1439 = vrot.slane %v1437, 1
      %v1440 = vsel %vm818, %v1435, %v1439
      %v1441 = vshrl.u32 %v1412, 16
      %v1443 = vor.u32 %v1441, %v1439
      %v1445 = vshll.u32 %v1413, 16
      %v1447 = vrot.slane %v1445, 1
      %v1448 = vsel %vm818, %v1443, %v1447
      %v1449 = vshrl.u32 %v1413, 16
      %v1451 = vor.u32 %v1449, %v1447
      %v1453 = vshll.u32 %v1414, 16
      %v1455 = vrot.slane %v1453, 1
      %v1456 = vsel %vm818, %v1451, %v1455
      %v1457 = vshrl.u32 %v1414, 16
      %v1459 = vor.u32 %v1457, %v1455
      %v1461 = vshll.u32 %v1415, 16
      %v1463 = vrot.slane %v1461, 1
      %v1464 = vsel %vm818, %v1459, %v1463
      %v1465 = vshrl.u32 %v1415, 16
      %v1467 = vor.u32 %v1465, %v1463
      %v1469 = vshll.u32 %v1416, 16
      %v1471 = vrot.slane %v1469, 1
      %v1472 = vsel %vm818, %v1467, %v1471
      %v1473 = vshrl.u32 %v1416, 16
      %v1475 = vor.u32 %v1473, %v1471
      %v1477 = vshll.u32 %v1417, 16
      %v1479 = vrot.slane %v1477, 1
      %v1480 = vsel %vm818, %v1475, %v1479
      %v1481 = vshrl.u32 %v1417, 16
      %v1483 = vor.u32 %v1481, %v1479
      %v1485 = vshll.u32 %v1418, 16
      %v1487 = vrot.slane %v1485, 1
      %v1488 = vsel %vm818, %v1483, %v1487
      %v1490 = vsel %vm347, %v1432, 0
      %v1493 = vsel %vm347, %v1440, 0
      %v1496 = vsel %vm347, %v1448, 0
      %v1499 = vsel %vm347, %v1456, 0
      %v1502 = vsel %vm347, %v1464, 0
      %v1505 = vsel %vm347, %v1472, 0
      %v1508 = vsel %vm347, %v1480, 0
      %v1511 = vsel %vm347, %v1488, 0
      %v1514 = vsel %vm372, %v1420, 0
      %1516 = vmatpush.bf16.msra.mxu0 0
      %1517 = vmatpush.bf16.msra.mxu0 0
      %1518 = vmatpush.bf16.msra.mxu0 0
      %1519 = vmatpush.bf16.msra.mxu0 0
      %1520 = vmatpush.bf16.msra.mxu0 0
      %1521 = vmatpush.bf16.msra.mxu0 0
      %1522 = vmatpush.bf16.msra.mxu0 0
      %1523 = vmatpush.bf16.msra.mxu0 %v1514
      %1524 = vmatmul.bf16.gmra.mxu0 %v1490
      %v1525 = vpop.f32.mrf.mxu0
      %v1526 = vadd.f32 0.0, %v1525
      %v1527 = vpop.f32.mrf.mxu0
      %v1528 = vadd.f32 0.0, %v1527
      %1529 = vmatmul.bf16.gmra.mxu0 %v1493
      %v1530 = vpop.f32.mrf.mxu0
      %v1531 = vadd.f32 0.0, %v1530
      %v1532 = vpop.f32.mrf.mxu0
      %v1533 = vadd.f32 0.0, %v1532
      %1534 = vmatmul.bf16.gmra.mxu0 %v1496
      %v1535 = vpop.f32.mrf.mxu0
      %v1536 = vadd.f32 0.0, %v1535
      %v1537 = vpop.f32.mrf.mxu0
      %v1538 = vadd.f32 0.0, %v1537
      %1539 = vmatmul.bf16.gmra.mxu0 %v1499
      %v1540 = vpop.f32.mrf.mxu0
      %v1541 = vadd.f32 0.0, %v1540
      %v1542 = vpop.f32.mrf.mxu0
      %v1543 = vadd.f32 0.0, %v1542
      %1544 = vmatmul.bf16.gmra.mxu0 %v1502
      %v1545 = vpop.f32.mrf.mxu0
      %v1546 = vadd.f32 0.0, %v1545
      %v1547 = vpop.f32.mrf.mxu0
      %v1548 = vadd.f32 0.0, %v1547
      %1549 = vmatmul.bf16.gmra.mxu0 %v1505
      %v1550 = vpop.f32.mrf.mxu0
      %v1551 = vadd.f32 0.0, %v1550
      %v1552 = vpop.f32.mrf.mxu0
      %v1553 = vadd.f32 0.0, %v1552
      %1554 = vmatmul.bf16.gmra.mxu0 %v1508
      %v1555 = vpop.f32.mrf.mxu0
      %v1556 = vadd.f32 0.0, %v1555
      %v1557 = vpop.f32.mrf.mxu0
      %v1558 = vadd.f32 0.0, %v1557
      %1559 = vmatmul.bf16.gmra.mxu0 %v1511
      %v1560 = vpop.f32.mrf.mxu0
      %v1561 = vadd.f32 0.0, %v1560
      %v1562 = vpop.f32.mrf.mxu0
      %v1563 = vadd.f32 0.0, %v1562
      %1564 = vdwg.mxu0
      %v1565 = vadd.f32 %v1360, %v1526
      %v1566 = vadd.f32 %v1361, %v1528
      %v1567 = vadd.f32 %v1362, %v1531
      %v1568 = vadd.f32 %v1363, %v1533
      %v1569 = vadd.f32 %v1364, %v1536
      %v1570 = vadd.f32 %v1365, %v1538
      %v1571 = vadd.f32 %v1366, %v1541
      %v1572 = vadd.f32 %v1367, %v1543
      %v1573 = vadd.f32 %v1368, %v1546
      %v1574 = vadd.f32 %v1369, %v1548
      %v1575 = vadd.f32 %v1370, %v1551
      %v1576 = vadd.f32 %v1371, %v1553
      %v1577 = vadd.f32 %v1372, %v1556
      %v1578 = vadd.f32 %v1373, %v1558
      %v1579 = vadd.f32 %v1374, %v1561
      %v1580 = vadd.f32 %v1375, %v1563
      %v1581 = vld [vmem:[%s2] sm:$0x1]
      %v1583 = vperm.slane %v1581, 0
      %v1585 = vadd.f32 %v1565, %v1583
      %v1586 = vadd.f32 %v1566, %v1583
      %v1587 = vadd.f32 %v1567, %v1583
      %v1588 = vadd.f32 %v1568, %v1583
      %v1589 = vadd.f32 %v1569, %v1583
      %v1590 = vadd.f32 %v1570, %v1583
      %v1591 = vadd.f32 %v1571, %v1583
      %v1592 = vadd.f32 %v1572, %v1583
      %v1593 = vadd.f32 %v1573, %v1583
      %v1594 = vadd.f32 %v1574, %v1583
      %v1595 = vadd.f32 %v1575, %v1583
      %v1596 = vadd.f32 %v1576, %v1583
      %v1597 = vadd.f32 %v1577, %v1583
      %v1598 = vadd.f32 %v1578, %v1583
      %v1599 = vadd.f32 %v1579, %v1583
      %v1600 = vadd.f32 %v1580, %v1583
      %v1601 = vmax.f32 %v1585, 0.0
      %v1602 = vmax.f32 %v1586, 0.0
      %v1603 = vmax.f32 %v1587, 0.0
      %v1604 = vmax.f32 %v1588, 0.0
      %v1605 = vmax.f32 %v1589, 0.0
      %v1606 = vmax.f32 %v1590, 0.0
      %v1607 = vmax.f32 %v1591, 0.0
      %v1608 = vmax.f32 %v1592, 0.0
      %v1609 = vmax.f32 %v1593, 0.0
      %v1610 = vmax.f32 %v1594, 0.0
      %v1611 = vmax.f32 %v1595, 0.0
      %v1612 = vmax.f32 %v1596, 0.0
      %v1613 = vmax.f32 %v1597, 0.0
      %v1614 = vmax.f32 %v1598, 0.0
      %v1615 = vmax.f32 %v1599, 0.0
      %v1616 = vmax.f32 %v1600, 0.0
      %v1617 = vlaneseq
      %v1618 = vshrl.u32 %v1617, 7
      %v1619 = vadd.s32 %v1618, 8
      %v1620 = vadd.s32 %v1618, 16
      %v1621 = vadd.s32 %v1618, 24
      %v1622 = vadd.s32 %v1618, 32
      %v1623 = vadd.s32 %v1618, 40
      %v1624 = vadd.s32 %v1618, 48
      %v1625 = vadd.s32 %v1618, 56
      %v1626 = vadd.s32 %v1618, 64
      %v1627 = vadd.s32 %v1618, 72
      %v1628 = vadd.s32 %v1618, 80
      %v1629 = vadd.s32 %v1618, 88
      %v1630 = vadd.s32 %v1618, 96
      %v1631 = vadd.s32 %v1618, 104
      %v1632 = vadd.s32 %v1618, 112
      %v1633 = vadd.s32 %v1618, 120
      %vm1634 = vcmp.lt.s32.totalorder %v1618, 0
      %v1635 = vsub.s32 0, %v1618
      %v1636 = vsel %vm1634, %v1635, %v1618
      %v1637 = vshrl.u32 %v1636, 4
      %v1638 = vand.u32 %v1636, 15
      %v1639 = vsub.s32 0, %v1638
      %v1640 = vsel %vm1634, %v1639, %v1638
      %vm1641 = vcmp.lt.s32.totalorder %v1619, 0
      %v1642 = vsub.s32 0, %v1619
      %v1643 = vsel %vm1641, %v1642, %v1619
      %v1644 = vshrl.u32 %v1643, 4
      %v1645 = vand.u32 %v1643, 15
      %v1646 = vsub.s32 0, %v1645
      %v1647 = vsel %vm1641, %v1646, %v1645
      %vm1648 = vcmp.lt.s32.totalorder %v1620, 0
      %v1649 = vsub.s32 0, %v1620
      %v1650 = vsel %vm1648, %v1649, %v1620
      %v1651 = vshrl.u32 %v1650, 4
      %v1652 = vand.u32 %v1650, 15
      %v1653 = vsub.s32 0, %v1652
      %v1654 = vsel %vm1648, %v1653, %v1652
      %vm1655 = vcmp.lt.s32.totalorder %v1621, 0
      %v1656 = vsub.s32 0, %v1621
      %v1657 = vsel %vm1655, %v1656, %v1621
      %v1658 = vshrl.u32 %v1657, 4
      %v1659 = vand.u32 %v1657, 15
      %v1660 = vsub.s32 0, %v1659
      %v1661 = vsel %vm1655, %v1660, %v1659
      %vm1662 = vcmp.lt.s32.totalorder %v1622, 0
      %v1663 = vsub.s32 0, %v1622
      %v1664 = vsel %vm1662, %v1663, %v1622
      %v1665 = vshrl.u32 %v1664, 4
      %v1666 = vand.u32 %v1664, 15
      %v1667 = vsub.s32 0, %v1666
      %v1668 = vsel %vm1662, %v1667, %v1666
      %vm1669 = vcmp.lt.s32.totalorder %v1623, 0
      %v1670 = vsub.s32 0, %v1623
      %v1671 = vsel %vm1669, %v1670, %v1623
      %v1672 = vshrl.u32 %v1671, 4
      %v1673 = vand.u32 %v1671, 15
      %v1674 = vsub.s32 0, %v1673
      %v1675 = vsel %vm1669, %v1674, %v1673
      %vm1676 = vcmp.lt.s32.totalorder %v1624, 0
      %v1677 = vsub.s32 0, %v1624
      %v1678 = vsel %vm1676, %v1677, %v1624
      %v1679 = vshrl.u32 %v1678, 4
      %v1680 = vand.u32 %v1678, 15
      %v1681 = vsub.s32 0, %v1680
      %v1682 = vsel %vm1676, %v1681, %v1680
      %vm1683 = vcmp.lt.s32.totalorder %v1625, 0
      %v1684 = vsub.s32 0, %v1625
      %v1685 = vsel %vm1683, %v1684, %v1625
      %v1686 = vshrl.u32 %v1685, 4
      %v1687 = vand.u32 %v1685, 15
      %v1688 = vsub.s32 0, %v1687
      %v1689 = vsel %vm1683, %v1688, %v1687
      %vm1690 = vcmp.lt.s32.totalorder %v1626, 0
      %v1691 = vsub.s32 0, %v1626
      %v1692 = vsel %vm1690, %v1691, %v1626
      %v1693 = vshrl.u32 %v1692, 4
      %v1694 = vand.u32 %v1692, 15
      %v1695 = vsub.s32 0, %v1694
      %v1696 = vsel %vm1690, %v1695, %v1694
      %vm1697 = vcmp.lt.s32.totalorder %v1627, 0
      %v1698 = vsub.s32 0, %v1627
      %v1699 = vsel %vm1697, %v1698, %v1627
      %v1700 = vshrl.u32 %v1699, 4
      %v1701 = vand.u32 %v1699, 15
      %v1702 = vsub.s32 0, %v1701
      %v1703 = vsel %vm1697, %v1702, %v1701
      %vm1704 = vcmp.lt.s32.totalorder %v1628, 0
      %v1705 = vsub.s32 0, %v1628
      %v1706 = vsel %vm1704, %v1705, %v1628
      %v1707 = vshrl.u32 %v1706, 4
      %v1708 = vand.u32 %v1706, 15
      %v1709 = vsub.s32 0, %v1708
      %v1710 = vsel %vm1704, %v1709, %v1708
      %vm1711 = vcmp.lt.s32.totalorder %v1629, 0
      %v1712 = vsub.s32 0, %v1629
      %v1713 = vsel %vm1711, %v1712, %v1629
      %v1714 = vshrl.u32 %v1713, 4
      %v1715 = vand.u32 %v1713, 15
      %v1716 = vsub.s32 0, %v1715
      %v1717 = vsel %vm1711, %v1716, %v1715
      %vm1718 = vcmp.lt.s32.totalorder %v1630, 0
      %v1719 = vsub.s32 0, %v1630
      %v1720 = vsel %vm1718, %v1719, %v1630
      %v1721 = vshrl.u32 %v1720, 4
      %v1722 = vand.u32 %v1720, 15
      %v1723 = vsub.s32 0, %v1722
      %v1724 = vsel %vm1718, %v1723, %v1722
      %vm1725 = vcmp.lt.s32.totalorder %v1631, 0
      %v1726 = vsub.s32 0, %v1631
      %v1727 = vsel %vm1725, %v1726, %v1631
      %v1728 = vshrl.u32 %v1727, 4
      %v1729 = vand.u32 %v1727, 15
      %v1730 = vsub.s32 0, %v1729
      %v1731 = vsel %vm1725, %v1730, %v1729
      %vm1732 = vcmp.lt.s32.totalorder %v1632, 0
      %v1733 = vsub.s32 0, %v1632
      %v1734 = vsel %vm1732, %v1733, %v1632
      %v1735 = vshrl.u32 %v1734, 4
      %v1736 = vand.u32 %v1734, 15
      %v1737 = vsub.s32 0, %v1736
      %v1738 = vsel %vm1732, %v1737, %v1736
      %vm1739 = vcmp.lt.s32.totalorder %v1633, 0
      %v1740 = vsub.s32 0, %v1633
      %v1741 = vsel %vm1739, %v1740, %v1633
      %v1742 = vshrl.u32 %v1741, 4
      %v1743 = vand.u32 %v1741, 15
      %v1744 = vsub.s32 0, %v1743
      %v1745 = vsel %vm1739, %v1744, %v1743
      %vm1746 = vcmp.ne.s32.totalorder %v1640, 0
      %vm1747 = vcmp.ne.s32.totalorder %v1647, 0
      %vm1748 = vcmp.ne.s32.totalorder %v1654, 0
      %vm1749 = vcmp.ne.s32.totalorder %v1661, 0
      %vm1750 = vcmp.ne.s32.totalorder %v1668, 0
      %vm1751 = vcmp.ne.s32.totalorder %v1675, 0
      %vm1752 = vcmp.ne.s32.totalorder %v1682, 0
      %vm1753 = vcmp.ne.s32.totalorder %v1689, 0
      %vm1754 = vcmp.ne.s32.totalorder %v1696, 0
      %vm1755 = vcmp.ne.s32.totalorder %v1703, 0
      %vm1756 = vcmp.ne.s32.totalorder %v1710, 0
      %vm1757 = vcmp.ne.s32.totalorder %v1717, 0
      %vm1758 = vcmp.ne.s32.totalorder %v1724, 0
      %vm1759 = vcmp.ne.s32.totalorder %v1731, 0
      %vm1760 = vcmp.ne.s32.totalorder %v1738, 0
      %vm1761 = vcmp.ne.s32.totalorder %v1745, 0
      %vm1762 = vcmp.lt.s32.totalorder %v1640, 0
      %vm1763 = vcmp.lt.s32.totalorder %v1647, 0
      %vm1764 = vcmp.lt.s32.totalorder %v1654, 0
      %vm1765 = vcmp.lt.s32.totalorder %v1661, 0
      %vm1766 = vcmp.lt.s32.totalorder %v1668, 0
      %vm1767 = vcmp.lt.s32.totalorder %v1675, 0
      %vm1768 = vcmp.lt.s32.totalorder %v1682, 0
      %vm1769 = vcmp.lt.s32.totalorder %v1689, 0
      %vm1770 = vcmp.lt.s32.totalorder %v1696, 0
      %vm1771 = vcmp.lt.s32.totalorder %v1703, 0
      %vm1772 = vcmp.lt.s32.totalorder %v1710, 0
      %vm1773 = vcmp.lt.s32.totalorder %v1717, 0
      %vm1774 = vcmp.lt.s32.totalorder %v1724, 0
      %vm1775 = vcmp.lt.s32.totalorder %v1731, 0
      %vm1776 = vcmp.lt.s32.totalorder %v1738, 0
      %vm1777 = vcmp.lt.s32.totalorder %v1745, 0
      %vm1778 = vmand %vm1762, %vm1746
      %vm1779 = vmand %vm1763, %vm1747
      %vm1780 = vmand %vm1764, %vm1748
      %vm1781 = vmand %vm1765, %vm1749
      %vm1782 = vmand %vm1766, %vm1750
      %vm1783 = vmand %vm1767, %vm1751
      %vm1784 = vmand %vm1768, %vm1752
      %vm1785 = vmand %vm1769, %vm1753
      %vm1786 = vmand %vm1770, %vm1754
      %vm1787 = vmand %vm1771, %vm1755
      %vm1788 = vmand %vm1772, %vm1756
      %vm1789 = vmand %vm1773, %vm1757
      %vm1790 = vmand %vm1774, %vm1758
      %vm1791 = vmand %vm1775, %vm1759
      %vm1792 = vmand %vm1776, %vm1760
      %vm1793 = vmand %vm1777, %vm1761
      %v1794 = vadd.s32 %v1640, 16
      %v1795 = vadd.s32 %v1647, 16
      %v1796 = vadd.s32 %v1654, 16
      %v1797 = vadd.s32 %v1661, 16
      %v1798 = vadd.s32 %v1668, 16
      %v1799 = vadd.s32 %v1675, 16
      %v1800 = vadd.s32 %v1682, 16
      %v1801 = vadd.s32 %v1689, 16
      %v1802 = vadd.s32 %v1696, 16
      %v1803 = vadd.s32 %v1703, 16
      %v1804 = vadd.s32 %v1710, 16
      %v1805 = vadd.s32 %v1717, 16
      %v1806 = vadd.s32 %v1724, 16
      %v1807 = vadd.s32 %v1731, 16
      %v1808 = vadd.s32 %v1738, 16
      %v1809 = vadd.s32 %v1745, 16
      %v1810 = vsel %vm1778, %v1794, %v1640
      %v1811 = vsel %vm1779, %v1795, %v1647
      %v1812 = vsel %vm1780, %v1796, %v1654
      %v1813 = vsel %vm1781, %v1797, %v1661
      %v1814 = vsel %vm1782, %v1798, %v1668
      %v1815 = vsel %vm1783, %v1799, %v1675
      %v1816 = vsel %vm1784, %v1800, %v1682
      %v1817 = vsel %vm1785, %v1801, %v1689
      %v1818 = vsel %vm1786, %v1802, %v1696
      %v1819 = vsel %vm1787, %v1803, %v1703
      %v1820 = vsel %vm1788, %v1804, %v1710
      %v1821 = vsel %vm1789, %v1805, %v1717
      %v1822 = vsel %vm1790, %v1806, %v1724
      %v1823 = vsel %vm1791, %v1807, %v1731
      %v1824 = vsel %vm1792, %v1808, %v1738
      %v1825 = vsel %vm1793, %v1809, %v1745
      %vm1826 = vcmp.lt.s32.totalorder %v1810, 8
      %vm1827 = vcmp.lt.s32.totalorder %v1811, 8
      %vm1828 = vcmp.lt.s32.totalorder %v1812, 8
      %vm1829 = vcmp.lt.s32.totalorder %v1813, 8
      %vm1830 = vcmp.lt.s32.totalorder %v1814, 8
      %vm1831 = vcmp.lt.s32.totalorder %v1815, 8
      %vm1832 = vcmp.lt.s32.totalorder %v1816, 8
      %vm1833 = vcmp.lt.s32.totalorder %v1817, 8
      %vm1834 = vcmp.lt.s32.totalorder %v1818, 8
      %vm1835 = vcmp.lt.s32.totalorder %v1819, 8
      %vm1836 = vcmp.lt.s32.totalorder %v1820, 8
      %vm1837 = vcmp.lt.s32.totalorder %v1821, 8
      %vm1838 = vcmp.lt.s32.totalorder %v1822, 8
      %vm1839 = vcmp.lt.s32.totalorder %v1823, 8
      %vm1840 = vcmp.lt.s32.totalorder %v1824, 8
      %vm1841 = vcmp.lt.s32.totalorder %v1825, 8
      %v1842 = vsel %vm1826, 1, 0
      %v1843 = vsel %vm1827, 1, 0
      %v1844 = vsel %vm1828, 1, 0
      %v1845 = vsel %vm1829, 1, 0
      %v1846 = vsel %vm1830, 1, 0
      %v1847 = vsel %vm1831, 1, 0
      %v1848 = vsel %vm1832, 1, 0
      %v1849 = vsel %vm1833, 1, 0
      %v1850 = vsel %vm1834, 1, 0
      %v1851 = vsel %vm1835, 1, 0
      %v1852 = vsel %vm1836, 1, 0
      %v1853 = vsel %vm1837, 1, 0
      %v1854 = vsel %vm1838, 1, 0
      %v1855 = vsel %vm1839, 1, 0
      %v1856 = vsel %vm1840, 1, 0
      %v1857 = vsel %vm1841, 1, 0
      %vm1858 = vcmp.eq.s32.totalorder %v1842, 1
      %vm1859 = vcmp.eq.s32.totalorder %v1843, 1
      %vm1860 = vcmp.eq.s32.totalorder %v1844, 1
      %vm1861 = vcmp.eq.s32.totalorder %v1845, 1
      %vm1862 = vcmp.eq.s32.totalorder %v1846, 1
      %vm1863 = vcmp.eq.s32.totalorder %v1847, 1
      %vm1864 = vcmp.eq.s32.totalorder %v1848, 1
      %vm1865 = vcmp.eq.s32.totalorder %v1849, 1
      %vm1866 = vcmp.eq.s32.totalorder %v1850, 1
      %vm1867 = vcmp.eq.s32.totalorder %v1851, 1
      %vm1868 = vcmp.eq.s32.totalorder %v1852, 1
      %vm1869 = vcmp.eq.s32.totalorder %v1853, 1
      %vm1870 = vcmp.eq.s32.totalorder %v1854, 1
      %vm1871 = vcmp.eq.s32.totalorder %v1855, 1
      %vm1872 = vcmp.eq.s32.totalorder %v1856, 1
      %vm1873 = vcmp.eq.s32.totalorder %v1857, 1
      %v1874 = vsel %vm1858, %v1601, 0.0
      %v1875 = vsel %vm1859, %v1602, 0.0
      %v1876 = vsel %vm1860, %v1603, 0.0
      %v1877 = vsel %vm1861, %v1604, 0.0
      %v1878 = vsel %vm1862, %v1605, 0.0
      %v1879 = vsel %vm1863, %v1606, 0.0
      %v1880 = vsel %vm1864, %v1607, 0.0
      %v1881 = vsel %vm1865, %v1608, 0.0
      %v1882 = vsel %vm1866, %v1609, 0.0
      %v1883 = vsel %vm1867, %v1610, 0.0
      %v1884 = vsel %vm1868, %v1611, 0.0
      %v1885 = vsel %vm1869, %v1612, 0.0
      %v1886 = vsel %vm1870, %v1613, 0.0
      %v1887 = vsel %vm1871, %v1614, 0.0
      %v1888 = vsel %vm1872, %v1615, 0.0
      %v1889 = vsel %vm1873, %v1616, 0.0
      %1890 = vst [vmem:[#allocation2 + $0x18] sm:$0xff] %v1874
      %1891 = vst [vmem:[#allocation2 + $0x20] sm:$0xff] %v1875
      %1892 = vst [vmem:[#allocation2 + $0x28] sm:$0xff] %v1876
      %1893 = vst [vmem:[#allocation2 + $0x30] sm:$0xff] %v1877
      %1894 = vst [vmem:[#allocation2 + $0x38] sm:$0xff] %v1878
      %1895 = vst [vmem:[#allocation2 + $0x40] sm:$0xff] %v1879
      %1896 = vst [vmem:[#allocation2 + $0x48] sm:$0xff] %v1880
      %1897 = vst [vmem:[#allocation2 + $0x50] sm:$0xff] %v1881
      %1898 = vst [vmem:[#allocation2 + $0x58] sm:$0xff] %v1882
      %1899 = vst [vmem:[#allocation2 + $0x60] sm:$0xff] %v1883
      %1900 = vst [vmem:[#allocation2 + $0x68] sm:$0xff] %v1884
      %1901 = vst [vmem:[#allocation2 + $0x70] sm:$0xff] %v1885
      %1902 = vst [vmem:[#allocation2 + $0x78] sm:$0xff] %v1886
      %1903 = vst [vmem:[#allocation2 + $0x80] sm:$0xff] %v1887
      %1904 = vst [vmem:[#allocation2 + $0x88] sm:$0xff] %v1888
      %1905 = vst [vmem:[#allocation2 + $0x90] sm:$0xff] %v1889
      %v1906 = vld [vmem:[#allocation2 + $0x7] sm:$0xff]
      %v1907 = vld [vmem:[#allocation2 + $0xf] sm:$0xff]
      %v1908 = vld [vmem:[#allocation2 + $0x17] sm:$0xff]
      %v1909 = vld [vmem:[#allocation2 + $0x1f] sm:$0xff]
      %v1910 = vld [vmem:[#allocation2 + $0x27] sm:$0xff]
      %v1911 = vld [vmem:[#allocation2 + $0x2f] sm:$0xff]
      %v1912 = vld [vmem:[#allocation2 + $0x37] sm:$0xff]
      %v1913 = vld [vmem:[#allocation2 + $0x3f] sm:$0xff]
      %v1914 = vld [vmem:[#allocation2 + $0x47] sm:$0xff]
      %v1915 = vld [vmem:[#allocation2 + $0x4f] sm:$0xff]
      %v1916 = vld [vmem:[#allocation2 + $0x57] sm:$0xff]
      %v1917 = vld [vmem:[#allocation2 + $0x5f] sm:$0xff]
      %v1918 = vld [vmem:[#allocation2 + $0x67] sm:$0xff]
      %v1919 = vld [vmem:[#allocation2 + $0x6f] sm:$0xff]
      %v1920 = vld [vmem:[#allocation2 + $0x77] sm:$0xff]
      %v1921 = vld [vmem:[#allocation2 + $0x7f] sm:$0xff]
      %v1922 = vld [vmem:[#allocation2 + $0x87] sm:$0xff]
      %v1923 = vld [vmem:[#allocation2 + $0x8f] sm:$0xff]
      %v1924 = vld [vmem:[#allocation2 + $0x97] sm:$0xff]
      %v1925 = vld [vmem:[#allocation2 + $0x9f] sm:$0xff]
      %v1926 = vpack.c.bf16 %v1906, %v1906
      %v1927 = vpack.c.bf16 %v1907, %v1907
      %v1928 = vpack.c.bf16 %v1908, %v1908
      %v1929 = vpack.c.bf16 %v1909, %v1909
      %v1930 = vpack.c.bf16 %v1910, %v1910
      %v1931 = vpack.c.bf16 %v1911, %v1911
      %v1932 = vpack.c.bf16 %v1912, %v1912
      %v1933 = vpack.c.bf16 %v1913, %v1913
      %v1934 = vpack.c.bf16 %v1914, %v1914
      %v1935 = vpack.c.bf16 %v1915, %v1915
      %v1936 = vpack.c.bf16 %v1916, %v1916
      %v1937 = vpack.c.bf16 %v1917, %v1917
      %v1938 = vpack.c.bf16 %v1918, %v1918
      %v1939 = vpack.c.bf16 %v1919, %v1919
      %v1940 = vpack.c.bf16 %v1920, %v1920
      %v1941 = vpack.c.bf16 %v1921, %v1921
      %v1942 = vpack.c.bf16 %v1922, %v1922
      %v1943 = vpack.c.bf16 %v1923, %v1923
      %v1944 = vpack.c.bf16 %v1924, %v1924
      %v1945 = vpack.c.bf16 %v1925, %v1925
      %v1946 = vld [vmem:[%s3] sm:$0xf]
      %v1947 = vld [vmem:[%s3 + $0x4] sm:$0xf]
      %v1948 = vld [vmem:[%s3 + $0x8] sm:$0xf]
      %v1949 = vld [vmem:[%s3 + $0xc] sm:$0xf]
      %v1950 = vld [vmem:[%s3 + $0x10] sm:$0xf]
      %v1951 = vld [vmem:[%s3 + $0x14] sm:$0xf]
      %v1952 = vld [vmem:[%s3 + $0x18] sm:$0xf]
      %v1953 = vld [vmem:[%s3 + $0x1c] sm:$0xf]
      %v1954 = vld [vmem:[%s3 + $0x20] sm:$0xf]
      %v1955 = vld [vmem:[%s3 + $0x24] sm:$0xf]
      %v1956 = vld [vmem:[%s3 + $0x28] sm:$0xf]
      %v1957 = vld [vmem:[%s3 + $0x2c] sm:$0xf]
      %v1958 = vld [vmem:[%s3 + $0x30] sm:$0xf]
      %v1959 = vld [vmem:[%s3 + $0x34] sm:$0xf]
      %v1960 = vld [vmem:[%s3 + $0x38] sm:$0xf]
      %v1961 = vld [vmem:[%s3 + $0x3c] sm:$0xf]
      %s1962 = scalar_lea.vmem %s3, 192
      %v1963 = vld [vmem:[%s1962] sm:$0xf]
      %v1964 = vld [vmem:[%s1962 + $0x4] sm:$0xf]
      %v1965 = vld [vmem:[%s1962 + $0x8] sm:$0xf]
      %v1966 = vld [vmem:[%s1962 + $0xc] sm:$0xf]
      %v1967 = vld [vmem:[%s1962 + $0x10] sm:$0xf]
      %v1968 = vld [vmem:[%s1962 + $0x14] sm:$0xf]
      %v1969 = vld [vmem:[%s1962 + $0x18] sm:$0xf]
      %v1970 = vld [vmem:[%s1962 + $0x1c] sm:$0xf]
      %v1971 = vld [vmem:[%s1962 + $0x20] sm:$0xf]
      %v1972 = vld [vmem:[%s1962 + $0x24] sm:$0xf]
      %v1973 = vld [vmem:[%s1962 + $0x28] sm:$0xf]
      %v1974 = vld [vmem:[%s1962 + $0x2c] sm:$0xf]
      %v1975 = vld [vmem:[%s1962 + $0x30] sm:$0xf]
      %v1976 = vld [vmem:[%s1962 + $0x34] sm:$0xf]
      %v1977 = vld [vmem:[%s1962 + $0x38] sm:$0xf]
      %v1978 = vld [vmem:[%s1962 + $0x3c] sm:$0xf]
      %v1995 = vunpack.c.l.b16 %v1928
      %v1996 = vunpack.c.l.b16 %v1929
      %v1997 = vunpack.c.l.b16 %v1930
      %v1998 = vunpack.c.l.b16 %v1931
      %v1999 = vunpack.c.l.b16 %v1932
      %v2000 = vunpack.c.l.b16 %v1933
      %v2001 = vunpack.c.l.b16 %v1934
      %v2002 = vunpack.c.l.b16 %v1935
      %v2003 = vunpack.c.l.b16 %v1936
      %v2004 = vunpack.c.l.b16 %v1937
      %v2005 = vunpack.c.l.b16 %v1938
      %v2006 = vunpack.c.l.b16 %v1939
      %v2007 = vunpack.c.l.b16 %v1940
      %v2008 = vunpack.c.l.b16 %v1941
      %v2009 = vunpack.c.l.b16 %v1942
      %v2010 = vunpack.c.l.b16 %v1943
      %v2011 = vpack.c.b16 %v1996, %v1995
      %v2012 = vpack.c.b16 %v1998, %v1997
      %v2013 = vpack.c.b16 %v2000, %v1999
      %v2014 = vpack.c.b16 %v2002, %v2001
      %v2015 = vpack.c.b16 %v2004, %v2003
      %v2016 = vpack.c.b16 %v2006, %v2005
      %v2017 = vpack.c.b16 %v2008, %v2007
      %v2018 = vpack.c.b16 %v2010, %v2009
      %v2043 = vunpack.c.l.b16 %v1963
      %v2044 = vunpack.c.l.b16 %v1964
      %v2045 = vunpack.c.l.b16 %v1965
      %v2046 = vunpack.c.l.b16 %v1966
      %v2047 = vunpack.c.l.b16 %v1967
      %v2048 = vunpack.c.l.b16 %v1968
      %v2049 = vunpack.c.l.b16 %v1969
      %v2050 = vunpack.c.l.b16 %v1970
      %v2051 = vunpack.c.l.b16 %v1971
      %v2052 = vunpack.c.l.b16 %v1972
      %v2053 = vunpack.c.l.b16 %v1973
      %v2054 = vunpack.c.l.b16 %v1974
      %v2055 = vunpack.c.l.b16 %v1975
      %v2056 = vunpack.c.l.b16 %v1976
      %v2057 = vunpack.c.l.b16 %v1977
      %v2058 = vunpack.c.l.b16 %v1978
      %v2059 = vpack.c.b16 %v2044, %v2043
      %v2060 = vpack.c.b16 %v2046, %v2045
      %v2061 = vpack.c.b16 %v2048, %v2047
      %v2062 = vpack.c.b16 %v2050, %v2049
      %v2063 = vpack.c.b16 %v2052, %v2051
      %v2064 = vpack.c.b16 %v2054, %v2053
      %v2065 = vpack.c.b16 %v2056, %v2055
      %v2066 = vpack.c.b16 %v2058, %v2057
      %2075 = vmatpush.bf16.msra.mxu0 %v2066
      %2076 = vmatpush.bf16.msra.mxu0 %v2065
      %2077 = vmatpush.bf16.msra.mxu0 %v2064
      %2078 = vmatpush.bf16.msra.mxu0 %v2063
      %2079 = vmatpush.bf16.msra.mxu0 %v2062
      %2080 = vmatpush.bf16.msra.mxu0 %v2061
      %2081 = vmatpush.bf16.msra.mxu0 %v2060
      %2082 = vmatpush.bf16.msra.mxu0 %v2059
      %2083 = vmatmul.bf16.gmra.mxu0 %v2011
      %v2084 = vpop.f32.mrf.mxu0
      %v2085 = vadd.f32 0.0, %v2084
      %v2086 = vpop.f32.mrf.mxu0
      %v2087 = vadd.f32 0.0, %v2086
      %2088 = vmatmul.bf16.gmra.mxu0 %v2012
      %v2089 = vpop.f32.mrf.mxu0
      %v2090 = vadd.f32 0.0, %v2089
      %v2091 = vpop.f32.mrf.mxu0
      %v2092 = vadd.f32 0.0, %v2091
      %2093 = vmatmul.bf16.gmra.mxu0 %v2013
      %v2094 = vpop.f32.mrf.mxu0
      %v2095 = vadd.f32 0.0, %v2094
      %v2096 = vpop.f32.mrf.mxu0
      %v2097 = vadd.f32 0.0, %v2096
      %2098 = vmatmul.bf16.gmra.mxu0 %v2014
      %v2099 = vpop.f32.mrf.mxu0
      %v2100 = vadd.f32 0.0, %v2099
      %v2101 = vpop.f32.mrf.mxu0
      %v2102 = vadd.f32 0.0, %v2101
      %2103 = vmatmul.bf16.gmra.mxu0 %v2015
      %v2104 = vpop.f32.mrf.mxu0
      %v2105 = vadd.f32 0.0, %v2104
      %v2106 = vpop.f32.mrf.mxu0
      %v2107 = vadd.f32 0.0, %v2106
      %2108 = vmatmul.bf16.gmra.mxu0 %v2016
      %v2109 = vpop.f32.mrf.mxu0
      %v2110 = vadd.f32 0.0, %v2109
      %v2111 = vpop.f32.mrf.mxu0
      %v2112 = vadd.f32 0.0, %v2111
      %2113 = vmatmul.bf16.gmra.mxu0 %v2017
      %v2114 = vpop.f32.mrf.mxu0
      %v2115 = vadd.f32 0.0, %v2114
      %v2116 = vpop.f32.mrf.mxu0
      %v2117 = vadd.f32 0.0, %v2116
      %2118 = vmatmul.bf16.gmra.mxu0 %v2018
      %v2119 = vpop.f32.mrf.mxu0
      %v2120 = vadd.f32 0.0, %v2119
      %v2121 = vpop.f32.mrf.mxu0
      %v2122 = vadd.f32 0.0, %v2121
      %2123 = vdwg.mxu0
      %v2126 = vunpack.c.l.b16 %v1926
      %v2127 = vunpack.c.l.b16 %v1927
      %v2128 = vpack.c.b16 %v2127, %v2126
      %v2146 = vunpack.c.l.b16 %v1946
      %v2147 = vunpack.c.l.b16 %v1947
      %v2148 = vunpack.c.l.b16 %v1948
      %v2149 = vunpack.c.l.b16 %v1949
      %v2150 = vunpack.c.l.b16 %v1950
      %v2151 = vunpack.c.l.b16 %v1951
      %v2152 = vunpack.c.l.b16 %v1952
      %v2153 = vunpack.c.l.b16 %v1953
      %v2154 = vunpack.c.l.b16 %v1954
      %v2155 = vunpack.c.l.b16 %v1955
      %v2156 = vunpack.c.l.b16 %v1956
      %v2157 = vunpack.c.l.b16 %v1957
      %v2158 = vunpack.c.l.b16 %v1958
      %v2159 = vunpack.c.l.b16 %v1959
      %v2160 = vunpack.c.l.b16 %v1960
      %v2161 = vunpack.c.l.b16 %v1961
      %v2162 = vpack.c.b16 %v2147, %v2146
      %v2163 = vpack.c.b16 %v2149, %v2148
      %v2164 = vpack.c.b16 %v2151, %v2150
      %v2165 = vpack.c.b16 %v2153, %v2152
      %v2166 = vpack.c.b16 %v2155, %v2154
      %v2167 = vpack.c.b16 %v2157, %v2156
      %v2168 = vpack.c.b16 %v2159, %v2158
      %v2169 = vpack.c.b16 %v2161, %v2160
      %2178 = vmatpush.bf16.msra.mxu0 %v2169
      %2179 = vmatpush.bf16.msra.mxu0 %v2168
      %2180 = vmatpush.bf16.msra.mxu0 %v2167
      %2181 = vmatpush.bf16.msra.mxu0 %v2166
      %2182 = vmatpush.bf16.msra.mxu0 %v2165
      %2183 = vmatpush.bf16.msra.mxu0 %v2164
      %2184 = vmatpush.bf16.msra.mxu0 %v2163
      %2185 = vmatpush.bf16.msra.mxu0 %v2162
      %2186 = vmatmul.bf16.gmra.mxu0 %v2128
      %v2187 = vpop.f32.mrf.mxu0
      %v2188 = vadd.f32 %v2085, %v2187
      %v2189 = vpop.f32.mrf.mxu0
      %v2190 = vadd.f32 %v2087, %v2189
      %2191 = vmatmul.bf16.gmra.mxu0 %v2011
      %v2192 = vpop.f32.mrf.mxu0
      %v2193 = vadd.f32 %v2090, %v2192
      %v2194 = vpop.f32.mrf.mxu0
      %v2195 = vadd.f32 %v2092, %v2194
      %2196 = vmatmul.bf16.gmra.mxu0 %v2012
      %v2197 = vpop.f32.mrf.mxu0
      %v2198 = vadd.f32 %v2095, %v2197
      %v2199 = vpop.f32.mrf.mxu0
      %v2200 = vadd.f32 %v2097, %v2199
      %2201 = vmatmul.bf16.gmra.mxu0 %v2013
      %v2202 = vpop.f32.mrf.mxu0
      %v2203 = vadd.f32 %v2100, %v2202
      %v2204 = vpop.f32.mrf.mxu0
      %v2205 = vadd.f32 %v2102, %v2204
      %2206 = vmatmul.bf16.gmra.mxu0 %v2014
      %v2207 = vpop.f32.mrf.mxu0
      %v2208 = vadd.f32 %v2105, %v2207
      %v2209 = vpop.f32.mrf.mxu0
      %v2210 = vadd.f32 %v2107, %v2209
      %2211 = vmatmul.bf16.gmra.mxu0 %v2015
      %v2212 = vpop.f32.mrf.mxu0
      %v2213 = vadd.f32 %v2110, %v2212
      %v2214 = vpop.f32.mrf.mxu0
      %v2215 = vadd.f32 %v2112, %v2214
      %2216 = vmatmul.bf16.gmra.mxu0 %v2016
      %v2217 = vpop.f32.mrf.mxu0
      %v2218 = vadd.f32 %v2115, %v2217
      %v2219 = vpop.f32.mrf.mxu0
      %v2220 = vadd.f32 %v2117, %v2219
      %2221 = vmatmul.bf16.gmra.mxu0 %v2017
      %v2222 = vpop.f32.mrf.mxu0
      %v2223 = vadd.f32 %v2120, %v2222
      %v2224 = vpop.f32.mrf.mxu0
      %v2225 = vadd.f32 %v2122, %v2224
      %2226 = vdwg.mxu0
      %s2227 = scalar_lea.vmem %s3, 384
      %v2228 = vld [vmem:[%s2227] sm:$0xf]
      %v2229 = vld [vmem:[%s2227 + $0x4] sm:$0xf]
      %v2230 = vld [vmem:[%s2227 + $0x8] sm:$0xf]
      %v2231 = vld [vmem:[%s2227 + $0xc] sm:$0xf]
      %v2232 = vld [vmem:[%s2227 + $0x10] sm:$0xf]
      %v2233 = vld [vmem:[%s2227 + $0x14] sm:$0xf]
      %v2234 = vld [vmem:[%s2227 + $0x18] sm:$0xf]
      %v2235 = vld [vmem:[%s2227 + $0x1c] sm:$0xf]
      %v2236 = vld [vmem:[%s2227 + $0x20] sm:$0xf]
      %v2237 = vld [vmem:[%s2227 + $0x24] sm:$0xf]
      %v2238 = vld [vmem:[%s2227 + $0x28] sm:$0xf]
      %v2239 = vld [vmem:[%s2227 + $0x2c] sm:$0xf]
      %v2240 = vld [vmem:[%s2227 + $0x30] sm:$0xf]
      %v2241 = vld [vmem:[%s2227 + $0x34] sm:$0xf]
      %v2242 = vld [vmem:[%s2227 + $0x38] sm:$0xf]
      %v2243 = vld [vmem:[%s2227 + $0x3c] sm:$0xf]
      %v2246 = vunpack.c.l.b16 %v1944
      %v2247 = vunpack.c.l.b16 %v1945
      %v2248 = vpack.c.b16 %v2247, %v2246
      %v2266 = vunpack.c.l.b16 %v2228
      %v2267 = vunpack.c.l.b16 %v2229
      %v2268 = vunpack.c.l.b16 %v2230
      %v2269 = vunpack.c.l.b16 %v2231
      %v2270 = vunpack.c.l.b16 %v2232
      %v2271 = vunpack.c.l.b16 %v2233
      %v2272 = vunpack.c.l.b16 %v2234
      %v2273 = vunpack.c.l.b16 %v2235
      %v2274 = vunpack.c.l.b16 %v2236
      %v2275 = vunpack.c.l.b16 %v2237
      %v2276 = vunpack.c.l.b16 %v2238
      %v2277 = vunpack.c.l.b16 %v2239
      %v2278 = vunpack.c.l.b16 %v2240
      %v2279 = vunpack.c.l.b16 %v2241
      %v2280 = vunpack.c.l.b16 %v2242
      %v2281 = vunpack.c.l.b16 %v2243
      %v2282 = vpack.c.b16 %v2267, %v2266
      %v2283 = vpack.c.b16 %v2269, %v2268
      %v2284 = vpack.c.b16 %v2271, %v2270
      %v2285 = vpack.c.b16 %v2273, %v2272
      %v2286 = vpack.c.b16 %v2275, %v2274
      %v2287 = vpack.c.b16 %v2277, %v2276
      %v2288 = vpack.c.b16 %v2279, %v2278
      %v2289 = vpack.c.b16 %v2281, %v2280
      %2298 = vmatpush.bf16.msra.mxu0 %v2289
      %2299 = vmatpush.bf16.msra.mxu0 %v2288
      %2300 = vmatpush.bf16.msra.mxu0 %v2287
      %2301 = vmatpush.bf16.msra.mxu0 %v2286
      %2302 = vmatpush.bf16.msra.mxu0 %v2285
      %2303 = vmatpush.bf16.msra.mxu0 %v2284
      %2304 = vmatpush.bf16.msra.mxu0 %v2283
      %2305 = vmatpush.bf16.msra.mxu0 %v2282
      %2306 = vmatmul.bf16.gmra.mxu0 %v2012
      %v2307 = vpop.f32.mrf.mxu0
      %v2308 = vadd.f32 0.0, %v2307
      %v2309 = vpop.f32.mrf.mxu0
      %v2310 = vadd.f32 0.0, %v2309
      %2311 = vmatmul.bf16.gmra.mxu0 %v2013
      %v2312 = vpop.f32.mrf.mxu0
      %v2313 = vadd.f32 0.0, %v2312
      %v2314 = vpop.f32.mrf.mxu0
      %v2315 = vadd.f32 0.0, %v2314
      %2316 = vmatmul.bf16.gmra.mxu0 %v2014
      %v2317 = vpop.f32.mrf.mxu0
      %v2318 = vadd.f32 0.0, %v2317
      %v2319 = vpop.f32.mrf.mxu0
      %v2320 = vadd.f32 0.0, %v2319
      %2321 = vmatmul.bf16.gmra.mxu0 %v2015
      %v2322 = vpop.f32.mrf.mxu0
      %v2323 = vadd.f32 0.0, %v2322
      %v2324 = vpop.f32.mrf.mxu0
      %v2325 = vadd.f32 0.0, %v2324
      %2326 = vmatmul.bf16.gmra.mxu0 %v2016
      %v2327 = vpop.f32.mrf.mxu0
      %v2328 = vadd.f32 0.0, %v2327
      %v2329 = vpop.f32.mrf.mxu0
      %v2330 = vadd.f32 0.0, %v2329
      %2331 = vmatmul.bf16.gmra.mxu0 %v2017
      %v2332 = vpop.f32.mrf.mxu0
      %v2333 = vadd.f32 0.0, %v2332
      %v2334 = vpop.f32.mrf.mxu0
      %v2335 = vadd.f32 0.0, %v2334
      %2336 = vmatmul.bf16.gmra.mxu0 %v2018
      %v2337 = vpop.f32.mrf.mxu0
      %v2338 = vadd.f32 0.0, %v2337
      %v2339 = vpop.f32.mrf.mxu0
      %v2340 = vadd.f32 0.0, %v2339
      %2341 = vmatmul.bf16.gmra.mxu0 %v2248
      %v2342 = vpop.f32.mrf.mxu0
      %v2343 = vadd.f32 0.0, %v2342
      %v2344 = vpop.f32.mrf.mxu0
      %v2345 = vadd.f32 0.0, %v2344
      %2346 = vdwg.mxu0
      %v2347 = vadd.f32 %v2188, %v2308
      %v2348 = vadd.f32 %v2190, %v2310
      %v2349 = vadd.f32 %v2193, %v2313
      %v2350 = vadd.f32 %v2195, %v2315
      %v2351 = vadd.f32 %v2198, %v2318
      %v2352 = vadd.f32 %v2200, %v2320
      %v2353 = vadd.f32 %v2203, %v2323
      %v2354 = vadd.f32 %v2205, %v2325
      %v2355 = vadd.f32 %v2208, %v2328
      %v2356 = vadd.f32 %v2210, %v2330
      %v2357 = vadd.f32 %v2213, %v2333
      %v2358 = vadd.f32 %v2215, %v2335
      %v2359 = vadd.f32 %v2218, %v2338
      %v2360 = vadd.f32 %v2220, %v2340
      %v2361 = vadd.f32 %v2223, %v2343
      %v2362 = vadd.f32 %v2225, %v2345
      %v2363 = vld [vmem:[#allocation2 + $0x8] sm:$0xff]
      %v2364 = vld [vmem:[#allocation2 + $0x10] sm:$0xff]
      %v2365 = vld [vmem:[#allocation2 + $0x18] sm:$0xff]
      %v2366 = vld [vmem:[#allocation2 + $0x20] sm:$0xff]
      %v2367 = vld [vmem:[#allocation2 + $0x28] sm:$0xff]
      %v2368 = vld [vmem:[#allocation2 + $0x30] sm:$0xff]
      %v2369 = vld [vmem:[#allocation2 + $0x38] sm:$0xff]
      %v2370 = vld [vmem:[#allocation2 + $0x40] sm:$0xff]
      %v2371 = vld [vmem:[#allocation2 + $0x48] sm:$0xff]
      %v2372 = vld [vmem:[#allocation2 + $0x50] sm:$0xff]
      %v2373 = vld [vmem:[#allocation2 + $0x58] sm:$0xff]
      %v2374 = vld [vmem:[#allocation2 + $0x60] sm:$0xff]
      %v2375 = vld [vmem:[#allocation2 + $0x68] sm:$0xff]
      %v2376 = vld [vmem:[#allocation2 + $0x70] sm:$0xff]
      %v2377 = vld [vmem:[#allocation2 + $0x78] sm:$0xff]
      %v2378 = vld [vmem:[#allocation2 + $0x80] sm:$0xff]
      %v2379 = vld [vmem:[#allocation2 + $0x88] sm:$0xff]
      %v2380 = vld [vmem:[#allocation2 + $0x90] sm:$0xff]
      %v2381 = vld [vmem:[#allocation2 + $0x98] sm:$0xff]
      %v2382 = vld [vmem:[#allocation2 + $0xa0] sm:$0xff]
      %v2383 = vpack.c.bf16 %v2363, %v2363
      %v2384 = vpack.c.bf16 %v2364, %v2364
      %v2385 = vpack.c.bf16 %v2365, %v2365
      %v2386 = vpack.c.bf16 %v2366, %v2366
      %v2387 = vpack.c.bf16 %v2367, %v2367
      %v2388 = vpack.c.bf16 %v2368, %v2368
      %v2389 = vpack.c.bf16 %v2369, %v2369
      %v2390 = vpack.c.bf16 %v2370, %v2370
      %v2391 = vpack.c.bf16 %v2371, %v2371
      %v2392 = vpack.c.bf16 %v2372, %v2372
      %v2393 = vpack.c.bf16 %v2373, %v2373
      %v2394 = vpack.c.bf16 %v2374, %v2374
      %v2395 = vpack.c.bf16 %v2375, %v2375
      %v2396 = vpack.c.bf16 %v2376, %v2376
      %v2397 = vpack.c.bf16 %v2377, %v2377
      %v2398 = vpack.c.bf16 %v2378, %v2378
      %v2399 = vpack.c.bf16 %v2379, %v2379
      %v2400 = vpack.c.bf16 %v2380, %v2380
      %v2401 = vpack.c.bf16 %v2381, %v2381
      %v2402 = vpack.c.bf16 %v2382, %v2382
      %s2403 = scalar_lea.vmem %s3, 64
      %v2404 = vld [vmem:[%s2403] sm:$0xf]
      %v2405 = vld [vmem:[%s2403 + $0x4] sm:$0xf]
      %v2406 = vld [vmem:[%s2403 + $0x8] sm:$0xf]
      %v2407 = vld [vmem:[%s2403 + $0xc] sm:$0xf]
      %v2408 = vld [vmem:[%s2403 + $0x10] sm:$0xf]
      %v2409 = vld [vmem:[%s2403 + $0x14] sm:$0xf]
      %v2410 = vld [vmem:[%s2403 + $0x18] sm:$0xf]
      %v2411 = vld [vmem:[%s2403 + $0x1c] sm:$0xf]
      %v2412 = vld [vmem:[%s2403 + $0x20] sm:$0xf]
      %v2413 = vld [vmem:[%s2403 + $0x24] sm:$0xf]
      %v2414 = vld [vmem:[%s2403 + $0x28] sm:$0xf]
      %v2415 = vld [vmem:[%s2403 + $0x2c] sm:$0xf]
      %v2416 = vld [vmem:[%s2403 + $0x30] sm:$0xf]
      %v2417 = vld [vmem:[%s2403 + $0x34] sm:$0xf]
      %v2418 = vld [vmem:[%s2403 + $0x38] sm:$0xf]
      %v2419 = vld [vmem:[%s2403 + $0x3c] sm:$0xf]
      %v2436 = vunpack.c.l.b16 %v2383
      %v2437 = vunpack.c.l.b16 %v2384
      %v2438 = vunpack.c.l.b16 %v2385
      %v2439 = vunpack.c.l.b16 %v2386
      %v2440 = vunpack.c.l.b16 %v2387
      %v2441 = vunpack.c.l.b16 %v2388
      %v2442 = vunpack.c.l.b16 %v2389
      %v2443 = vunpack.c.l.b16 %v2390
      %v2444 = vunpack.c.l.b16 %v2391
      %v2445 = vunpack.c.l.b16 %v2392
      %v2446 = vunpack.c.l.b16 %v2393
      %v2447 = vunpack.c.l.b16 %v2394
      %v2448 = vunpack.c.l.b16 %v2395
      %v2449 = vunpack.c.l.b16 %v2396
      %v2450 = vunpack.c.l.b16 %v2397
      %v2451 = vunpack.c.l.b16 %v2398
      %v2452 = vpack.c.b16 %v2437, %v2436
      %v2453 = vpack.c.b16 %v2439, %v2438
      %v2454 = vpack.c.b16 %v2441, %v2440
      %v2455 = vpack.c.b16 %v2443, %v2442
      %v2456 = vpack.c.b16 %v2445, %v2444
      %v2457 = vpack.c.b16 %v2447, %v2446
      %v2458 = vpack.c.b16 %v2449, %v2448
      %v2459 = vpack.c.b16 %v2451, %v2450
      %v2484 = vunpack.c.l.b16 %v2404
      %v2485 = vunpack.c.l.b16 %v2405
      %v2486 = vunpack.c.l.b16 %v2406
      %v2487 = vunpack.c.l.b16 %v2407
      %v2488 = vunpack.c.l.b16 %v2408
      %v2489 = vunpack.c.l.b16 %v2409
      %v2490 = vunpack.c.l.b16 %v2410
      %v2491 = vunpack.c.l.b16 %v2411
      %v2492 = vunpack.c.l.b16 %v2412
      %v2493 = vunpack.c.l.b16 %v2413
      %v2494 = vunpack.c.l.b16 %v2414
      %v2495 = vunpack.c.l.b16 %v2415
      %v2496 = vunpack.c.l.b16 %v2416
      %v2497 = vunpack.c.l.b16 %v2417
      %v2498 = vunpack.c.l.b16 %v2418
      %v2499 = vunpack.c.l.b16 %v2419
      %v2500 = vpack.c.b16 %v2485, %v2484
      %v2501 = vpack.c.b16 %v2487, %v2486
      %v2502 = vpack.c.b16 %v2489, %v2488
      %v2503 = vpack.c.b16 %v2491, %v2490
      %v2504 = vpack.c.b16 %v2493, %v2492
      %v2505 = vpack.c.b16 %v2495, %v2494
      %v2506 = vpack.c.b16 %v2497, %v2496
      %v2507 = vpack.c.b16 %v2499, %v2498
      %2516 = vmatpush.bf16.msra.mxu0 %v2507
      %2517 = vmatpush.bf16.msra.mxu0 %v2506
      %2518 = vmatpush.bf16.msra.mxu0 %v2505
      %2519 = vmatpush.bf16.msra.mxu0 %v2504
      %2520 = vmatpush.bf16.msra.mxu0 %v2503
      %2521 = vmatpush.bf16.msra.mxu0 %v2502
      %2522 = vmatpush.bf16.msra.mxu0 %v2501
      %2523 = vmatpush.bf16.msra.mxu0 %v2500
      %2524 = vmatmul.bf16.gmra.mxu0 %v2452
      %v2525 = vpop.f32.mrf.mxu0
      %v2526 = vadd.f32 0.0, %v2525
      %v2527 = vpop.f32.mrf.mxu0
      %v2528 = vadd.f32 0.0, %v2527
      %2529 = vmatmul.bf16.gmra.mxu0 %v2453
      %v2530 = vpop.f32.mrf.mxu0
      %v2531 = vadd.f32 0.0, %v2530
      %v2532 = vpop.f32.mrf.mxu0
      %v2533 = vadd.f32 0.0, %v2532
      %2534 = vmatmul.bf16.gmra.mxu0 %v2454
      %v2535 = vpop.f32.mrf.mxu0
      %v2536 = vadd.f32 0.0, %v2535
      %v2537 = vpop.f32.mrf.mxu0
      %v2538 = vadd.f32 0.0, %v2537
      %2539 = vmatmul.bf16.gmra.mxu0 %v2455
      %v2540 = vpop.f32.mrf.mxu0
      %v2541 = vadd.f32 0.0, %v2540
      %v2542 = vpop.f32.mrf.mxu0
      %v2543 = vadd.f32 0.0, %v2542
      %2544 = vmatmul.bf16.gmra.mxu0 %v2456
      %v2545 = vpop.f32.mrf.mxu0
      %v2546 = vadd.f32 0.0, %v2545
      %v2547 = vpop.f32.mrf.mxu0
      %v2548 = vadd.f32 0.0, %v2547
      %2549 = vmatmul.bf16.gmra.mxu0 %v2457
      %v2550 = vpop.f32.mrf.mxu0
      %v2551 = vadd.f32 0.0, %v2550
      %v2552 = vpop.f32.mrf.mxu0
      %v2553 = vadd.f32 0.0, %v2552
      %2554 = vmatmul.bf16.gmra.mxu0 %v2458
      %v2555 = vpop.f32.mrf.mxu0
      %v2556 = vadd.f32 0.0, %v2555
      %v2557 = vpop.f32.mrf.mxu0
      %v2558 = vadd.f32 0.0, %v2557
      %2559 = vmatmul.bf16.gmra.mxu0 %v2459
      %v2560 = vpop.f32.mrf.mxu0
      %v2561 = vadd.f32 0.0, %v2560
      %v2562 = vpop.f32.mrf.mxu0
      %v2563 = vadd.f32 0.0, %v2562
      %2564 = vdwg.mxu0
      %v2565 = vadd.f32 %v2347, %v2526
      %v2566 = vadd.f32 %v2348, %v2528
      %v2567 = vadd.f32 %v2349, %v2531
      %v2568 = vadd.f32 %v2350, %v2533
      %v2569 = vadd.f32 %v2351, %v2536
      %v2570 = vadd.f32 %v2352, %v2538
      %v2571 = vadd.f32 %v2353, %v2541
      %v2572 = vadd.f32 %v2354, %v2543
      %v2573 = vadd.f32 %v2355, %v2546
      %v2574 = vadd.f32 %v2356, %v2548
      %v2575 = vadd.f32 %v2357, %v2551
      %v2576 = vadd.f32 %v2358, %v2553
      %v2577 = vadd.f32 %v2359, %v2556
      %v2578 = vadd.f32 %v2360, %v2558
      %v2579 = vadd.f32 %v2361, %v2561
      %v2580 = vadd.f32 %v2362, %v2563
      %s2581 = scalar_lea.vmem %s3, 256
      %v2582 = vld [vmem:[%s2581] sm:$0xf]
      %v2583 = vld [vmem:[%s2581 + $0x4] sm:$0xf]
      %v2584 = vld [vmem:[%s2581 + $0x8] sm:$0xf]
      %v2585 = vld [vmem:[%s2581 + $0xc] sm:$0xf]
      %v2586 = vld [vmem:[%s2581 + $0x10] sm:$0xf]
      %v2587 = vld [vmem:[%s2581 + $0x14] sm:$0xf]
      %v2588 = vld [vmem:[%s2581 + $0x18] sm:$0xf]
      %v2589 = vld [vmem:[%s2581 + $0x1c] sm:$0xf]
      %v2590 = vld [vmem:[%s2581 + $0x20] sm:$0xf]
      %v2591 = vld [vmem:[%s2581 + $0x24] sm:$0xf]
      %v2592 = vld [vmem:[%s2581 + $0x28] sm:$0xf]
      %v2593 = vld [vmem:[%s2581 + $0x2c] sm:$0xf]
      %v2594 = vld [vmem:[%s2581 + $0x30] sm:$0xf]
      %v2595 = vld [vmem:[%s2581 + $0x34] sm:$0xf]
      %v2596 = vld [vmem:[%s2581 + $0x38] sm:$0xf]
      %v2597 = vld [vmem:[%s2581 + $0x3c] sm:$0xf]
      %v2600 = vunpack.c.l.b16 %v2399
      %v2601 = vunpack.c.l.b16 %v2400
      %v2602 = vpack.c.b16 %v2601, %v2600
      %v2620 = vunpack.c.l.b16 %v2582
      %v2621 = vunpack.c.l.b16 %v2583
      %v2622 = vunpack.c.l.b16 %v2584
      %v2623 = vunpack.c.l.b16 %v2585
      %v2624 = vunpack.c.l.b16 %v2586
      %v2625 = vunpack.c.l.b16 %v2587
      %v2626 = vunpack.c.l.b16 %v2588
      %v2627 = vunpack.c.l.b16 %v2589
      %v2628 = vunpack.c.l.b16 %v2590
      %v2629 = vunpack.c.l.b16 %v2591
      %v2630 = vunpack.c.l.b16 %v2592
      %v2631 = vunpack.c.l.b16 %v2593
      %v2632 = vunpack.c.l.b16 %v2594
      %v2633 = vunpack.c.l.b16 %v2595
      %v2634 = vunpack.c.l.b16 %v2596
      %v2635 = vunpack.c.l.b16 %v2597
      %v2636 = vpack.c.b16 %v2621, %v2620
      %v2637 = vpack.c.b16 %v2623, %v2622
      %v2638 = vpack.c.b16 %v2625, %v2624
      %v2639 = vpack.c.b16 %v2627, %v2626
      %v2640 = vpack.c.b16 %v2629, %v2628
      %v2641 = vpack.c.b16 %v2631, %v2630
      %v2642 = vpack.c.b16 %v2633, %v2632
      %v2643 = vpack.c.b16 %v2635, %v2634
      %2652 = vmatpush.bf16.msra.mxu0 %v2643
      %2653 = vmatpush.bf16.msra.mxu0 %v2642
      %2654 = vmatpush.bf16.msra.mxu0 %v2641
      %2655 = vmatpush.bf16.msra.mxu0 %v2640
      %2656 = vmatpush.bf16.msra.mxu0 %v2639
      %2657 = vmatpush.bf16.msra.mxu0 %v2638
      %2658 = vmatpush.bf16.msra.mxu0 %v2637
      %2659 = vmatpush.bf16.msra.mxu0 %v2636
      %2660 = vmatmul.bf16.gmra.mxu0 %v2453
      %v2661 = vpop.f32.mrf.mxu0
      %v2662 = vadd.f32 0.0, %v2661
      %v2663 = vpop.f32.mrf.mxu0
      %v2664 = vadd.f32 0.0, %v2663
      %2665 = vmatmul.bf16.gmra.mxu0 %v2454
      %v2666 = vpop.f32.mrf.mxu0
      %v2667 = vadd.f32 0.0, %v2666
      %v2668 = vpop.f32.mrf.mxu0
      %v2669 = vadd.f32 0.0, %v2668
      %2670 = vmatmul.bf16.gmra.mxu0 %v2455
      %v2671 = vpop.f32.mrf.mxu0
      %v2672 = vadd.f32 0.0, %v2671
      %v2673 = vpop.f32.mrf.mxu0
      %v2674 = vadd.f32 0.0, %v2673
      %2675 = vmatmul.bf16.gmra.mxu0 %v2456
      %v2676 = vpop.f32.mrf.mxu0
      %v2677 = vadd.f32 0.0, %v2676
      %v2678 = vpop.f32.mrf.mxu0
      %v2679 = vadd.f32 0.0, %v2678
      %2680 = vmatmul.bf16.gmra.mxu0 %v2457
      %v2681 = vpop.f32.mrf.mxu0
      %v2682 = vadd.f32 0.0, %v2681
      %v2683 = vpop.f32.mrf.mxu0
      %v2684 = vadd.f32 0.0, %v2683
      %2685 = vmatmul.bf16.gmra.mxu0 %v2458
      %v2686 = vpop.f32.mrf.mxu0
      %v2687 = vadd.f32 0.0, %v2686
      %v2688 = vpop.f32.mrf.mxu0
      %v2689 = vadd.f32 0.0, %v2688
      %2690 = vmatmul.bf16.gmra.mxu0 %v2459
      %v2691 = vpop.f32.mrf.mxu0
      %v2692 = vadd.f32 0.0, %v2691
      %v2693 = vpop.f32.mrf.mxu0
      %v2694 = vadd.f32 0.0, %v2693
      %2695 = vmatmul.bf16.gmra.mxu0 %v2602
      %v2696 = vpop.f32.mrf.mxu0
      %v2697 = vadd.f32 0.0, %v2696
      %v2698 = vpop.f32.mrf.mxu0
      %v2699 = vadd.f32 0.0, %v2698
      %2700 = vdwg.mxu0
      %v2701 = vadd.f32 %v2565, %v2662
      %v2702 = vadd.f32 %v2566, %v2664
      %v2703 = vadd.f32 %v2567, %v2667
      %v2704 = vadd.f32 %v2568, %v2669
      %v2705 = vadd.f32 %v2569, %v2672
      %v2706 = vadd.f32 %v2570, %v2674
      %v2707 = vadd.f32 %v2571, %v2677
      %v2708 = vadd.f32 %v2572, %v2679
      %v2709 = vadd.f32 %v2573, %v2682
      %v2710 = vadd.f32 %v2574, %v2684
      %v2711 = vadd.f32 %v2575, %v2687
      %v2712 = vadd.f32 %v2576, %v2689
      %v2713 = vadd.f32 %v2577, %v2692
      %v2714 = vadd.f32 %v2578, %v2694
      %v2715 = vadd.f32 %v2579, %v2697
      %v2716 = vadd.f32 %v2580, %v2699
      %s2717 = scalar_lea.vmem %s3, 448
      %v2718 = vld [vmem:[%s2717] sm:$0xf]
      %v2719 = vld [vmem:[%s2717 + $0x4] sm:$0xf]
      %v2720 = vld [vmem:[%s2717 + $0x8] sm:$0xf]
      %v2721 = vld [vmem:[%s2717 + $0xc] sm:$0xf]
      %v2722 = vld [vmem:[%s2717 + $0x10] sm:$0xf]
      %v2723 = vld [vmem:[%s2717 + $0x14] sm:$0xf]
      %v2724 = vld [vmem:[%s2717 + $0x18] sm:$0xf]
      %v2725 = vld [vmem:[%s2717 + $0x1c] sm:$0xf]
      %v2726 = vld [vmem:[%s2717 + $0x20] sm:$0xf]
      %v2727 = vld [vmem:[%s2717 + $0x24] sm:$0xf]
      %v2728 = vld [vmem:[%s2717 + $0x28] sm:$0xf]
      %v2729 = vld [vmem:[%s2717 + $0x2c] sm:$0xf]
      %v2730 = vld [vmem:[%s2717 + $0x30] sm:$0xf]
      %v2731 = vld [vmem:[%s2717 + $0x34] sm:$0xf]
      %v2732 = vld [vmem:[%s2717 + $0x38] sm:$0xf]
      %v2733 = vld [vmem:[%s2717 + $0x3c] sm:$0xf]
      %v2736 = vunpack.c.l.b16 %v2401
      %v2737 = vunpack.c.l.b16 %v2402
      %v2738 = vpack.c.b16 %v2737, %v2736
      %v2756 = vunpack.c.l.b16 %v2718
      %v2757 = vunpack.c.l.b16 %v2719
      %v2758 = vunpack.c.l.b16 %v2720
      %v2759 = vunpack.c.l.b16 %v2721
      %v2760 = vunpack.c.l.b16 %v2722
      %v2761 = vunpack.c.l.b16 %v2723
      %v2762 = vunpack.c.l.b16 %v2724
      %v2763 = vunpack.c.l.b16 %v2725
      %v2764 = vunpack.c.l.b16 %v2726
      %v2765 = vunpack.c.l.b16 %v2727
      %v2766 = vunpack.c.l.b16 %v2728
      %v2767 = vunpack.c.l.b16 %v2729
      %v2768 = vunpack.c.l.b16 %v2730
      %v2769 = vunpack.c.l.b16 %v2731
      %v2770 = vunpack.c.l.b16 %v2732
      %v2771 = vunpack.c.l.b16 %v2733
      %v2772 = vpack.c.b16 %v2757, %v2756
      %v2773 = vpack.c.b16 %v2759, %v2758
      %v2774 = vpack.c.b16 %v2761, %v2760
      %v2775 = vpack.c.b16 %v2763, %v2762
      %v2776 = vpack.c.b16 %v2765, %v2764
      %v2777 = vpack.c.b16 %v2767, %v2766
      %v2778 = vpack.c.b16 %v2769, %v2768
      %v2779 = vpack.c.b16 %v2771, %v2770
      %2788 = vmatpush.bf16.msra.mxu0 %v2779
      %2789 = vmatpush.bf16.msra.mxu0 %v2778
      %2790 = vmatpush.bf16.msra.mxu0 %v2777
      %2791 = vmatpush.bf16.msra.mxu0 %v2776
      %2792 = vmatpush.bf16.msra.mxu0 %v2775
      %2793 = vmatpush.bf16.msra.mxu0 %v2774
      %2794 = vmatpush.bf16.msra.mxu0 %v2773
      %2795 = vmatpush.bf16.msra.mxu0 %v2772
      %2796 = vmatmul.bf16.gmra.mxu0 %v2454
      %v2797 = vpop.f32.mrf.mxu0
      %v2798 = vadd.f32 0.0, %v2797
      %v2799 = vpop.f32.mrf.mxu0
      %v2800 = vadd.f32 0.0, %v2799
      %2801 = vmatmul.bf16.gmra.mxu0 %v2455
      %v2802 = vpop.f32.mrf.mxu0
      %v2803 = vadd.f32 0.0, %v2802
      %v2804 = vpop.f32.mrf.mxu0
      %v2805 = vadd.f32 0.0, %v2804
      %2806 = vmatmul.bf16.gmra.mxu0 %v2456
      %v2807 = vpop.f32.mrf.mxu0
      %v2808 = vadd.f32 0.0, %v2807
      %v2809 = vpop.f32.mrf.mxu0
      %v2810 = vadd.f32 0.0, %v2809
      %2811 = vmatmul.bf16.gmra.mxu0 %v2457
      %v2812 = vpop.f32.mrf.mxu0
      %v2813 = vadd.f32 0.0, %v2812
      %v2814 = vpop.f32.mrf.mxu0
      %v2815 = vadd.f32 0.0, %v2814
      %2816 = vmatmul.bf16.gmra.mxu0 %v2458
      %v2817 = vpop.f32.mrf.mxu0
      %v2818 = vadd.f32 0.0, %v2817
      %v2819 = vpop.f32.mrf.mxu0
      %v2820 = vadd.f32 0.0, %v2819
      %2821 = vmatmul.bf16.gmra.mxu0 %v2459
      %v2822 = vpop.f32.mrf.mxu0
      %v2823 = vadd.f32 0.0, %v2822
      %v2824 = vpop.f32.mrf.mxu0
      %v2825 = vadd.f32 0.0, %v2824
      %2826 = vmatmul.bf16.gmra.mxu0 %v2602
      %v2827 = vpop.f32.mrf.mxu0
      %v2828 = vadd.f32 0.0, %v2827
      %v2829 = vpop.f32.mrf.mxu0
      %v2830 = vadd.f32 0.0, %v2829
      %2831 = vmatmul.bf16.gmra.mxu0 %v2738
      %v2832 = vpop.f32.mrf.mxu0
      %v2833 = vadd.f32 0.0, %v2832
      %v2834 = vpop.f32.mrf.mxu0
      %v2835 = vadd.f32 0.0, %v2834
      %2836 = vdwg.mxu0
      %v2837 = vadd.f32 %v2701, %v2798
      %v2838 = vadd.f32 %v2702, %v2800
      %v2839 = vadd.f32 %v2703, %v2803
      %v2840 = vadd.f32 %v2704, %v2805
      %v2841 = vadd.f32 %v2705, %v2808
      %v2842 = vadd.f32 %v2706, %v2810
      %v2843 = vadd.f32 %v2707, %v2813
      %v2844 = vadd.f32 %v2708, %v2815
      %v2845 = vadd.f32 %v2709, %v2818
      %v2846 = vadd.f32 %v2710, %v2820
      %v2847 = vadd.f32 %v2711, %v2823
      %v2848 = vadd.f32 %v2712, %v2825
      %v2849 = vadd.f32 %v2713, %v2828
      %v2850 = vadd.f32 %v2714, %v2830
      %v2851 = vadd.f32 %v2715, %v2833
      %v2852 = vadd.f32 %v2716, %v2835
      %v2853 = vld [vmem:[#allocation2 + $0x9] sm:$0xff]
      %v2854 = vld [vmem:[#allocation2 + $0x11] sm:$0xff]
      %v2855 = vld [vmem:[#allocation2 + $0x19] sm:$0xff]
      %v2856 = vld [vmem:[#allocation2 + $0x21] sm:$0xff]
      %v2857 = vld [vmem:[#allocation2 + $0x29] sm:$0xff]
      %v2858 = vld [vmem:[#allocation2 + $0x31] sm:$0xff]
      %v2859 = vld [vmem:[#allocation2 + $0x39] sm:$0xff]
      %v2860 = vld [vmem:[#allocation2 + $0x41] sm:$0xff]
      %v2861 = vld [vmem:[#allocation2 + $0x49] sm:$0xff]
      %v2862 = vld [vmem:[#allocation2 + $0x51] sm:$0xff]
      %v2863 = vld [vmem:[#allocation2 + $0x59] sm:$0xff]
      %v2864 = vld [vmem:[#allocation2 + $0x61] sm:$0xff]
      %v2865 = vld [vmem:[#allocation2 + $0x69] sm:$0xff]
      %v2866 = vld [vmem:[#allocation2 + $0x71] sm:$0xff]
      %v2867 = vld [vmem:[#allocation2 + $0x79] sm:$0xff]
      %v2868 = vld [vmem:[#allocation2 + $0x81] sm:$0xff]
      %v2869 = vld [vmem:[#allocation2 + $0x89] sm:$0xff]
      %v2870 = vld [vmem:[#allocation2 + $0x91] sm:$0xff]
      %v2871 = vld [vmem:[#allocation2 + $0x99] sm:$0xff]
      %v2872 = vld [vmem:[#allocation2 + $0xa1] sm:$0xff]
      %v2873 = vpack.c.bf16 %v2853, %v2853
      %v2874 = vpack.c.bf16 %v2854, %v2854
      %v2875 = vpack.c.bf16 %v2855, %v2855
      %v2876 = vpack.c.bf16 %v2856, %v2856
      %v2877 = vpack.c.bf16 %v2857, %v2857
      %v2878 = vpack.c.bf16 %v2858, %v2858
      %v2879 = vpack.c.bf16 %v2859, %v2859
      %v2880 = vpack.c.bf16 %v2860, %v2860
      %v2881 = vpack.c.bf16 %v2861, %v2861
      %v2882 = vpack.c.bf16 %v2862, %v2862
      %v2883 = vpack.c.bf16 %v2863, %v2863
      %v2884 = vpack.c.bf16 %v2864, %v2864
      %v2885 = vpack.c.bf16 %v2865, %v2865
      %v2886 = vpack.c.bf16 %v2866, %v2866
      %v2887 = vpack.c.bf16 %v2867, %v2867
      %v2888 = vpack.c.bf16 %v2868, %v2868
      %v2889 = vpack.c.bf16 %v2869, %v2869
      %v2890 = vpack.c.bf16 %v2870, %v2870
      %v2891 = vpack.c.bf16 %v2871, %v2871
      %v2892 = vpack.c.bf16 %v2872, %v2872
      %s2893 = scalar_lea.vmem %s3, 128
      %v2894 = vld [vmem:[%s2893] sm:$0xf]
      %v2895 = vld [vmem:[%s2893 + $0x4] sm:$0xf]
      %v2896 = vld [vmem:[%s2893 + $0x8] sm:$0xf]
      %v2897 = vld [vmem:[%s2893 + $0xc] sm:$0xf]
      %v2898 = vld [vmem:[%s2893 + $0x10] sm:$0xf]
      %v2899 = vld [vmem:[%s2893 + $0x14] sm:$0xf]
      %v2900 = vld [vmem:[%s2893 + $0x18] sm:$0xf]
      %v2901 = vld [vmem:[%s2893 + $0x1c] sm:$0xf]
      %v2902 = vld [vmem:[%s2893 + $0x20] sm:$0xf]
      %v2903 = vld [vmem:[%s2893 + $0x24] sm:$0xf]
      %v2904 = vld [vmem:[%s2893 + $0x28] sm:$0xf]
      %v2905 = vld [vmem:[%s2893 + $0x2c] sm:$0xf]
      %v2906 = vld [vmem:[%s2893 + $0x30] sm:$0xf]
      %v2907 = vld [vmem:[%s2893 + $0x34] sm:$0xf]
      %v2908 = vld [vmem:[%s2893 + $0x38] sm:$0xf]
      %v2909 = vld [vmem:[%s2893 + $0x3c] sm:$0xf]
      %v2926 = vunpack.c.l.b16 %v2873
      %v2927 = vunpack.c.l.b16 %v2874
      %v2928 = vunpack.c.l.b16 %v2875
      %v2929 = vunpack.c.l.b16 %v2876
      %v2930 = vunpack.c.l.b16 %v2877
      %v2931 = vunpack.c.l.b16 %v2878
      %v2932 = vunpack.c.l.b16 %v2879
      %v2933 = vunpack.c.l.b16 %v2880
      %v2934 = vunpack.c.l.b16 %v2881
      %v2935 = vunpack.c.l.b16 %v2882
      %v2936 = vunpack.c.l.b16 %v2883
      %v2937 = vunpack.c.l.b16 %v2884
      %v2938 = vunpack.c.l.b16 %v2885
      %v2939 = vunpack.c.l.b16 %v2886
      %v2940 = vunpack.c.l.b16 %v2887
      %v2941 = vunpack.c.l.b16 %v2888
      %v2942 = vpack.c.b16 %v2927, %v2926
      %v2943 = vpack.c.b16 %v2929, %v2928
      %v2944 = vpack.c.b16 %v2931, %v2930
      %v2945 = vpack.c.b16 %v2933, %v2932
      %v2946 = vpack.c.b16 %v2935, %v2934
      %v2947 = vpack.c.b16 %v2937, %v2936
      %v2948 = vpack.c.b16 %v2939, %v2938
      %v2949 = vpack.c.b16 %v2941, %v2940
      %v2974 = vunpack.c.l.b16 %v2894
      %v2975 = vunpack.c.l.b16 %v2895
      %v2976 = vunpack.c.l.b16 %v2896
      %v2977 = vunpack.c.l.b16 %v2897
      %v2978 = vunpack.c.l.b16 %v2898
      %v2979 = vunpack.c.l.b16 %v2899
      %v2980 = vunpack.c.l.b16 %v2900
      %v2981 = vunpack.c.l.b16 %v2901
      %v2982 = vunpack.c.l.b16 %v2902
      %v2983 = vunpack.c.l.b16 %v2903
      %v2984 = vunpack.c.l.b16 %v2904
      %v2985 = vunpack.c.l.b16 %v2905
      %v2986 = vunpack.c.l.b16 %v2906
      %v2987 = vunpack.c.l.b16 %v2907
      %v2988 = vunpack.c.l.b16 %v2908
      %v2989 = vunpack.c.l.b16 %v2909
      %v2990 = vpack.c.b16 %v2975, %v2974
      %v2991 = vpack.c.b16 %v2977, %v2976
      %v2992 = vpack.c.b16 %v2979, %v2978
      %v2993 = vpack.c.b16 %v2981, %v2980
      %v2994 = vpack.c.b16 %v2983, %v2982
      %v2995 = vpack.c.b16 %v2985, %v2984
      %v2996 = vpack.c.b16 %v2987, %v2986
      %v2997 = vpack.c.b16 %v2989, %v2988
      %3006 = vmatpush.bf16.msra.mxu0 %v2997
      %3007 = vmatpush.bf16.msra.mxu0 %v2996
      %3008 = vmatpush.bf16.msra.mxu0 %v2995
      %3009 = vmatpush.bf16.msra.mxu0 %v2994
      %3010 = vmatpush.bf16.msra.mxu0 %v2993
      %3011 = vmatpush.bf16.msra.mxu0 %v2992
      %3012 = vmatpush.bf16.msra.mxu0 %v2991
      %3013 = vmatpush.bf16.msra.mxu0 %v2990
      %3014 = vmatmul.bf16.gmra.mxu0 %v2942
      %v3015 = vpop.f32.mrf.mxu0
      %v3016 = vadd.f32 0.0, %v3015
      %v3017 = vpop.f32.mrf.mxu0
      %v3018 = vadd.f32 0.0, %v3017
      %3019 = vmatmul.bf16.gmra.mxu0 %v2943
      %v3020 = vpop.f32.mrf.mxu0
      %v3021 = vadd.f32 0.0, %v3020
      %v3022 = vpop.f32.mrf.mxu0
      %v3023 = vadd.f32 0.0, %v3022
      %3024 = vmatmul.bf16.gmra.mxu0 %v2944
      %v3025 = vpop.f32.mrf.mxu0
      %v3026 = vadd.f32 0.0, %v3025
      %v3027 = vpop.f32.mrf.mxu0
      %v3028 = vadd.f32 0.0, %v3027
      %3029 = vmatmul.bf16.gmra.mxu0 %v2945
      %v3030 = vpop.f32.mrf.mxu0
      %v3031 = vadd.f32 0.0, %v3030
      %v3032 = vpop.f32.mrf.mxu0
      %v3033 = vadd.f32 0.0, %v3032
      %3034 = vmatmul.bf16.gmra.mxu0 %v2946
      %v3035 = vpop.f32.mrf.mxu0
      %v3036 = vadd.f32 0.0, %v3035
      %v3037 = vpop.f32.mrf.mxu0
      %v3038 = vadd.f32 0.0, %v3037
      %3039 = vmatmul.bf16.gmra.mxu0 %v2947
      %v3040 = vpop.f32.mrf.mxu0
      %v3041 = vadd.f32 0.0, %v3040
      %v3042 = vpop.f32.mrf.mxu0
      %v3043 = vadd.f32 0.0, %v3042
      %3044 = vmatmul.bf16.gmra.mxu0 %v2948
      %v3045 = vpop.f32.mrf.mxu0
      %v3046 = vadd.f32 0.0, %v3045
      %v3047 = vpop.f32.mrf.mxu0
      %v3048 = vadd.f32 0.0, %v3047
      %3049 = vmatmul.bf16.gmra.mxu0 %v2949
      %v3050 = vpop.f32.mrf.mxu0
      %v3051 = vadd.f32 0.0, %v3050
      %v3052 = vpop.f32.mrf.mxu0
      %v3053 = vadd.f32 0.0, %v3052
      %3054 = vdwg.mxu0
      %v3055 = vadd.f32 %v2837, %v3016
      %v3056 = vadd.f32 %v2838, %v3018
      %v3057 = vadd.f32 %v2839, %v3021
      %v3058 = vadd.f32 %v2840, %v3023
      %v3059 = vadd.f32 %v2841, %v3026
      %v3060 = vadd.f32 %v2842, %v3028
      %v3061 = vadd.f32 %v2843, %v3031
      %v3062 = vadd.f32 %v2844, %v3033
      %v3063 = vadd.f32 %v2845, %v3036
      %v3064 = vadd.f32 %v2846, %v3038
      %v3065 = vadd.f32 %v2847, %v3041
      %v3066 = vadd.f32 %v2848, %v3043
      %v3067 = vadd.f32 %v2849, %v3046
      %v3068 = vadd.f32 %v2850, %v3048
      %v3069 = vadd.f32 %v2851, %v3051
      %v3070 = vadd.f32 %v2852, %v3053
      %s3071 = scalar_lea.vmem %s3, 320
      %v3072 = vld [vmem:[%s3071] sm:$0xf]
      %v3073 = vld [vmem:[%s3071 + $0x4] sm:$0xf]
      %v3074 = vld [vmem:[%s3071 + $0x8] sm:$0xf]
      %v3075 = vld [vmem:[%s3071 + $0xc] sm:$0xf]
      %v3076 = vld [vmem:[%s3071 + $0x10] sm:$0xf]
      %v3077 = vld [vmem:[%s3071 + $0x14] sm:$0xf]
      %v3078 = vld [vmem:[%s3071 + $0x18] sm:$0xf]
      %v3079 = vld [vmem:[%s3071 + $0x1c] sm:$0xf]
      %v3080 = vld [vmem:[%s3071 + $0x20] sm:$0xf]
      %v3081 = vld [vmem:[%s3071 + $0x24] sm:$0xf]
      %v3082 = vld [vmem:[%s3071 + $0x28] sm:$0xf]
      %v3083 = vld [vmem:[%s3071 + $0x2c] sm:$0xf]
      %v3084 = vld [vmem:[%s3071 + $0x30] sm:$0xf]
      %v3085 = vld [vmem:[%s3071 + $0x34] sm:$0xf]
      %v3086 = vld [vmem:[%s3071 + $0x38] sm:$0xf]
      %v3087 = vld [vmem:[%s3071 + $0x3c] sm:$0xf]
      %v3090 = vunpack.c.l.b16 %v2889
      %v3091 = vunpack.c.l.b16 %v2890
      %v3092 = vpack.c.b16 %v3091, %v3090
      %v3110 = vunpack.c.l.b16 %v3072
      %v3111 = vunpack.c.l.b16 %v3073
      %v3112 = vunpack.c.l.b16 %v3074
      %v3113 = vunpack.c.l.b16 %v3075
      %v3114 = vunpack.c.l.b16 %v3076
      %v3115 = vunpack.c.l.b16 %v3077
      %v3116 = vunpack.c.l.b16 %v3078
      %v3117 = vunpack.c.l.b16 %v3079
      %v3118 = vunpack.c.l.b16 %v3080
      %v3119 = vunpack.c.l.b16 %v3081
      %v3120 = vunpack.c.l.b16 %v3082
      %v3121 = vunpack.c.l.b16 %v3083
      %v3122 = vunpack.c.l.b16 %v3084
      %v3123 = vunpack.c.l.b16 %v3085
      %v3124 = vunpack.c.l.b16 %v3086
      %v3125 = vunpack.c.l.b16 %v3087
      %v3126 = vpack.c.b16 %v3111, %v3110
      %v3127 = vpack.c.b16 %v3113, %v3112
      %v3128 = vpack.c.b16 %v3115, %v3114
      %v3129 = vpack.c.b16 %v3117, %v3116
      %v3130 = vpack.c.b16 %v3119, %v3118
      %v3131 = vpack.c.b16 %v3121, %v3120
      %v3132 = vpack.c.b16 %v3123, %v3122
      %v3133 = vpack.c.b16 %v3125, %v3124
      %3142 = vmatpush.bf16.msra.mxu0 %v3133
      %3143 = vmatpush.bf16.msra.mxu0 %v3132
      %3144 = vmatpush.bf16.msra.mxu0 %v3131
      %3145 = vmatpush.bf16.msra.mxu0 %v3130
      %3146 = vmatpush.bf16.msra.mxu0 %v3129
      %3147 = vmatpush.bf16.msra.mxu0 %v3128
      %3148 = vmatpush.bf16.msra.mxu0 %v3127
      %3149 = vmatpush.bf16.msra.mxu0 %v3126
      %3150 = vmatmul.bf16.gmra.mxu0 %v2943
      %v3151 = vpop.f32.mrf.mxu0
      %v3152 = vadd.f32 0.0, %v3151
      %v3153 = vpop.f32.mrf.mxu0
      %v3154 = vadd.f32 0.0, %v3153
      %3155 = vmatmul.bf16.gmra.mxu0 %v2944
      %v3156 = vpop.f32.mrf.mxu0
      %v3157 = vadd.f32 0.0, %v3156
      %v3158 = vpop.f32.mrf.mxu0
      %v3159 = vadd.f32 0.0, %v3158
      %3160 = vmatmul.bf16.gmra.mxu0 %v2945
      %v3161 = vpop.f32.mrf.mxu0
      %v3162 = vadd.f32 0.0, %v3161
      %v3163 = vpop.f32.mrf.mxu0
      %v3164 = vadd.f32 0.0, %v3163
      %3165 = vmatmul.bf16.gmra.mxu0 %v2946
      %v3166 = vpop.f32.mrf.mxu0
      %v3167 = vadd.f32 0.0, %v3166
      %v3168 = vpop.f32.mrf.mxu0
      %v3169 = vadd.f32 0.0, %v3168
      %3170 = vmatmul.bf16.gmra.mxu0 %v2947
      %v3171 = vpop.f32.mrf.mxu0
      %v3172 = vadd.f32 0.0, %v3171
      %v3173 = vpop.f32.mrf.mxu0
      %v3174 = vadd.f32 0.0, %v3173
      %3175 = vmatmul.bf16.gmra.mxu0 %v2948
      %v3176 = vpop.f32.mrf.mxu0
      %v3177 = vadd.f32 0.0, %v3176
      %v3178 = vpop.f32.mrf.mxu0
      %v3179 = vadd.f32 0.0, %v3178
      %3180 = vmatmul.bf16.gmra.mxu0 %v2949
      %v3181 = vpop.f32.mrf.mxu0
      %v3182 = vadd.f32 0.0, %v3181
      %v3183 = vpop.f32.mrf.mxu0
      %v3184 = vadd.f32 0.0, %v3183
      %3185 = vmatmul.bf16.gmra.mxu0 %v3092
      %v3186 = vpop.f32.mrf.mxu0
      %v3187 = vadd.f32 0.0, %v3186
      %v3188 = vpop.f32.mrf.mxu0
      %v3189 = vadd.f32 0.0, %v3188
      %3190 = vdwg.mxu0
      %v3191 = vadd.f32 %v3055, %v3152
      %v3192 = vadd.f32 %v3056, %v3154
      %v3193 = vadd.f32 %v3057, %v3157
      %v3194 = vadd.f32 %v3058, %v3159
      %v3195 = vadd.f32 %v3059, %v3162
      %v3196 = vadd.f32 %v3060, %v3164
      %v3197 = vadd.f32 %v3061, %v3167
      %v3198 = vadd.f32 %v3062, %v3169
      %v3199 = vadd.f32 %v3063, %v3172
      %v3200 = vadd.f32 %v3064, %v3174
      %v3201 = vadd.f32 %v3065, %v3177
      %v3202 = vadd.f32 %v3066, %v3179
      %v3203 = vadd.f32 %v3067, %v3182
      %v3204 = vadd.f32 %v3068, %v3184
      %v3205 = vadd.f32 %v3069, %v3187
      %v3206 = vadd.f32 %v3070, %v3189
      %s3207 = scalar_lea.vmem %s3, 512
      %v3208 = vld [vmem:[%s3207] sm:$0xf]
      %v3209 = vld [vmem:[%s3207 + $0x4] sm:$0xf]
      %v3210 = vld [vmem:[%s3207 + $0x8] sm:$0xf]
      %v3211 = vld [vmem:[%s3207 + $0xc] sm:$0xf]
      %v3212 = vld [vmem:[%s3207 + $0x10] sm:$0xf]
      %v3213 = vld [vmem:[%s3207 + $0x14] sm:$0xf]
      %v3214 = vld [vmem:[%s3207 + $0x18] sm:$0xf]
      %v3215 = vld [vmem:[%s3207 + $0x1c] sm:$0xf]
      %v3216 = vld [vmem:[%s3207 + $0x20] sm:$0xf]
      %v3217 = vld [vmem:[%s3207 + $0x24] sm:$0xf]
      %v3218 = vld [vmem:[%s3207 + $0x28] sm:$0xf]
      %v3219 = vld [vmem:[%s3207 + $0x2c] sm:$0xf]
      %v3220 = vld [vmem:[%s3207 + $0x30] sm:$0xf]
      %v3221 = vld [vmem:[%s3207 + $0x34] sm:$0xf]
      %v3222 = vld [vmem:[%s3207 + $0x38] sm:$0xf]
      %v3223 = vld [vmem:[%s3207 + $0x3c] sm:$0xf]
      %v3226 = vunpack.c.l.b16 %v2891
      %v3227 = vunpack.c.l.b16 %v2892
      %v3228 = vpack.c.b16 %v3227, %v3226
      %v3246 = vunpack.c.l.b16 %v3208
      %v3247 = vunpack.c.l.b16 %v3209
      %v3248 = vunpack.c.l.b16 %v3210
      %v3249 = vunpack.c.l.b16 %v3211
      %v3250 = vunpack.c.l.b16 %v3212
      %v3251 = vunpack.c.l.b16 %v3213
      %v3252 = vunpack.c.l.b16 %v3214
      %v3253 = vunpack.c.l.b16 %v3215
      %v3254 = vunpack.c.l.b16 %v3216
      %v3255 = vunpack.c.l.b16 %v3217
      %v3256 = vunpack.c.l.b16 %v3218
      %v3257 = vunpack.c.l.b16 %v3219
      %v3258 = vunpack.c.l.b16 %v3220
      %v3259 = vunpack.c.l.b16 %v3221
      %v3260 = vunpack.c.l.b16 %v3222
      %v3261 = vunpack.c.l.b16 %v3223
      %v3262 = vpack.c.b16 %v3247, %v3246
      %v3263 = vpack.c.b16 %v3249, %v3248
      %v3264 = vpack.c.b16 %v3251, %v3250
      %v3265 = vpack.c.b16 %v3253, %v3252
      %v3266 = vpack.c.b16 %v3255, %v3254
      %v3267 = vpack.c.b16 %v3257, %v3256
      %v3268 = vpack.c.b16 %v3259, %v3258
      %v3269 = vpack.c.b16 %v3261, %v3260
      %3278 = vmatpush.bf16.msra.mxu0 %v3269
      %3279 = vmatpush.bf16.msra.mxu0 %v3268
      %3280 = vmatpush.bf16.msra.mxu0 %v3267
      %3281 = vmatpush.bf16.msra.mxu0 %v3266
      %3282 = vmatpush.bf16.msra.mxu0 %v3265
      %3283 = vmatpush.bf16.msra.mxu0 %v3264
      %3284 = vmatpush.bf16.msra.mxu0 %v3263
      %3285 = vmatpush.bf16.msra.mxu0 %v3262
      %3286 = vmatmul.bf16.gmra.mxu0 %v2944
      %v3287 = vpop.f32.mrf.mxu0
      %v3288 = vadd.f32 0.0, %v3287
      %v3289 = vpop.f32.mrf.mxu0
      %v3290 = vadd.f32 0.0, %v3289
      %3291 = vmatmul.bf16.gmra.mxu0 %v2945
      %v3292 = vpop.f32.mrf.mxu0
      %v3293 = vadd.f32 0.0, %v3292
      %v3294 = vpop.f32.mrf.mxu0
      %v3295 = vadd.f32 0.0, %v3294
      %3296 = vmatmul.bf16.gmra.mxu0 %v2946
      %v3297 = vpop.f32.mrf.mxu0
      %v3298 = vadd.f32 0.0, %v3297
      %v3299 = vpop.f32.mrf.mxu0
      %v3300 = vadd.f32 0.0, %v3299
      %3301 = vmatmul.bf16.gmra.mxu0 %v2947
      %v3302 = vpop.f32.mrf.mxu0
      %v3303 = vadd.f32 0.0, %v3302
      %v3304 = vpop.f32.mrf.mxu0
      %v3305 = vadd.f32 0.0, %v3304
      %3306 = vmatmul.bf16.gmra.mxu0 %v2948
      %v3307 = vpop.f32.mrf.mxu0
      %v3308 = vadd.f32 0.0, %v3307
      %v3309 = vpop.f32.mrf.mxu0
      %v3310 = vadd.f32 0.0, %v3309
      %3311 = vmatmul.bf16.gmra.mxu0 %v2949
      %v3312 = vpop.f32.mrf.mxu0
      %v3313 = vadd.f32 0.0, %v3312
      %v3314 = vpop.f32.mrf.mxu0
      %v3315 = vadd.f32 0.0, %v3314
      %3316 = vmatmul.bf16.gmra.mxu0 %v3092
      %v3317 = vpop.f32.mrf.mxu0
      %v3318 = vadd.f32 0.0, %v3317
      %v3319 = vpop.f32.mrf.mxu0
      %v3320 = vadd.f32 0.0, %v3319
      %3321 = vmatmul.bf16.gmra.mxu0 %v3228
      %v3322 = vpop.f32.mrf.mxu0
      %v3323 = vadd.f32 0.0, %v3322
      %v3324 = vpop.f32.mrf.mxu0
      %v3325 = vadd.f32 0.0, %v3324
      %3326 = vdwg.mxu0
      %v3327 = vadd.f32 %v3191, %v3288
      %v3328 = vadd.f32 %v3192, %v3290
      %v3329 = vadd.f32 %v3193, %v3293
      %v3330 = vadd.f32 %v3194, %v3295
      %v3331 = vadd.f32 %v3195, %v3298
      %v3332 = vadd.f32 %v3196, %v3300
      %v3333 = vadd.f32 %v3197, %v3303
      %v3334 = vadd.f32 %v3198, %v3305
      %v3335 = vadd.f32 %v3199, %v3308
      %v3336 = vadd.f32 %v3200, %v3310
      %v3337 = vadd.f32 %v3201, %v3313
      %v3338 = vadd.f32 %v3202, %v3315
      %v3339 = vadd.f32 %v3203, %v3318
      %v3340 = vadd.f32 %v3204, %v3320
      %v3341 = vadd.f32 %v3205, %v3323
      %v3342 = vadd.f32 %v3206, %v3325
      %v3343 = vld [vmem:[%s4] sm:$0x1]
      %v3345 = vperm.slane %v3343, 0
      %v3347 = vadd.f32 %v3327, %v3345
      %v3348 = vadd.f32 %v3328, %v3345
      %v3349 = vadd.f32 %v3329, %v3345
      %v3350 = vadd.f32 %v3330, %v3345
      %v3351 = vadd.f32 %v3331, %v3345
      %v3352 = vadd.f32 %v3332, %v3345
      %v3353 = vadd.f32 %v3333, %v3345
      %v3354 = vadd.f32 %v3334, %v3345
      %v3355 = vadd.f32 %v3335, %v3345
      %v3356 = vadd.f32 %v3336, %v3345
      %v3357 = vadd.f32 %v3337, %v3345
      %v3358 = vadd.f32 %v3338, %v3345
      %v3359 = vadd.f32 %v3339, %v3345
      %v3360 = vadd.f32 %v3340, %v3345
      %v3361 = vadd.f32 %v3341, %v3345
      %v3362 = vadd.f32 %v3342, %v3345
      %v3363 = vld [vmem:[%s1225] sm:$0xf]
      %v3364 = vld [vmem:[%s1225 + $0x4] sm:$0xf]
      %v3365 = vld [vmem:[%s1225 + $0x8] sm:$0xf]
      %v3366 = vld [vmem:[%s1225 + $0xc] sm:$0xf]
      %v3367 = vld [vmem:[%s1225 + $0x10] sm:$0xf]
      %v3368 = vld [vmem:[%s1225 + $0x14] sm:$0xf]
      %v3369 = vld [vmem:[%s1225 + $0x18] sm:$0xf]
      %v3370 = vld [vmem:[%s1225 + $0x1c] sm:$0xf]
      %v3371 = vld [vmem:[%s1225 + $0x20] sm:$0xf]
      %v3372 = vld [vmem:[%s1225 + $0x24] sm:$0xf]
      %v3373 = vld [vmem:[%s1225 + $0x28] sm:$0xf]
      %v3374 = vld [vmem:[%s1225 + $0x2c] sm:$0xf]
      %v3375 = vld [vmem:[%s1225 + $0x30] sm:$0xf]
      %v3376 = vld [vmem:[%s1225 + $0x34] sm:$0xf]
      %v3377 = vld [vmem:[%s1225 + $0x38] sm:$0xf]
      %v3378 = vld [vmem:[%s1225 + $0x3c] sm:$0xf]
      %v3379 = vld [vmem:[%s5] sm:$0x3]
      %v3380 = vld [vmem:[%s6] sm:$0x1]
      %v3382 = vperm.slane %v3380, 0
      %v3400 = vunpack.c.l.b16 %v3363
      %v3401 = vunpack.c.l.b16 %v3364
      %v3402 = vunpack.c.l.b16 %v3365
      %v3403 = vunpack.c.l.b16 %v3366
      %v3404 = vunpack.c.l.b16 %v3367
      %v3405 = vunpack.c.l.b16 %v3368
      %v3406 = vunpack.c.l.b16 %v3369
      %v3407 = vunpack.c.l.b16 %v3370
      %v3408 = vunpack.c.l.b16 %v3371
      %v3409 = vunpack.c.l.b16 %v3372
      %v3410 = vunpack.c.l.b16 %v3373
      %v3411 = vunpack.c.l.b16 %v3374
      %v3412 = vunpack.c.l.b16 %v3375
      %v3413 = vunpack.c.l.b16 %v3376
      %v3414 = vunpack.c.l.b16 %v3377
      %v3415 = vunpack.c.l.b16 %v3378
      %v3416 = vpack.c.b16 %v3401, %v3400
      %v3417 = vpack.c.b16 %v3403, %v3402
      %v3418 = vpack.c.b16 %v3405, %v3404
      %v3419 = vpack.c.b16 %v3407, %v3406
      %v3420 = vpack.c.b16 %v3409, %v3408
      %v3421 = vpack.c.b16 %v3411, %v3410
      %v3422 = vpack.c.b16 %v3413, %v3412
      %v3423 = vpack.c.b16 %v3415, %v3414
      %v3425 = vsel %vm347, %v3416, 0
      %v3428 = vsel %vm347, %v3417, 0
      %v3431 = vsel %vm347, %v3418, 0
      %v3434 = vsel %vm347, %v3419, 0
      %v3437 = vsel %vm347, %v3420, 0
      %v3440 = vsel %vm347, %v3421, 0
      %v3443 = vsel %vm347, %v3422, 0
      %v3446 = vsel %vm347, %v3423, 0
      %v3449 = vsel %vm372, %v3379, 0
      %3451 = vmatpush.bf16.msra.mxu0 0
      %3452 = vmatpush.bf16.msra.mxu0 0
      %3453 = vmatpush.bf16.msra.mxu0 0
      %3454 = vmatpush.bf16.msra.mxu0 0
      %3455 = vmatpush.bf16.msra.mxu0 0
      %3456 = vmatpush.bf16.msra.mxu0 0
      %3457 = vmatpush.bf16.msra.mxu0 0
      %3458 = vmatpush.bf16.msra.mxu0 %v3449
      %3459 = vmatmul.bf16.gmra.mxu0 %v3425
      %v3460 = vpop.f32.mrf.mxu0
      %v3461 = vadd.f32 %v3382, %v3460
      %v3462 = vpop.f32.mrf.mxu0
      %v3463 = vadd.f32 %v3382, %v3462
      %3464 = vmatmul.bf16.gmra.mxu0 %v3428
      %v3465 = vpop.f32.mrf.mxu0
      %v3466 = vadd.f32 %v3382, %v3465
      %v3467 = vpop.f32.mrf.mxu0
      %v3468 = vadd.f32 %v3382, %v3467
      %3469 = vmatmul.bf16.gmra.mxu0 %v3431
      %v3470 = vpop.f32.mrf.mxu0
      %v3471 = vadd.f32 %v3382, %v3470
      %v3472 = vpop.f32.mrf.mxu0
      %v3473 = vadd.f32 %v3382, %v3472
      %3474 = vmatmul.bf16.gmra.mxu0 %v3434
      %v3475 = vpop.f32.mrf.mxu0
      %v3476 = vadd.f32 %v3382, %v3475
      %v3477 = vpop.f32.mrf.mxu0
      %v3478 = vadd.f32 %v3382, %v3477
      %3479 = vmatmul.bf16.gmra.mxu0 %v3437
      %v3480 = vpop.f32.mrf.mxu0
      %v3481 = vadd.f32 %v3382, %v3480
      %v3482 = vpop.f32.mrf.mxu0
      %v3483 = vadd.f32 %v3382, %v3482
      %3484 = vmatmul.bf16.gmra.mxu0 %v3440
      %v3485 = vpop.f32.mrf.mxu0
      %v3486 = vadd.f32 %v3382, %v3485
      %v3487 = vpop.f32.mrf.mxu0
      %v3488 = vadd.f32 %v3382, %v3487
      %3489 = vmatmul.bf16.gmra.mxu0 %v3443
      %v3490 = vpop.f32.mrf.mxu0
      %v3491 = vadd.f32 %v3382, %v3490
      %v3492 = vpop.f32.mrf.mxu0
      %v3493 = vadd.f32 %v3382, %v3492
      %3494 = vmatmul.bf16.gmra.mxu0 %v3446
      %v3495 = vpop.f32.mrf.mxu0
      %v3496 = vadd.f32 %v3382, %v3495
      %v3497 = vpop.f32.mrf.mxu0
      %v3498 = vadd.f32 %v3382, %v3497
      %3499 = vdwg.mxu0
      %v3500 = vadd.f32 %v3347, %v3461
      %v3501 = vadd.f32 %v3348, %v3463
      %v3502 = vadd.f32 %v3349, %v3466
      %v3503 = vadd.f32 %v3350, %v3468
      %v3504 = vadd.f32 %v3351, %v3471
      %v3505 = vadd.f32 %v3352, %v3473
      %v3506 = vadd.f32 %v3353, %v3476
      %v3507 = vadd.f32 %v3354, %v3478
      %v3508 = vadd.f32 %v3355, %v3481
      %v3509 = vadd.f32 %v3356, %v3483
      %v3510 = vadd.f32 %v3357, %v3486
      %v3511 = vadd.f32 %v3358, %v3488
      %v3512 = vadd.f32 %v3359, %v3491
      %v3513 = vadd.f32 %v3360, %v3493
      %v3514 = vadd.f32 %v3361, %v3496
      %v3515 = vadd.f32 %v3362, %v3498
      %v3516 = vmax.f32 %v3500, 0.0
      %v3517 = vmax.f32 %v3501, 0.0
      %v3518 = vmax.f32 %v3502, 0.0
      %v3519 = vmax.f32 %v3503, 0.0
      %v3520 = vmax.f32 %v3504, 0.0
      %v3521 = vmax.f32 %v3505, 0.0
      %v3522 = vmax.f32 %v3506, 0.0
      %v3523 = vmax.f32 %v3507, 0.0
      %v3524 = vmax.f32 %v3508, 0.0
      %v3525 = vmax.f32 %v3509, 0.0
      %v3526 = vmax.f32 %v3510, 0.0
      %v3527 = vmax.f32 %v3511, 0.0
      %v3528 = vmax.f32 %v3512, 0.0
      %v3529 = vmax.f32 %v3513, 0.0
      %v3530 = vmax.f32 %v3514, 0.0
      %v3531 = vmax.f32 %v3515, 0.0
      %3532 = vst [vmem:[%s278] sm:$0xff] %v3516
      %3533 = vst [vmem:[%s278 + $0x8] sm:$0xff] %v3517
      %3534 = vst [vmem:[%s278 + $0x10] sm:$0xff] %v3518
      %3535 = vst [vmem:[%s278 + $0x18] sm:$0xff] %v3519
      %3536 = vst [vmem:[%s278 + $0x20] sm:$0xff] %v3520
      %3537 = vst [vmem:[%s278 + $0x28] sm:$0xff] %v3521
      %3538 = vst [vmem:[%s278 + $0x30] sm:$0xff] %v3522
      %3539 = vst [vmem:[%s278 + $0x38] sm:$0xff] %v3523
      %3540 = vst [vmem:[%s278 + $0x40] sm:$0xff] %v3524
      %3541 = vst [vmem:[%s278 + $0x48] sm:$0xff] %v3525
      %3542 = vst [vmem:[%s278 + $0x50] sm:$0xff] %v3526
      %3543 = vst [vmem:[%s278 + $0x58] sm:$0xff] %v3527
      %3544 = vst [vmem:[%s278 + $0x60] sm:$0xff] %v3528
      %3545 = vst [vmem:[%s278 + $0x68] sm:$0xff] %v3529
      %3546 = vst [vmem:[%s278 + $0x70] sm:$0xff] %v3530
      %3547 = vst [vmem:[%s278 + $0x78] sm:$0xff] %v3531
      %p3548 = scmp.lt.s32.totalorder %s18, 1
      %s3549 = scalar_select %p3548, %s18, 1
      %s3550 = smul.addr %s3549, 16
      %s3551 = smul.addr %s3550, 8
      %s3552 = scalar_lea.vmem %s7, %s3551
      // Predicated region
      $region49: #{residual_block_forward.1} parent=47 // pred_check
        %p3553 = pneg %p188
      $region50: #{residual_block_forward.1} parent=47 // pred_check_branch
        %3555 = sbr.rel (%p3553) target = $region52
      $region51: #{residual_block_forward.1} parent=47 // pred_region
        _
      $region52: #{residual_block_forward.1} parent=47 // pred_fallthru
        _
    $region48: #{residual_block_forward.1} parent=5 // pred_fallthru
      _
    %p3556 = scmp.le.s32.totalorder 2, %s13
    // Predicated region
    $region53: #{residual_block_forward.1} parent=5 // pred_check
      %p3557 = pneg %p3556
    $region54: #{residual_block_forward.1} parent=5 // pred_check_branch
      %3559 = sbr.rel (%p3557) target = $region56
    $region55: #{residual_block_forward.1} parent=5 // pred_region
      %s3560 = ssub.s32 %s13, 2
      // Predicated region
      $region57: #{residual_block_forward.1} parent=55 // pred_check
        %p3561 = pneg %p194
      $region58: #{residual_block_forward.1} parent=55 // pred_check_branch
        %3563 = sbr.rel (%p3561) target = $region60
      $region59: #{residual_block_forward.1} parent=55 // pred_region
        %p3564 = scmp.lt.s32.totalorder %s19, 1
        %s3565 = scalar_select %p3564, %s19, 1
        %s3566 = smul.addr %s3565, 16
        %s3567 = smul.addr %s3566, 8
        %s3568 = scalar_lea.vmem %s7, %s3567
      $region60: #{residual_block_forward.1} parent=55 // pred_fallthru
        _
    $region56: #{residual_block_forward.1} parent=5 // pred_fallthru
      _
  $region6: #{residual_block_forward.1} parent=0 // loop_footer
    %s17 = sadd.s32 1, %s13
  $region7: #{residual_block_forward.1} parent=0 // loop_footer_branch
    %12 = sbr.rel target = $region3
  $region8: #{residual_block_forward.1} parent=0 // loop_exit
    _

</llo_original>
